<compile_context>
chip_gen: v7x
topology: tpu7x:2x2x1
jax: 0.10.0
libtpu: 0.0.40
codegen_flags: <defaults>
</compile_context>

<pallas_src>
import jax
import jax.numpy as jnp
from jax import lax
from jax.experimental import pallas as pl
from jax.experimental.pallas import tpu as pltpu


# ---------------------------------------------------------------------------
# Fused per-layer kernel: one grid step = (direction d, time chunk c)
# ---------------------------------------------------------------------------
def _bilstm_layer_kernel(x_ref, wih_ref, whh_ref, b_ref, out_ref, hn_ref, cn_ref):
    # x_ref:   (P, B, TC, Dp)   P input parts (1 for layer 0, 2 for layers >= 1)
    # wih_ref: (1, P, 4H, Dp)   this direction's input weights (gate order i,f,o,g)
    # whh_ref: (1, 4H, H)       this direction's recurrent weights
    # b_ref:   (1, 1, 4H)       combined b_ih + b_hh
    # out_ref: (1, B, TC, H)    hidden outputs for this (direction, chunk)
    # hn_ref:  (1, B, H)        carried/final hidden state (constant over chunks)
    # cn_ref:  (1, B, H)        carried/final cell state
    d = pl.program_id(0)          # 0 = forward, 1 = backward
    c = pl.program_id(1)          # chunk index along the sequential axis

    P, B, TC, Dp = x_ref.shape
    H = whh_ref.shape[2]

    # Initialize the carried state at the first chunk of each direction.
    @pl.when(c == 0)
    def _init():
        hn_ref[...] = jnp.zeros_like(hn_ref)
        cn_ref[...] = jnp.zeros_like(cn_ref)

    w_ih = wih_ref[0]                       # (P, 4H, Dp)
    w_hh = whh_ref[0]                       # (4H, H)
    bias = b_ref[0].astype(jnp.float32)     # (1, 4H)

    # Input projection for the whole chunk: one (or two) big MXU matmuls.
    # Operands stay in their native dtype; accumulation is f32.
    x = x_ref[...]                          # (P, B, TC, Dp)
    gx = None
    for p in range(P):                      # static Python loop, P in {1, 2}
        xp = x[p].reshape(B * TC, Dp)
        part = lax.dot_general(xp, w_ih[p], (((1,), (1,)), ((), ())),
                               preferred_element_type=jnp.float32)
        gx = part if gx is None else gx + part
    gx = (gx + bias).reshape(B, TC, 4 * H)  # (B, TC, 4H), f32

    # Sequential recurrence over the chunk.  State lives in hn/cn output refs.
    def _run(order):
        h = hn_ref[0].astype(jnp.float32)   # (B, H)
        cc = cn_ref[0].astype(jnp.float32)  # (B, H)
        for k in order:                     # static unroll (TC is small)
            g = gx[:, k, :] + lax.dot_general(
                h, w_hh, (((1,), (1,)), ((), ())),
                preferred_element_type=jnp.float32)
            # Gate rows were permuted host-side to (i, f, o, g):
            sig = jax.nn.sigmoid(g[:, :3 * H])      # i | f | o, one contiguous slice
            g_g = jnp.tanh(g[:, 3 * H:])
            cc = sig[:, H:2 * H] * cc + sig[:, :H] * g_g
            h = sig[:, 2 * H:3 * H] * jnp.tanh(cc)
            out_ref[0, :, k, :] = h.astype(out_ref.dtype)
        hn_ref[0] = h
        cn_ref[0] = cc

    @pl.when(d == 0)
    def _fwd():
        _run(range(TC))                     # increasing time within the chunk

    @pl.when(d == 1)
    def _bwd():
        _run(range(TC - 1, -1, -1))         # decreasing time within the chunk


# ---------------------------------------------------------------------------
# Wrappers
# ---------------------------------------------------------------------------
def _pick_time_chunk(T, requested=None, cap=64):
    """Chunk length: a divisor of T that is a multiple of 8 (sublane), else T."""
    if requested is not None:
        tc = int(requested)
    else:
        tc = 0
        for cand in range(8, min(T, cap) + 1, 8):
            if T % cand == 0:
                tc = cand
        if tc == 0:
            tc = T
    if T % tc != 0 or not (tc % 8 == 0 or tc == T):
        raise ValueError(f"invalid time_chunk {tc} for T={T}")
    return tc


def _bilstm_layer(x_parts, w_ih_stk, w_hh_stk, b_stk, *, time_chunk=None):
    """One bidirectional LSTM layer.

    x_parts:  (P, B, T, Dp) input feature parts (P=1 first layer, P=2 afterwards)
    w_ih_stk: (2, P, 4H, Dp), w_hh_stk: (2, 4H, H), b_stk: (2, 1, 4H)
    Returns (out (2, B, T, H), h_n (2, B, H), c_n (2, B, H)); out[0]=fwd, out[1]=bwd.
    """
    P, B, T, Dp = x_parts.shape
    H = w_hh_stk.shape[-1]
    TC = _pick_time_chunk(T, time_chunk)
    nc = T // TC

    def chunk_idx(d, c):
        # forward direction walks chunks 0..nc-1, backward walks nc-1..0
        return c + d * (nc - 1 - 2 * c)

    # Explicit VMEM budget (double-buffered blocks + in-kernel f32 gates temp).
    isz = x_parts.dtype.itemsize
    est = (2 * (P * B * TC * Dp * isz          # x chunk
                + B * TC * H * isz             # out chunk
                + P * 4 * H * Dp * isz         # W_ih
                + 4 * H * H * isz              # W_hh
                + 4 * H * 4)                   # bias
           + 2 * 2 * B * H * 4                 # h_n / c_n accumulators
           + B * TC * 4 * H * 4)               # gx temp
    vmem_limit = int(min(max(4 * est, 16 * 1024 * 1024), 64 * 1024 * 1024))

    out, h_n, c_n = pl.pallas_call(
        _bilstm_layer_kernel,
        out_shape=(
            jax.ShapeDtypeStruct((2, B, T, H), x_parts.dtype),
            jax.ShapeDtypeStruct((2, B, H), jnp.float32),
            jax.ShapeDtypeStruct((2, B, H), jnp.float32),
        ),
        grid_spec=pltpu.PrefetchScalarGridSpec(
            num_scalar_prefetch=0,
            grid=(2, nc),                                   # (direction, chunk)
            in_specs=[
                pl.BlockSpec((P, B, TC, Dp), lambda d, c: (0, 0, chunk_idx(d, c), 0)),
                pl.BlockSpec((1, P, 4 * H, Dp), lambda d, c: (d, 0, 0, 0)),
                pl.BlockSpec((1, 4 * H, H), lambda d, c: (d, 0, 0)),
                pl.BlockSpec((1, 1, 4 * H), lambda d, c: (d, 0, 0)),
            ],
            out_specs=(
                pl.BlockSpec((1, B, TC, H), lambda d, c: (d, 0, chunk_idx(d, c), 0)),
                pl.BlockSpec((1, B, H), lambda d, c: (d, 0, 0)),
                pl.BlockSpec((1, B, H), lambda d, c: (d, 0, 0)),
            ),
        ),
        compiler_params=pltpu.CompilerParams(
            dimension_semantics=("parallel", "arbitrary"),  # dirs parallel, time sequential
            vmem_limit_bytes=vmem_limit,
        ),
    )(x_parts, w_ih_stk, w_hh_stk, b_stk)
    return out, h_n, c_n


def _permute_gates(w):
    """PyTorch gate row order (i, f, g, o) -> (i, f, o, g) along axis 0."""
    H = w.shape[0] // 4
    return jnp.concatenate([w[:2 * H], w[3 * H:4 * H], w[2 * H:3 * H]], axis=0)


def prot_lstm_forward(embedded_seq, params, *, time_chunk=None):
    """Bidirectional multi-layer LSTM forward (batch_first), matching nn.LSTM.

    embedded_seq: (B, T, E)
    params: list over layers; each layer is [(w_ih, w_hh, b_fwd), (w_ih, w_hh, b_bwd)]
            with w_ih (4H, Din), w_hh (4H, H), b = b_ih + b_hh (4H,).
    Returns (output (B, T, 2H), (h_n, c_n)) each (2*num_layers, B, H)."""
    B, T, _ = embedded_seq.shape
    x_parts = embedded_seq[None]                     # (P=1, B, T, E)
    h_list, c_list = [], []
    for layer_params in params:
        P = x_parts.shape[0]
        Dp = x_parts.shape[-1]
        H = layer_params[0][1].shape[1]

        wih_dirs, whh_dirs, b_dirs = [], [], []
        for (w_ih, w_hh, b) in layer_params:         # forward, then backward
            w_ih = _permute_gates(w_ih)              # (4H, P*Dp)
            w_hh = _permute_gates(w_hh)              # (4H, H)
            b = _permute_gates(b)                    # (4H,)
            wih_dirs.append(jnp.stack(
                [w_ih[:, p * Dp:(p + 1) * Dp] for p in range(P)], axis=0))
            whh_dirs.append(w_hh)
            b_dirs.append(b.reshape(1, 4 * H))
        w_ih_stk = jnp.stack(wih_dirs, axis=0)       # (2, P, 4H, Dp)
        w_hh_stk = jnp.stack(whh_dirs, axis=0)       # (2, 4H, H)
        b_stk = jnp.stack(b_dirs, axis=0)            # (2, 1, 4H)

        out, h_n, c_n = _bilstm_layer(x_parts, w_ih_stk, w_hh_stk, b_stk,
                                      time_chunk=time_chunk)
        h_list.append(h_n)
        c_list.append(c_n)
        x_parts = out                                # (2, B, T, H) feeds next layer
        # TODO(synk): inter-layer dropout (training mode) treated as identity.

    # (2, B, T, H) -> (B, T, 2H) with fwd columns first (nn.LSTM concat order).
    output = jnp.transpose(x_parts, (1, 2, 0, 3)).reshape(B, T, -1)
    h_n = jnp.concatenate(h_list, axis=0)            # (2*num_layers, B, H)
    c_n = jnp.concatenate(c_list, axis=0)
    return output, (h_n, c_n)


# ---------------------------------------------------------------------------
# Pure-JAX reference (transcription of PyTorch nn.LSTM forward, eval mode)
# ---------------------------------------------------------------------------
def _reference(x, params):
    B, T, _ = x.shape
    layer_in = x
    h_list, c_list = [], []
    for layer_params in params:
        dir_outs = []
        for (w_ih, w_hh, b), reverse in zip(layer_params, (False, True)):
            H = w_hh.shape[1]
            h = jnp.zeros((B, H), jnp.float32)
            c = jnp.zeros((B, H), jnp.float32)
            order = range(T - 1, -1, -1) if reverse else range(T)
            outs = [None] * T
            for t in order:
                gates = layer_in[:, t, :] @ w_ih.T + h @ w_hh.T + b
                i = jax.nn.sigmoid(gates[:, 0 * H:1 * H])
                f = jax.nn.sigmoid(gates[:, 1 * H:2 * H])
                g = jnp.tanh(gates[:, 2 * H:3 * H])
                o = jax.nn.sigmoid(gates[:, 3 * H:4 * H])
                c = f * c + i * g
                h = o * jnp.tanh(c)
                outs[t] = h
            dir_outs.append(jnp.stack(outs, axis=1))    # (B, T, H)
            h_list.append(h)
            c_list.append(c)
        layer_in = jnp.concatenate(dir_outs, axis=-1)
    return layer_in, (jnp.stack(h_list, 0), jnp.stack(c_list, 0))


if __name__ == "__main__":
    # Small config: batch=2, seq=16, embed_dim=16, hidden_dim=32, num_layers=2.
    # time_chunk=8 -> grid (2 directions, 2 chunks): exercises the chunked
    # recurrence and the carried state across chunks.
    B, T, E, H, NUM_LAYERS = 2, 16, 16, 32, 2

    key = jax.random.PRNGKey(0)
    key, kx = jax.random.split(key)
    embedded_seq = jax.random.normal(kx, (B, T, E), dtype=jnp.float32)

    # Deterministic nn.LSTM-style parameters (uniform(-1/sqrt(H), 1/sqrt(H))).
    scale = 1.0 / float(H) ** 0.5
    params = []
    d_in = E
    for _ in range(NUM_LAYERS):
        layer_params = []
        for _ in range(2):  # forward, backward directions
            key, k1, k2, k3, k4 = jax.random.split(key, 5)
            w_ih = jax.random.uniform(k1, (4 * H, d_in), jnp.float32, -scale, scale)
            w_hh = jax.random.uniform(k2, (4 * H, H), jnp.float32, -scale, scale)
            b_ih = jax.random.uniform(k3, (4 * H,), jnp.float32, -scale, scale)
            b_hh = jax.random.uniform(k4, (4 * H,), jnp.float32, -scale, scale)
            layer_params.append((w_ih, w_hh, b_ih + b_hh))
        params.append(layer_params)
        d_in = 2 * H

    output, (h_n, c_n) = prot_lstm_forward(embedded_seq, params, time_chunk=8)
    output = jax.block_until_ready(output)
    h_n = jax.block_until_ready(h_n)
    c_n = jax.block_until_ready(c_n)

    ref_out, (ref_h, ref_c) = _reference(embedded_seq, params)

    assert output.shape == (B, T, 2 * H)
    assert h_n.shape == (2 * NUM_LAYERS, B, H)
    assert c_n.shape == (2 * NUM_LAYERS, B, H)
    # Tolerance covers MXU vs XLA default matmul precision differences.
    assert jnp.allclose(output, ref_out, atol=1e-3, rtol=1e-3), "output mismatch"
    assert jnp.allclose(h_n, ref_h, atol=1e-3, rtol=1e-3), "h_n mismatch"
    assert jnp.allclose(c_n, ref_c, atol=1e-3, rtol=1e-3), "c_n mismatch"

    print("KERNEL_OK")
</pallas_src>

<mosaic_0001>
module attributes {stable_mosaic.version = 11 : i64} {
  func.func @_bilstm_layer_kernel(%arg0: i32, %arg1: i32, %arg2: memref<1x2x8x16xf32, #tpu.memory_space<vmem>>, %arg3: memref<1x1x128x16xf32, #tpu.memory_space<vmem>>, %arg4: memref<1x128x32xf32, #tpu.memory_space<vmem>>, %arg5: memref<1x1x128xf32, #tpu.memory_space<vmem>>, %arg6: memref<1x2x8x32xf32, #tpu.memory_space<vmem>>, %arg7: memref<1x2x32xf32, #tpu.memory_space<vmem>>, %arg8: memref<1x2x32xf32, #tpu.memory_space<vmem>>) attributes {dimension_semantics = [#tpu.dimension_semantics<parallel>, #tpu.dimension_semantics<arbitrary>], iteration_bounds = array<i64: 2, 2>, scalar_prefetch = 0 : i64, scratch_operands = 0 : i64, tpu.core_type = #tpu.core_type<tc>, window_params = [{transform_indices = @transform_0, window_bounds = array<i64: 1, 2, 8, 16>}, {transform_indices = @transform_1, window_bounds = array<i64: 1, 1, 128, 16>}, {transform_indices = @transform_2, window_bounds = array<i64: 1, 128, 32>}, {transform_indices = @transform_3, window_bounds = array<i64: 1, 1, 128>}, {transform_indices = @transform_4, window_bounds = array<i64: 1, 2, 8, 32>}, {transform_indices = @transform_5, window_bounds = array<i64: 1, 2, 32>}, {transform_indices = @transform_6, window_bounds = array<i64: 1, 2, 32>}]} {
    %c0_i32 = arith.constant 0 : i32
    %0 = arith.cmpi eq, %arg1, %c0_i32 : i32
    %1 = arith.extui %0 : i1 to i32
    %c0_i32_0 = arith.constant 0 : i32
    %2 = arith.cmpi ne, %1, %c0_i32_0 : i32
    scf.if %2 {
      %cst_17 = arith.constant 0.000000e+00 : f32
      %23 = vector.broadcast %cst_17 : f32 to vector<1x2x32xf32>
      %c0_18 = arith.constant 0 : index
      %c0_19 = arith.constant 0 : index
      %c0_20 = arith.constant 0 : index
      %24 = vector.load %arg7[%c0_18, %c0_19, %c0_20] : memref<1x2x32xf32, #tpu.memory_space<vmem>>, vector<1x2x32xf32>
      tpu.vector_store %arg7[%c0_18, %c0_19, %c0_20], %23 {strides = array<i32>} : memref<1x2x32xf32, #tpu.memory_space<vmem>>, vector<1x2x32xf32>,
      %cst_21 = arith.constant 0.000000e+00 : f32
      %25 = vector.broadcast %cst_21 : f32 to vector<1x2x32xf32>
      %c0_22 = arith.constant 0 : index
      %c0_23 = arith.constant 0 : index
      %c0_24 = arith.constant 0 : index
      %26 = vector.load %arg8[%c0_22, %c0_23, %c0_24] : memref<1x2x32xf32, #tpu.memory_space<vmem>>, vector<1x2x32xf32>
      tpu.vector_store %arg8[%c0_22, %c0_23, %c0_24], %25 {strides = array<i32>} : memref<1x2x32xf32, #tpu.memory_space<vmem>>, vector<1x2x32xf32>,
    } else {
    }
    %c0 = arith.constant 0 : index
    %c0_1 = arith.constant 0 : index
    %c0_2 = arith.constant 0 : index
    %c0_3 = arith.constant 0 : index
    %3 = vector.load %arg3[%c0, %c0_1, %c0_2, %c0_3] : memref<1x1x128x16xf32, #tpu.memory_space<vmem>>, vector<1x1x128x16xf32>
    %4 = vector.shape_cast %3 : vector<1x1x128x16xf32> to vector<1x128x16xf32>
    %c0_4 = arith.constant 0 : index
    %c0_5 = arith.constant 0 : index
    %c0_6 = arith.constant 0 : index
    %5 = vector.load %arg4[%c0_4, %c0_5, %c0_6] : memref<1x128x32xf32, #tpu.memory_space<vmem>>, vector<1x128x32xf32>
    %6 = vector.shape_cast %5 : vector<1x128x32xf32> to vector<128x32xf32>
    %c0_7 = arith.constant 0 : index
    %c0_8 = arith.constant 0 : index
    %c0_9 = arith.constant 0 : index
    %7 = vector.load %arg5[%c0_7, %c0_8, %c0_9] : memref<1x1x128xf32, #tpu.memory_space<vmem>>, vector<1x1x128xf32>
    %8 = vector.shape_cast %7 : vector<1x1x128xf32> to vector<1x128xf32>
    %c0_10 = arith.constant 0 : index
    %c0_11 = arith.constant 0 : index
    %c0_12 = arith.constant 0 : index
    %c0_13 = arith.constant 0 : index
    %9 = vector.load %arg2[%c0_10, %c0_11, %c0_12, %c0_13] : memref<1x2x8x16xf32, #tpu.memory_space<vmem>>, vector<1x2x8x16xf32>
    %10 = vector.shape_cast %9 : vector<1x2x8x16xf32> to vector<2x8x16xf32>
    %11 = vector.shape_cast %10 : vector<2x8x16xf32> to vector<16x16xf32>
    %12 = vector.shape_cast %4 : vector<1x128x16xf32> to vector<128x16xf32>
    %cst = arith.constant dense<0.000000e+00> : vector<16x128xf32>
    %13 = tpu.matmul %11, %12, %cst {dimension_numbers = #tpu.dot_dimension_numbers<[1], [1], [0], [0], [0, 0, 1, 0], [], []>} : vector<16x16xf32>, vector<128x16xf32>, vector<16x128xf32> -> vector<16x128xf32>
    %14 = vector.broadcast %8 : vector<1x128xf32> to vector<16x128xf32>
    %15 = arith.addf %13, %14 : vector<16x128xf32>
    %16 = vector.shape_cast %15 : vector<16x128xf32> to vector<2x8x128xf32>
    %c0_i32_14 = arith.constant 0 : i32
    %17 = arith.cmpi eq, %arg0, %c0_i32_14 : i32
    %18 = arith.extui %17 : i1 to i32
    %c0_i32_15 = arith.constant 0 : i32
    %19 = arith.cmpi ne, %18, %c0_i32_15 : i32
    scf.if %19 {
      %c0_17 = arith.constant 0 : index
      %c0_18 = arith.constant 0 : index
      %c0_19 = arith.constant 0 : index
      %23 = vector.load %arg7[%c0_17, %c0_18, %c0_19] : memref<1x2x32xf32, #tpu.memory_space<vmem>>, vector<1x2x32xf32>
      %24 = vector.shape_cast %23 : vector<1x2x32xf32> to vector<2x32xf32>
      %c0_20 = arith.constant 0 : index
      %c0_21 = arith.constant 0 : index
      %c0_22 = arith.constant 0 : index
      %25 = vector.load %arg8[%c0_20, %c0_21, %c0_22] : memref<1x2x32xf32, #tpu.memory_space<vmem>>, vector<1x2x32xf32>
      %26 = vector.shape_cast %25 : vector<1x2x32xf32> to vector<2x32xf32>
      %27 = vector.extract_strided_slice %16 {offsets = [0, 0, 0], sizes = [2, 1, 128], strides = [1, 1, 1]} : vector<2x8x128xf32> to vector<2x1x128xf32>
      %28 = vector.shape_cast %27 : vector<2x1x128xf32> to vector<2x128xf32>
      %cst_23 = arith.constant dense<0.000000e+00> : vector<2x128xf32>
      %29 = tpu.matmul %24, %6, %cst_23 {dimension_numbers = #tpu.dot_dimension_numbers<[1], [1], [0], [0], [0, 0, 1, 0], [], []>} : vector<2x32xf32>, vector<128x32xf32>, vector<2x128xf32> -> vector<2x128xf32>
      %30 = arith.addf %28, %29 : vector<2x128xf32>
      %31 = vector.extract_strided_slice %30 {offsets = [0, 0], sizes = [2, 96], strides = [1, 1]} : vector<2x128xf32> to vector<2x96xf32>
      %32 = arith.negf %31 : vector<2x96xf32>
      %33 = math.exp %32 : vector<2x96xf32>
      %cst_24 = arith.constant 1.000000e+00 : f32
      %34 = vector.broadcast %cst_24 : f32 to vector<2x96xf32>
      %35 = arith.addf %34, %33 : vector<2x96xf32>
      %36 = arith.divf %34, %35 : vector<2x96xf32>
      %37 = vector.extract_strided_slice %30 {offsets = [0, 96], sizes = [2, 32], strides = [1, 1]} : vector<2x128xf32> to vector<2x32xf32>
      %38 = math.tanh %37 : vector<2x32xf32>
      %39 = vector.extract_strided_slice %36 {offsets = [0, 32], sizes = [2, 32], strides = [1, 1]} : vector<2x96xf32> to vector<2x32xf32>
      %40 = arith.mulf %39, %26 : vector<2x32xf32>
      %41 = vector.extract_strided_slice %36 {offsets = [0, 0], sizes = [2, 32], strides = [1, 1]} : vector<2x96xf32> to vector<2x32xf32>
      %42 = arith.mulf %41, %38 : vector<2x32xf32>
      %43 = arith.addf %40, %42 : vector<2x32xf32>
      %44 = vector.extract_strided_slice %36 {offsets = [0, 64], sizes = [2, 32], strides = [1, 1]} : vector<2x96xf32> to vector<2x32xf32>
      %45 = math.tanh %43 : vector<2x32xf32>
      %46 = arith.mulf %44, %45 : vector<2x32xf32>
      %c0_25 = arith.constant 0 : index
      %c0_26 = arith.constant 0 : index
      %c0_27 = arith.constant 0 : index
      %c0_28 = arith.constant 0 : index
      %47 = vector.load %arg6[%c0_25, %c0_26, %c0_27, %c0_28] : memref<1x2x8x32xf32, #tpu.memory_space<vmem>>, vector<1x2x1x32xf32>
      %48 = vector.shape_cast %47 : vector<1x2x1x32xf32> to vector<2x32xf32>
      %49 = vector.shape_cast %46 : vector<2x32xf32> to vector<1x2x1x32xf32>
      tpu.vector_store %arg6[%c0_25, %c0_26, %c0_27, %c0_28], %49 {strides = array<i32>} : memref<1x2x8x32xf32, #tpu.memory_space<vmem>>, vector<1x2x1x32xf32>,
      %50 = vector.extract_strided_slice %16 {offsets = [0, 1, 0], sizes = [2, 1, 128], strides = [1, 1, 1]} : vector<2x8x128xf32> to vector<2x1x128xf32>
      %51 = vector.shape_cast %50 : vector<2x1x128xf32> to vector<2x128xf32>
      %cst_29 = arith.constant dense<0.000000e+00> : vector<2x128xf32>
      %52 = tpu.matmul %46, %6, %cst_29 {dimension_numbers = #tpu.dot_dimension_numbers<[1], [1], [0], [0], [0, 0, 1, 0], [], []>} : vector<2x32xf32>, vector<128x32xf32>, vector<2x128xf32> -> vector<2x128xf32>
      %53 = arith.addf %51, %52 : vector<2x128xf32>
      %54 = vector.extract_strided_slice %53 {offsets = [0, 0], sizes = [2, 96], strides = [1, 1]} : vector<2x128xf32> to vector<2x96xf32>
      %55 = arith.negf %54 : vector<2x96xf32>
      %56 = math.exp %55 : vector<2x96xf32>
      %cst_30 = arith.constant 1.000000e+00 : f32
      %57 = vector.broadcast %cst_30 : f32 to vector<2x96xf32>
      %58 = arith.addf %57, %56 : vector<2x96xf32>
      %59 = arith.divf %57, %58 : vector<2x96xf32>
      %60 = vector.extract_strided_slice %53 {offsets = [0, 96], sizes = [2, 32], strides = [1, 1]} : vector<2x128xf32> to vector<2x32xf32>
      %61 = math.tanh %60 : vector<2x32xf32>
      %62 = vector.extract_strided_slice %59 {offsets = [0, 32], sizes = [2, 32], strides = [1, 1]} : vector<2x96xf32> to vector<2x32xf32>
      %63 = arith.mulf %62, %43 : vector<2x32xf32>
      %64 = vector.extract_strided_slice %59 {offsets = [0, 0], sizes = [2, 32], strides = [1, 1]} : vector<2x96xf32> to vector<2x32xf32>
      %65 = arith.mulf %64, %61 : vector<2x32xf32>
      %66 = arith.addf %63, %65 : vector<2x32xf32>
      %67 = vector.extract_strided_slice %59 {offsets = [0, 64], sizes = [2, 32], strides = [1, 1]} : vector<2x96xf32> to vector<2x32xf32>
      %68 = math.tanh %66 : vector<2x32xf32>
      %69 = arith.mulf %67, %68 : vector<2x32xf32>
      %c0_31 = arith.constant 0 : index
      %c0_32 = arith.constant 0 : index
      %c1 = arith.constant 1 : index
      %c0_33 = arith.constant 0 : index
      %70 = vector.load %arg6[%c0_31, %c0_32, %c1, %c0_33] : memref<1x2x8x32xf32, #tpu.memory_space<vmem>>, vector<1x2x1x32xf32>
      %71 = vector.shape_cast %70 : vector<1x2x1x32xf32> to vector<2x32xf32>
      %72 = vector.shape_cast %69 : vector<2x32xf32> to vector<1x2x1x32xf32>
      tpu.vector_store %arg6[%c0_31, %c0_32, %c1, %c0_33], %72 {strides = array<i32>} : memref<1x2x8x32xf32, #tpu.memory_space<vmem>>, vector<1x2x1x32xf32>,
      %73 = vector.extract_strided_slice %16 {offsets = [0, 2, 0], sizes = [2, 1, 128], strides = [1, 1, 1]} : vector<2x8x128xf32> to vector<2x1x128xf32>
      %74 = vector.shape_cast %73 : vector<2x1x128xf32> to vector<2x128xf32>
      %cst_34 = arith.constant dense<0.000000e+00> : vector<2x128xf32>
      %75 = tpu.matmul %69, %6, %cst_34 {dimension_numbers = #tpu.dot_dimension_numbers<[1], [1], [0], [0], [0, 0, 1, 0], [], []>} : vector<2x32xf32>, vector<128x32xf32>, vector<2x128xf32> -> vector<2x128xf32>
      %76 = arith.addf %74, %75 : vector<2x128xf32>
      %77 = vector.extract_strided_slice %76 {offsets = [0, 0], sizes = [2, 96], strides = [1, 1]} : vector<2x128xf32> to vector<2x96xf32>
      %78 = arith.negf %77 : vector<2x96xf32>
      %79 = math.exp %78 : vector<2x96xf32>
      %cst_35 = arith.constant 1.000000e+00 : f32
      %80 = vector.broadcast %cst_35 : f32 to vector<2x96xf32>
      %81 = arith.addf %80, %79 : vector<2x96xf32>
      %82 = arith.divf %80, %81 : vector<2x96xf32>
      %83 = vector.extract_strided_slice %76 {offsets = [0, 96], sizes = [2, 32], strides = [1, 1]} : vector<2x128xf32> to vector<2x32xf32>
      %84 = math.tanh %83 : vector<2x32xf32>
      %85 = vector.extract_strided_slice %82 {offsets = [0, 32], sizes = [2, 32], strides = [1, 1]} : vector<2x96xf32> to vector<2x32xf32>
      %86 = arith.mulf %85, %66 : vector<2x32xf32>
      %87 = vector.extract_strided_slice %82 {offsets = [0, 0], sizes = [2, 32], strides = [1, 1]} : vector<2x96xf32> to vector<2x32xf32>
      %88 = arith.mulf %87, %84 : vector<2x32xf32>
      %89 = arith.addf %86, %88 : vector<2x32xf32>
      %90 = vector.extract_strided_slice %82 {offsets = [0, 64], sizes = [2, 32], strides = [1, 1]} : vector<2x96xf32> to vector<2x32xf32>
      %91 = math.tanh %89 : vector<2x32xf32>
      %92 = arith.mulf %90, %91 : vector<2x32xf32>
      %c0_36 = arith.constant 0 : index
      %c0_37 = arith.constant 0 : index
      %c2 = arith.constant 2 : index
      %c0_38 = arith.constant 0 : index
      %93 = vector.load %arg6[%c0_36, %c0_37, %c2, %c0_38] : memref<1x2x8x32xf32, #tpu.memory_space<vmem>>, vector<1x2x1x32xf32>
      %94 = vector.shape_cast %93 : vector<1x2x1x32xf32> to vector<2x32xf32>
      %95 = vector.shape_cast %92 : vector<2x32xf32> to vector<1x2x1x32xf32>
      tpu.vector_store %arg6[%c0_36, %c0_37, %c2, %c0_38], %95 {strides = array<i32>} : memref<1x2x8x32xf32, #tpu.memory_space<vmem>>, vector<1x2x1x32xf32>,
      %96 = vector.extract_strided_slice %16 {offsets = [0, 3, 0], sizes = [2, 1, 128], strides = [1, 1, 1]} : vector<2x8x128xf32> to vector<2x1x128xf32>
      %97 = vector.shape_cast %96 : vector<2x1x128xf32> to vector<2x128xf32>
      %cst_39 = arith.constant dense<0.000000e+00> : vector<2x128xf32>
      %98 = tpu.matmul %92, %6, %cst_39 {dimension_numbers = #tpu.dot_dimension_numbers<[1], [1], [0], [0], [0, 0, 1, 0], [], []>} : vector<2x32xf32>, vector<128x32xf32>, vector<2x128xf32> -> vector<2x128xf32>
      %99 = arith.addf %97, %98 : vector<2x128xf32>
      %100 = vector.extract_strided_slice %99 {offsets = [0, 0], sizes = [2, 96], strides = [1, 1]} : vector<2x128xf32> to vector<2x96xf32>
      %101 = arith.negf %100 : vector<2x96xf32>
      %102 = math.exp %101 : vector<2x96xf32>
      %cst_40 = arith.constant 1.000000e+00 : f32
      %103 = vector.broadcast %cst_40 : f32 to vector<2x96xf32>
      %104 = arith.addf %103, %102 : vector<2x96xf32>
      %105 = arith.divf %103, %104 : vector<2x96xf32>
      %106 = vector.extract_strided_slice %99 {offsets = [0, 96], sizes = [2, 32], strides = [1, 1]} : vector<2x128xf32> to vector<2x32xf32>
      %107 = math.tanh %106 : vector<2x32xf32>
      %108 = vector.extract_strided_slice %105 {offsets = [0, 32], sizes = [2, 32], strides = [1, 1]} : vector<2x96xf32> to vector<2x32xf32>
      %109 = arith.mulf %108, %89 : vector<2x32xf32>
      %110 = vector.extract_strided_slice %105 {offsets = [0, 0], sizes = [2, 32], strides = [1, 1]} : vector<2x96xf32> to vector<2x32xf32>
      %111 = arith.mulf %110, %107 : vector<2x32xf32>
      %112 = arith.addf %109, %111 : vector<2x32xf32>
      %113 = vector.extract_strided_slice %105 {offsets = [0, 64], sizes = [2, 32], strides = [1, 1]} : vector<2x96xf32> to vector<2x32xf32>
      %114 = math.tanh %112 : vector<2x32xf32>
      %115 = arith.mulf %113, %114 : vector<2x32xf32>
      %c0_41 = arith.constant 0 : index
      %c0_42 = arith.constant 0 : index
      %c3 = arith.constant 3 : index
      %c0_43 = arith.constant 0 : index
      %116 = vector.load %arg6[%c0_41, %c0_42, %c3, %c0_43] : memref<1x2x8x32xf32, #tpu.memory_space<vmem>>, vector<1x2x1x32xf32>
      %117 = vector.shape_cast %116 : vector<1x2x1x32xf32> to vector<2x32xf32>
      %118 = vector.shape_cast %115 : vector<2x32xf32> to vector<1x2x1x32xf32>
      tpu.vector_store %arg6[%c0_41, %c0_42, %c3, %c0_43], %118 {strides = array<i32>} : memref<1x2x8x32xf32, #tpu.memory_space<vmem>>, vector<1x2x1x32xf32>,
      %119 = vector.extract_strided_slice %16 {offsets = [0, 4, 0], sizes = [2, 1, 128], strides = [1, 1, 1]} : vector<2x8x128xf32> to vector<2x1x128xf32>
      %120 = vector.shape_cast %119 : vector<2x1x128xf32> to vector<2x128xf32>
      %cst_44 = arith.constant dense<0.000000e+00> : vector<2x128xf32>
      %121 = tpu.matmul %115, %6, %cst_44 {dimension_numbers = #tpu.dot_dimension_numbers<[1], [1], [0], [0], [0, 0, 1, 0], [], []>} : vector<2x32xf32>, vector<128x32xf32>, vector<2x128xf32> -> vector<2x128xf32>
      %122 = arith.addf %120, %121 : vector<2x128xf32>
      %123 = vector.extract_strided_slice %122 {offsets = [0, 0], sizes = [2, 96], strides = [1, 1]} : vector<2x128xf32> to vector<2x96xf32>
      %124 = arith.negf %123 : vector<2x96xf32>
      %125 = math.exp %124 : vector<2x96xf32>
      %cst_45 = arith.constant 1.000000e+00 : f32
      %126 = vector.broadcast %cst_45 : f32 to vector<2x96xf32>
      %127 = arith.addf %126, %125 : vector<2x96xf32>
      %128 = arith.divf %126, %127 : vector<2x96xf32>
      %129 = vector.extract_strided_slice %122 {offsets = [0, 96], sizes = [2, 32], strides = [1, 1]} : vector<2x128xf32> to vector<2x32xf32>
      %130 = math.tanh %129 : vector<2x32xf32>
      %131 = vector.extract_strided_slice %128 {offsets = [0, 32], sizes = [2, 32], strides = [1, 1]} : vector<2x96xf32> to vector<2x32xf32>
      %132 = arith.mulf %131, %112 : vector<2x32xf32>
      %133 = vector.extract_strided_slice %128 {offsets = [0, 0], sizes = [2, 32], strides = [1, 1]} : vector<2x96xf32> to vector<2x32xf32>
      %134 = arith.mulf %133, %130 : vector<2x32xf32>
      %135 = arith.addf %132, %134 : vector<2x32xf32>
      %136 = vector.extract_strided_slice %128 {offsets = [0, 64], sizes = [2, 32], strides = [1, 1]} : vector<2x96xf32> to vector<2x32xf32>
      %137 = math.tanh %135 : vector<2x32xf32>
      %138 = arith.mulf %136, %137 : vector<2x32xf32>
      %c0_46 = arith.constant 0 : index
      %c0_47 = arith.constant 0 : index
      %c4 = arith.constant 4 : index
      %c0_48 = arith.constant 0 : index
      %139 = vector.load %arg6[%c0_46, %c0_47, %c4, %c0_48] : memref<1x2x8x32xf32, #tpu.memory_space<vmem>>, vector<1x2x1x32xf32>
      %140 = vector.shape_cast %139 : vector<1x2x1x32xf32> to vector<2x32xf32>
      %141 = vector.shape_cast %138 : vector<2x32xf32> to vector<1x2x1x32xf32>
      tpu.vector_store %arg6[%c0_46, %c0_47, %c4, %c0_48], %141 {strides = array<i32>} : memref<1x2x8x32xf32, #tpu.memory_space<vmem>>, vector<1x2x1x32xf32>,
      %142 = vector.extract_strided_slice %16 {offsets = [0, 5, 0], sizes = [2, 1, 128], strides = [1, 1, 1]} : vector<2x8x128xf32> to vector<2x1x128xf32>
      %143 = vector.shape_cast %142 : vector<2x1x128xf32> to vector<2x128xf32>
      %cst_49 = arith.constant dense<0.000000e+00> : vector<2x128xf32>
      %144 = tpu.matmul %138, %6, %cst_49 {dimension_numbers = #tpu.dot_dimension_numbers<[1], [1], [0], [0], [0, 0, 1, 0], [], []>} : vector<2x32xf32>, vector<128x32xf32>, vector<2x128xf32> -> vector<2x128xf32>
      %145 = arith.addf %143, %144 : vector<2x128xf32>
      %146 = vector.extract_strided_slice %145 {offsets = [0, 0], sizes = [2, 96], strides = [1, 1]} : vector<2x128xf32> to vector<2x96xf32>
      %147 = arith.negf %146 : vector<2x96xf32>
      %148 = math.exp %147 : vector<2x96xf32>
      %cst_50 = arith.constant 1.000000e+00 : f32
      %149 = vector.broadcast %cst_50 : f32 to vector<2x96xf32>
      %150 = arith.addf %149, %148 : vector<2x96xf32>
      %151 = arith.divf %149, %150 : vector<2x96xf32>
      %152 = vector.extract_strided_slice %145 {offsets = [0, 96], sizes = [2, 32], strides = [1, 1]} : vector<2x128xf32> to vector<2x32xf32>
      %153 = math.tanh %152 : vector<2x32xf32>
      %154 = vector.extract_strided_slice %151 {offsets = [0, 32], sizes = [2, 32], strides = [1, 1]} : vector<2x96xf32> to vector<2x32xf32>
      %155 = arith.mulf %154, %135 : vector<2x32xf32>
      %156 = vector.extract_strided_slice %151 {offsets = [0, 0], sizes = [2, 32], strides = [1, 1]} : vector<2x96xf32> to vector<2x32xf32>
      %157 = arith.mulf %156, %153 : vector<2x32xf32>
      %158 = arith.addf %155, %157 : vector<2x32xf32>
      %159 = vector.extract_strided_slice %151 {offsets = [0, 64], sizes = [2, 32], strides = [1, 1]} : vector<2x96xf32> to vector<2x32xf32>
      %160 = math.tanh %158 : vector<2x32xf32>
      %161 = arith.mulf %159, %160 : vector<2x32xf32>
      %c0_51 = arith.constant 0 : index
      %c0_52 = arith.constant 0 : index
      %c5 = arith.constant 5 : index
      %c0_53 = arith.constant 0 : index
      %162 = vector.load %arg6[%c0_51, %c0_52, %c5, %c0_53] : memref<1x2x8x32xf32, #tpu.memory_space<vmem>>, vector<1x2x1x32xf32>
      %163 = vector.shape_cast %162 : vector<1x2x1x32xf32> to vector<2x32xf32>
      %164 = vector.shape_cast %161 : vector<2x32xf32> to vector<1x2x1x32xf32>
      tpu.vector_store %arg6[%c0_51, %c0_52, %c5, %c0_53], %164 {strides = array<i32>} : memref<1x2x8x32xf32, #tpu.memory_space<vmem>>, vector<1x2x1x32xf32>,
      %165 = vector.extract_strided_slice %16 {offsets = [0, 6, 0], sizes = [2, 1, 128], strides = [1, 1, 1]} : vector<2x8x128xf32> to vector<2x1x128xf32>
      %166 = vector.shape_cast %165 : vector<2x1x128xf32> to vector<2x128xf32>
      %cst_54 = arith.constant dense<0.000000e+00> : vector<2x128xf32>
      %167 = tpu.matmul %161, %6, %cst_54 {dimension_numbers = #tpu.dot_dimension_numbers<[1], [1], [0], [0], [0, 0, 1, 0], [], []>} : vector<2x32xf32>, vector<128x32xf32>, vector<2x128xf32> -> vector<2x128xf32>
      %168 = arith.addf %166, %167 : vector<2x128xf32>
      %169 = vector.extract_strided_slice %168 {offsets = [0, 0], sizes = [2, 96], strides = [1, 1]} : vector<2x128xf32> to vector<2x96xf32>
      %170 = arith.negf %169 : vector<2x96xf32>
      %171 = math.exp %170 : vector<2x96xf32>
      %cst_55 = arith.constant 1.000000e+00 : f32
      %172 = vector.broadcast %cst_55 : f32 to vector<2x96xf32>
      %173 = arith.addf %172, %171 : vector<2x96xf32>
      %174 = arith.divf %172, %173 : vector<2x96xf32>
      %175 = vector.extract_strided_slice %168 {offsets = [0, 96], sizes = [2, 32], strides = [1, 1]} : vector<2x128xf32> to vector<2x32xf32>
      %176 = math.tanh %175 : vector<2x32xf32>
      %177 = vector.extract_strided_slice %174 {offsets = [0, 32], sizes = [2, 32], strides = [1, 1]} : vector<2x96xf32> to vector<2x32xf32>
      %178 = arith.mulf %177, %158 : vector<2x32xf32>
      %179 = vector.extract_strided_slice %174 {offsets = [0, 0], sizes = [2, 32], strides = [1, 1]} : vector<2x96xf32> to vector<2x32xf32>
      %180 = arith.mulf %179, %176 : vector<2x32xf32>
      %181 = arith.addf %178, %180 : vector<2x32xf32>
      %182 = vector.extract_strided_slice %174 {offsets = [0, 64], sizes = [2, 32], strides = [1, 1]} : vector<2x96xf32> to vector<2x32xf32>
      %183 = math.tanh %181 : vector<2x32xf32>
      %184 = arith.mulf %182, %183 : vector<2x32xf32>
      %c0_56 = arith.constant 0 : index
      %c0_57 = arith.constant 0 : index
      %c6 = arith.constant 6 : index
      %c0_58 = arith.constant 0 : index
      %185 = vector.load %arg6[%c0_56, %c0_57, %c6, %c0_58] : memref<1x2x8x32xf32, #tpu.memory_space<vmem>>, vector<1x2x1x32xf32>
      %186 = vector.shape_cast %185 : vector<1x2x1x32xf32> to vector<2x32xf32>
      %187 = vector.shape_cast %184 : vector<2x32xf32> to vector<1x2x1x32xf32>
      tpu.vector_store %arg6[%c0_56, %c0_57, %c6, %c0_58], %187 {strides = array<i32>} : memref<1x2x8x32xf32, #tpu.memory_space<vmem>>, vector<1x2x1x32xf32>,
      %188 = vector.extract_strided_slice %16 {offsets = [0, 7, 0], sizes = [2, 1, 128], strides = [1, 1, 1]} : vector<2x8x128xf32> to vector<2x1x128xf32>
      %189 = vector.shape_cast %188 : vector<2x1x128xf32> to vector<2x128xf32>
      %cst_59 = arith.constant dense<0.000000e+00> : vector<2x128xf32>
      %190 = tpu.matmul %184, %6, %cst_59 {dimension_numbers = #tpu.dot_dimension_numbers<[1], [1], [0], [0], [0, 0, 1, 0], [], []>} : vector<2x32xf32>, vector<128x32xf32>, vector<2x128xf32> -> vector<2x128xf32>
      %191 = arith.addf %189, %190 : vector<2x128xf32>
      %192 = vector.extract_strided_slice %191 {offsets = [0, 0], sizes = [2, 96], strides = [1, 1]} : vector<2x128xf32> to vector<2x96xf32>
      %193 = arith.negf %192 : vector<2x96xf32>
      %194 = math.exp %193 : vector<2x96xf32>
      %cst_60 = arith.constant 1.000000e+00 : f32
      %195 = vector.broadcast %cst_60 : f32 to vector<2x96xf32>
      %196 = arith.addf %195, %194 : vector<2x96xf32>
      %197 = arith.divf %195, %196 : vector<2x96xf32>
      %198 = vector.extract_strided_slice %191 {offsets = [0, 96], sizes = [2, 32], strides = [1, 1]} : vector<2x128xf32> to vector<2x32xf32>
      %199 = math.tanh %198 : vector<2x32xf32>
      %200 = vector.extract_strided_slice %197 {offsets = [0, 32], sizes = [2, 32], strides = [1, 1]} : vector<2x96xf32> to vector<2x32xf32>
      %201 = arith.mulf %200, %181 : vector<2x32xf32>
      %202 = vector.extract_strided_slice %197 {offsets = [0, 0], sizes = [2, 32], strides = [1, 1]} : vector<2x96xf32> to vector<2x32xf32>
      %203 = arith.mulf %202, %199 : vector<2x32xf32>
      %204 = arith.addf %201, %203 : vector<2x32xf32>
      %205 = vector.extract_strided_slice %197 {offsets = [0, 64], sizes = [2, 32], strides = [1, 1]} : vector<2x96xf32> to vector<2x32xf32>
      %206 = math.tanh %204 : vector<2x32xf32>
      %207 = arith.mulf %205, %206 : vector<2x32xf32>
      %c0_61 = arith.constant 0 : index
      %c0_62 = arith.constant 0 : index
      %c7 = arith.constant 7 : index
      %c0_63 = arith.constant 0 : index
      %208 = vector.load %arg6[%c0_61, %c0_62, %c7, %c0_63] : memref<1x2x8x32xf32, #tpu.memory_space<vmem>>, vector<1x2x1x32xf32>
      %209 = vector.shape_cast %208 : vector<1x2x1x32xf32> to vector<2x32xf32>
      %210 = vector.shape_cast %207 : vector<2x32xf32> to vector<1x2x1x32xf32>
      tpu.vector_store %arg6[%c0_61, %c0_62, %c7, %c0_63], %210 {strides = array<i32>} : memref<1x2x8x32xf32, #tpu.memory_space<vmem>>, vector<1x2x1x32xf32>,
      %c0_64 = arith.constant 0 : index
      %c0_65 = arith.constant 0 : index
      %c0_66 = arith.constant 0 : index
      %211 = vector.load %arg7[%c0_64, %c0_65, %c0_66] : memref<1x2x32xf32, #tpu.memory_space<vmem>>, vector<1x2x32xf32>
      %212 = vector.shape_cast %211 : vector<1x2x32xf32> to vector<2x32xf32>
      %213 = vector.shape_cast %207 : vector<2x32xf32> to vector<1x2x32xf32>
      tpu.vector_store %arg7[%c0_64, %c0_65, %c0_66], %213 {strides = array<i32>} : memref<1x2x32xf32, #tpu.memory_space<vmem>>, vector<1x2x32xf32>,
      %c0_67 = arith.constant 0 : index
      %c0_68 = arith.constant 0 : index
      %c0_69 = arith.constant 0 : index
      %214 = vector.load %arg8[%c0_67, %c0_68, %c0_69] : memref<1x2x32xf32, #tpu.memory_space<vmem>>, vector<1x2x32xf32>
      %215 = vector.shape_cast %214 : vector<1x2x32xf32> to vector<2x32xf32>
      %216 = vector.shape_cast %204 : vector<2x32xf32> to vector<1x2x32xf32>
      tpu.vector_store %arg8[%c0_67, %c0_68, %c0_69], %216 {strides = array<i32>} : memref<1x2x32xf32, #tpu.memory_space<vmem>>, vector<1x2x32xf32>,
    } else {
    }
    %c1_i32 = arith.constant 1 : i32
    %20 = arith.cmpi eq, %arg0, %c1_i32 : i32
    %21 = arith.extui %20 : i1 to i32
    %c0_i32_16 = arith.constant 0 : i32
    %22 = arith.cmpi ne, %21, %c0_i32_16 : i32
    scf.if %22 {
      %c0_17 = arith.constant 0 : index
      %c0_18 = arith.constant 0 : index
      %c0_19 = arith.constant 0 : index
      %23 = vector.load %arg7[%c0_17, %c0_18, %c0_19] : memref<1x2x32xf32, #tpu.memory_space<vmem>>, vector<1x2x32xf32>
      %24 = vector.shape_cast %23 : vector<1x2x32xf32> to vector<2x32xf32>
      %c0_20 = arith.constant 0 : index
      %c0_21 = arith.constant 0 : index
      %c0_22 = arith.constant 0 : index
      %25 = vector.load %arg8[%c0_20, %c0_21, %c0_22] : memref<1x2x32xf32, #tpu.memory_space<vmem>>, vector<1x2x32xf32>
      %26 = vector.shape_cast %25 : vector<1x2x32xf32> to vector<2x32xf32>
      %27 = vector.extract_strided_slice %16 {offsets = [0, 7, 0], sizes = [2, 1, 128], strides = [1, 1, 1]} : vector<2x8x128xf32> to vector<2x1x128xf32>
      %28 = vector.shape_cast %27 : vector<2x1x128xf32> to vector<2x128xf32>
      %cst_23 = arith.constant dense<0.000000e+00> : vector<2x128xf32>
      %29 = tpu.matmul %24, %6, %cst_23 {dimension_numbers = #tpu.dot_dimension_numbers<[1], [1], [0], [0], [0, 0, 1, 0], [], []>} : vector<2x32xf32>, vector<128x32xf32>, vector<2x128xf32> -> vector<2x128xf32>
      %30 = arith.addf %28, %29 : vector<2x128xf32>
      %31 = vector.extract_strided_slice %30 {offsets = [0, 0], sizes = [2, 96], strides = [1, 1]} : vector<2x128xf32> to vector<2x96xf32>
      %32 = arith.negf %31 : vector<2x96xf32>
      %33 = math.exp %32 : vector<2x96xf32>
      %cst_24 = arith.constant 1.000000e+00 : f32
      %34 = vector.broadcast %cst_24 : f32 to vector<2x96xf32>
      %35 = arith.addf %34, %33 : vector<2x96xf32>
      %36 = arith.divf %34, %35 : vector<2x96xf32>
      %37 = vector.extract_strided_slice %30 {offsets = [0, 96], sizes = [2, 32], strides = [1, 1]} : vector<2x128xf32> to vector<2x32xf32>
      %38 = math.tanh %37 : vector<2x32xf32>
      %39 = vector.extract_strided_slice %36 {offsets = [0, 32], sizes = [2, 32], strides = [1, 1]} : vector<2x96xf32> to vector<2x32xf32>
      %40 = arith.mulf %39, %26 : vector<2x32xf32>
      %41 = vector.extract_strided_slice %36 {offsets = [0, 0], sizes = [2, 32], strides = [1, 1]} : vector<2x96xf32> to vector<2x32xf32>
      %42 = arith.mulf %41, %38 : vector<2x32xf32>
      %43 = arith.addf %40, %42 : vector<2x32xf32>
      %44 = vector.extract_strided_slice %36 {offsets = [0, 64], sizes = [2, 32], strides = [1, 1]} : vector<2x96xf32> to vector<2x32xf32>
      %45 = math.tanh %43 : vector<2x32xf32>
      %46 = arith.mulf %44, %45 : vector<2x32xf32>
      %c0_25 = arith.constant 0 : index
      %c0_26 = arith.constant 0 : index
      %c7 = arith.constant 7 : index
      %c0_27 = arith.constant 0 : index
      %47 = vector.load %arg6[%c0_25, %c0_26, %c7, %c0_27] : memref<1x2x8x32xf32, #tpu.memory_space<vmem>>, vector<1x2x1x32xf32>
      %48 = vector.shape_cast %47 : vector<1x2x1x32xf32> to vector<2x32xf32>
      %49 = vector.shape_cast %46 : vector<2x32xf32> to vector<1x2x1x32xf32>
      tpu.vector_store %arg6[%c0_25, %c0_26, %c7, %c0_27], %49 {strides = array<i32>} : memref<1x2x8x32xf32, #tpu.memory_space<vmem>>, vector<1x2x1x32xf32>,
      %50 = vector.extract_strided_slice %16 {offsets = [0, 6, 0], sizes = [2, 1, 128], strides = [1, 1, 1]} : vector<2x8x128xf32> to vector<2x1x128xf32>
      %51 = vector.shape_cast %50 : vector<2x1x128xf32> to vector<2x128xf32>
      %cst_28 = arith.constant dense<0.000000e+00> : vector<2x128xf32>
      %52 = tpu.matmul %46, %6, %cst_28 {dimension_numbers = #tpu.dot_dimension_numbers<[1], [1], [0], [0], [0, 0, 1, 0], [], []>} : vector<2x32xf32>, vector<128x32xf32>, vector<2x128xf32> -> vector<2x128xf32>
      %53 = arith.addf %51, %52 : vector<2x128xf32>
      %54 = vector.extract_strided_slice %53 {offsets = [0, 0], sizes = [2, 96], strides = [1, 1]} : vector<2x128xf32> to vector<2x96xf32>
      %55 = arith.negf %54 : vector<2x96xf32>
      %56 = math.exp %55 : vector<2x96xf32>
      %cst_29 = arith.constant 1.000000e+00 : f32
      %57 = vector.broadcast %cst_29 : f32 to vector<2x96xf32>
      %58 = arith.addf %57, %56 : vector<2x96xf32>
      %59 = arith.divf %57, %58 : vector<2x96xf32>
      %60 = vector.extract_strided_slice %53 {offsets = [0, 96], sizes = [2, 32], strides = [1, 1]} : vector<2x128xf32> to vector<2x32xf32>
      %61 = math.tanh %60 : vector<2x32xf32>
      %62 = vector.extract_strided_slice %59 {offsets = [0, 32], sizes = [2, 32], strides = [1, 1]} : vector<2x96xf32> to vector<2x32xf32>
      %63 = arith.mulf %62, %43 : vector<2x32xf32>
      %64 = vector.extract_strided_slice %59 {offsets = [0, 0], sizes = [2, 32], strides = [1, 1]} : vector<2x96xf32> to vector<2x32xf32>
      %65 = arith.mulf %64, %61 : vector<2x32xf32>
      %66 = arith.addf %63, %65 : vector<2x32xf32>
      %67 = vector.extract_strided_slice %59 {offsets = [0, 64], sizes = [2, 32], strides = [1, 1]} : vector<2x96xf32> to vector<2x32xf32>
      %68 = math.tanh %66 : vector<2x32xf32>
      %69 = arith.mulf %67, %68 : vector<2x32xf32>
      %c0_30 = arith.constant 0 : index
      %c0_31 = arith.constant 0 : index
      %c6 = arith.constant 6 : index
      %c0_32 = arith.constant 0 : index
      %70 = vector.load %arg6[%c0_30, %c0_31, %c6, %c0_32] : memref<1x2x8x32xf32, #tpu.memory_space<vmem>>, vector<1x2x1x32xf32>
      %71 = vector.shape_cast %70 : vector<1x2x1x32xf32> to vector<2x32xf32>
      %72 = vector.shape_cast %69 : vector<2x32xf32> to vector<1x2x1x32xf32>
      tpu.vector_store %arg6[%c0_30, %c0_31, %c6, %c0_32], %72 {strides = array<i32>} : memref<1x2x8x32xf32, #tpu.memory_space<vmem>>, vector<1x2x1x32xf32>,
      %73 = vector.extract_strided_slice %16 {offsets = [0, 5, 0], sizes = [2, 1, 128], strides = [1, 1, 1]} : vector<2x8x128xf32> to vector<2x1x128xf32>
      %74 = vector.shape_cast %73 : vector<2x1x128xf32> to vector<2x128xf32>
      %cst_33 = arith.constant dense<0.000000e+00> : vector<2x128xf32>
      %75 = tpu.matmul %69, %6, %cst_33 {dimension_numbers = #tpu.dot_dimension_numbers<[1], [1], [0], [0], [0, 0, 1, 0], [], []>} : vector<2x32xf32>, vector<128x32xf32>, vector<2x128xf32> -> vector<2x128xf32>
      %76 = arith.addf %74, %75 : vector<2x128xf32>
      %77 = vector.extract_strided_slice %76 {offsets = [0, 0], sizes = [2, 96], strides = [1, 1]} : vector<2x128xf32> to vector<2x96xf32>
      %78 = arith.negf %77 : vector<2x96xf32>
      %79 = math.exp %78 : vector<2x96xf32>
      %cst_34 = arith.constant 1.000000e+00 : f32
      %80 = vector.broadcast %cst_34 : f32 to vector<2x96xf32>
      %81 = arith.addf %80, %79 : vector<2x96xf32>
      %82 = arith.divf %80, %81 : vector<2x96xf32>
      %83 = vector.extract_strided_slice %76 {offsets = [0, 96], sizes = [2, 32], strides = [1, 1]} : vector<2x128xf32> to vector<2x32xf32>
      %84 = math.tanh %83 : vector<2x32xf32>
      %85 = vector.extract_strided_slice %82 {offsets = [0, 32], sizes = [2, 32], strides = [1, 1]} : vector<2x96xf32> to vector<2x32xf32>
      %86 = arith.mulf %85, %66 : vector<2x32xf32>
      %87 = vector.extract_strided_slice %82 {offsets = [0, 0], sizes = [2, 32], strides = [1, 1]} : vector<2x96xf32> to vector<2x32xf32>
      %88 = arith.mulf %87, %84 : vector<2x32xf32>
      %89 = arith.addf %86, %88 : vector<2x32xf32>
      %90 = vector.extract_strided_slice %82 {offsets = [0, 64], sizes = [2, 32], strides = [1, 1]} : vector<2x96xf32> to vector<2x32xf32>
      %91 = math.tanh %89 : vector<2x32xf32>
      %92 = arith.mulf %90, %91 : vector<2x32xf32>
      %c0_35 = arith.constant 0 : index
      %c0_36 = arith.constant 0 : index
      %c5 = arith.constant 5 : index
      %c0_37 = arith.constant 0 : index
      %93 = vector.load %arg6[%c0_35, %c0_36, %c5, %c0_37] : memref<1x2x8x32xf32, #tpu.memory_space<vmem>>, vector<1x2x1x32xf32>
      %94 = vector.shape_cast %93 : vector<1x2x1x32xf32> to vector<2x32xf32>
      %95 = vector.shape_cast %92 : vector<2x32xf32> to vector<1x2x1x32xf32>
      tpu.vector_store %arg6[%c0_35, %c0_36, %c5, %c0_37], %95 {strides = array<i32>} : memref<1x2x8x32xf32, #tpu.memory_space<vmem>>, vector<1x2x1x32xf32>,
      %96 = vector.extract_strided_slice %16 {offsets = [0, 4, 0], sizes = [2, 1, 128], strides = [1, 1, 1]} : vector<2x8x128xf32> to vector<2x1x128xf32>
      %97 = vector.shape_cast %96 : vector<2x1x128xf32> to vector<2x128xf32>
      %cst_38 = arith.constant dense<0.000000e+00> : vector<2x128xf32>
      %98 = tpu.matmul %92, %6, %cst_38 {dimension_numbers = #tpu.dot_dimension_numbers<[1], [1], [0], [0], [0, 0, 1, 0], [], []>} : vector<2x32xf32>, vector<128x32xf32>, vector<2x128xf32> -> vector<2x128xf32>
      %99 = arith.addf %97, %98 : vector<2x128xf32>
      %100 = vector.extract_strided_slice %99 {offsets = [0, 0], sizes = [2, 96], strides = [1, 1]} : vector<2x128xf32> to vector<2x96xf32>
      %101 = arith.negf %100 : vector<2x96xf32>
      %102 = math.exp %101 : vector<2x96xf32>
      %cst_39 = arith.constant 1.000000e+00 : f32
      %103 = vector.broadcast %cst_39 : f32 to vector<2x96xf32>
      %104 = arith.addf %103, %102 : vector<2x96xf32>
      %105 = arith.divf %103, %104 : vector<2x96xf32>
      %106 = vector.extract_strided_slice %99 {offsets = [0, 96], sizes = [2, 32], strides = [1, 1]} : vector<2x128xf32> to vector<2x32xf32>
      %107 = math.tanh %106 : vector<2x32xf32>
      %108 = vector.extract_strided_slice %105 {offsets = [0, 32], sizes = [2, 32], strides = [1, 1]} : vector<2x96xf32> to vector<2x32xf32>
      %109 = arith.mulf %108, %89 : vector<2x32xf32>
      %110 = vector.extract_strided_slice %105 {offsets = [0, 0], sizes = [2, 32], strides = [1, 1]} : vector<2x96xf32> to vector<2x32xf32>
      %111 = arith.mulf %110, %107 : vector<2x32xf32>
      %112 = arith.addf %109, %111 : vector<2x32xf32>
      %113 = vector.extract_strided_slice %105 {offsets = [0, 64], sizes = [2, 32], strides = [1, 1]} : vector<2x96xf32> to vector<2x32xf32>
      %114 = math.tanh %112 : vector<2x32xf32>
      %115 = arith.mulf %113, %114 : vector<2x32xf32>
      %c0_40 = arith.constant 0 : index
      %c0_41 = arith.constant 0 : index
      %c4 = arith.constant 4 : index
      %c0_42 = arith.constant 0 : index
      %116 = vector.load %arg6[%c0_40, %c0_41, %c4, %c0_42] : memref<1x2x8x32xf32, #tpu.memory_space<vmem>>, vector<1x2x1x32xf32>
      %117 = vector.shape_cast %116 : vector<1x2x1x32xf32> to vector<2x32xf32>
      %118 = vector.shape_cast %115 : vector<2x32xf32> to vector<1x2x1x32xf32>
      tpu.vector_store %arg6[%c0_40, %c0_41, %c4, %c0_42], %118 {strides = array<i32>} : memref<1x2x8x32xf32, #tpu.memory_space<vmem>>, vector<1x2x1x32xf32>,
      %119 = vector.extract_strided_slice %16 {offsets = [0, 3, 0], sizes = [2, 1, 128], strides = [1, 1, 1]} : vector<2x8x128xf32> to vector<2x1x128xf32>
      %120 = vector.shape_cast %119 : vector<2x1x128xf32> to vector<2x128xf32>
      %cst_43 = arith.constant dense<0.000000e+00> : vector<2x128xf32>
      %121 = tpu.matmul %115, %6, %cst_43 {dimension_numbers = #tpu.dot_dimension_numbers<[1], [1], [0], [0], [0, 0, 1, 0], [], []>} : vector<2x32xf32>, vector<128x32xf32>, vector<2x128xf32> -> vector<2x128xf32>
      %122 = arith.addf %120, %121 : vector<2x128xf32>
      %123 = vector.extract_strided_slice %122 {offsets = [0, 0], sizes = [2, 96], strides = [1, 1]} : vector<2x128xf32> to vector<2x96xf32>
      %124 = arith.negf %123 : vector<2x96xf32>
      %125 = math.exp %124 : vector<2x96xf32>
      %cst_44 = arith.constant 1.000000e+00 : f32
      %126 = vector.broadcast %cst_44 : f32 to vector<2x96xf32>
      %127 = arith.addf %126, %125 : vector<2x96xf32>
      %128 = arith.divf %126, %127 : vector<2x96xf32>
      %129 = vector.extract_strided_slice %122 {offsets = [0, 96], sizes = [2, 32], strides = [1, 1]} : vector<2x128xf32> to vector<2x32xf32>
      %130 = math.tanh %129 : vector<2x32xf32>
      %131 = vector.extract_strided_slice %128 {offsets = [0, 32], sizes = [2, 32], strides = [1, 1]} : vector<2x96xf32> to vector<2x32xf32>
      %132 = arith.mulf %131, %112 : vector<2x32xf32>
      %133 = vector.extract_strided_slice %128 {offsets = [0, 0], sizes = [2, 32], strides = [1, 1]} : vector<2x96xf32> to vector<2x32xf32>
      %134 = arith.mulf %133, %130 : vector<2x32xf32>
      %135 = arith.addf %132, %134 : vector<2x32xf32>
      %136 = vector.extract_strided_slice %128 {offsets = [0, 64], sizes = [2, 32], strides = [1, 1]} : vector<2x96xf32> to vector<2x32xf32>
      %137 = math.tanh %135 : vector<2x32xf32>
      %138 = arith.mulf %136, %137 : vector<2x32xf32>
      %c0_45 = arith.constant 0 : index
      %c0_46 = arith.constant 0 : index
      %c3 = arith.constant 3 : index
      %c0_47 = arith.constant 0 : index
      %139 = vector.load %arg6[%c0_45, %c0_46, %c3, %c0_47] : memref<1x2x8x32xf32, #tpu.memory_space<vmem>>, vector<1x2x1x32xf32>
      %140 = vector.shape_cast %139 : vector<1x2x1x32xf32> to vector<2x32xf32>
      %141 = vector.shape_cast %138 : vector<2x32xf32> to vector<1x2x1x32xf32>
      tpu.vector_store %arg6[%c0_45, %c0_46, %c3, %c0_47], %141 {strides = array<i32>} : memref<1x2x8x32xf32, #tpu.memory_space<vmem>>, vector<1x2x1x32xf32>,
      %142 = vector.extract_strided_slice %16 {offsets = [0, 2, 0], sizes = [2, 1, 128], strides = [1, 1, 1]} : vector<2x8x128xf32> to vector<2x1x128xf32>
      %143 = vector.shape_cast %142 : vector<2x1x128xf32> to vector<2x128xf32>
      %cst_48 = arith.constant dense<0.000000e+00> : vector<2x128xf32>
      %144 = tpu.matmul %138, %6, %cst_48 {dimension_numbers = #tpu.dot_dimension_numbers<[1], [1], [0], [0], [0, 0, 1, 0], [], []>} : vector<2x32xf32>, vector<128x32xf32>, vector<2x128xf32> -> vector<2x128xf32>
      %145 = arith.addf %143, %144 : vector<2x128xf32>
      %146 = vector.extract_strided_slice %145 {offsets = [0, 0], sizes = [2, 96], strides = [1, 1]} : vector<2x128xf32> to vector<2x96xf32>
      %147 = arith.negf %146 : vector<2x96xf32>
      %148 = math.exp %147 : vector<2x96xf32>
      %cst_49 = arith.constant 1.000000e+00 : f32
      %149 = vector.broadcast %cst_49 : f32 to vector<2x96xf32>
      %150 = arith.addf %149, %148 : vector<2x96xf32>
      %151 = arith.divf %149, %150 : vector<2x96xf32>
      %152 = vector.extract_strided_slice %145 {offsets = [0, 96], sizes = [2, 32], strides = [1, 1]} : vector<2x128xf32> to vector<2x32xf32>
      %153 = math.tanh %152 : vector<2x32xf32>
      %154 = vector.extract_strided_slice %151 {offsets = [0, 32], sizes = [2, 32], strides = [1, 1]} : vector<2x96xf32> to vector<2x32xf32>
      %155 = arith.mulf %154, %135 : vector<2x32xf32>
      %156 = vector.extract_strided_slice %151 {offsets = [0, 0], sizes = [2, 32], strides = [1, 1]} : vector<2x96xf32> to vector<2x32xf32>
      %157 = arith.mulf %156, %153 : vector<2x32xf32>
      %158 = arith.addf %155, %157 : vector<2x32xf32>
      %159 = vector.extract_strided_slice %151 {offsets = [0, 64], sizes = [2, 32], strides = [1, 1]} : vector<2x96xf32> to vector<2x32xf32>
      %160 = math.tanh %158 : vector<2x32xf32>
      %161 = arith.mulf %159, %160 : vector<2x32xf32>
      %c0_50 = arith.constant 0 : index
      %c0_51 = arith.constant 0 : index
      %c2 = arith.constant 2 : index
      %c0_52 = arith.constant 0 : index
      %162 = vector.load %arg6[%c0_50, %c0_51, %c2, %c0_52] : memref<1x2x8x32xf32, #tpu.memory_space<vmem>>, vector<1x2x1x32xf32>
      %163 = vector.shape_cast %162 : vector<1x2x1x32xf32> to vector<2x32xf32>
      %164 = vector.shape_cast %161 : vector<2x32xf32> to vector<1x2x1x32xf32>
      tpu.vector_store %arg6[%c0_50, %c0_51, %c2, %c0_52], %164 {strides = array<i32>} : memref<1x2x8x32xf32, #tpu.memory_space<vmem>>, vector<1x2x1x32xf32>,
      %165 = vector.extract_strided_slice %16 {offsets = [0, 1, 0], sizes = [2, 1, 128], strides = [1, 1, 1]} : vector<2x8x128xf32> to vector<2x1x128xf32>
      %166 = vector.shape_cast %165 : vector<2x1x128xf32> to vector<2x128xf32>
      %cst_53 = arith.constant dense<0.000000e+00> : vector<2x128xf32>
      %167 = tpu.matmul %161, %6, %cst_53 {dimension_numbers = #tpu.dot_dimension_numbers<[1], [1], [0], [0], [0, 0, 1, 0], [], []>} : vector<2x32xf32>, vector<128x32xf32>, vector<2x128xf32> -> vector<2x128xf32>
      %168 = arith.addf %166, %167 : vector<2x128xf32>
      %169 = vector.extract_strided_slice %168 {offsets = [0, 0], sizes = [2, 96], strides = [1, 1]} : vector<2x128xf32> to vector<2x96xf32>
      %170 = arith.negf %169 : vector<2x96xf32>
      %171 = math.exp %170 : vector<2x96xf32>
      %cst_54 = arith.constant 1.000000e+00 : f32
      %172 = vector.broadcast %cst_54 : f32 to vector<2x96xf32>
      %173 = arith.addf %172, %171 : vector<2x96xf32>
      %174 = arith.divf %172, %173 : vector<2x96xf32>
      %175 = vector.extract_strided_slice %168 {offsets = [0, 96], sizes = [2, 32], strides = [1, 1]} : vector<2x128xf32> to vector<2x32xf32>
      %176 = math.tanh %175 : vector<2x32xf32>
      %177 = vector.extract_strided_slice %174 {offsets = [0, 32], sizes = [2, 32], strides = [1, 1]} : vector<2x96xf32> to vector<2x32xf32>
      %178 = arith.mulf %177, %158 : vector<2x32xf32>
      %179 = vector.extract_strided_slice %174 {offsets = [0, 0], sizes = [2, 32], strides = [1, 1]} : vector<2x96xf32> to vector<2x32xf32>
      %180 = arith.mulf %179, %176 : vector<2x32xf32>
      %181 = arith.addf %178, %180 : vector<2x32xf32>
      %182 = vector.extract_strided_slice %174 {offsets = [0, 64], sizes = [2, 32], strides = [1, 1]} : vector<2x96xf32> to vector<2x32xf32>
      %183 = math.tanh %181 : vector<2x32xf32>
      %184 = arith.mulf %182, %183 : vector<2x32xf32>
      %c0_55 = arith.constant 0 : index
      %c0_56 = arith.constant 0 : index
      %c1 = arith.constant 1 : index
      %c0_57 = arith.constant 0 : index
      %185 = vector.load %arg6[%c0_55, %c0_56, %c1, %c0_57] : memref<1x2x8x32xf32, #tpu.memory_space<vmem>>, vector<1x2x1x32xf32>
      %186 = vector.shape_cast %185 : vector<1x2x1x32xf32> to vector<2x32xf32>
      %187 = vector.shape_cast %184 : vector<2x32xf32> to vector<1x2x1x32xf32>
      tpu.vector_store %arg6[%c0_55, %c0_56, %c1, %c0_57], %187 {strides = array<i32>} : memref<1x2x8x32xf32, #tpu.memory_space<vmem>>, vector<1x2x1x32xf32>,
      %188 = vector.extract_strided_slice %16 {offsets = [0, 0, 0], sizes = [2, 1, 128], strides = [1, 1, 1]} : vector<2x8x128xf32> to vector<2x1x128xf32>
      %189 = vector.shape_cast %188 : vector<2x1x128xf32> to vector<2x128xf32>
      %cst_58 = arith.constant dense<0.000000e+00> : vector<2x128xf32>
      %190 = tpu.matmul %184, %6, %cst_58 {dimension_numbers = #tpu.dot_dimension_numbers<[1], [1], [0], [0], [0, 0, 1, 0], [], []>} : vector<2x32xf32>, vector<128x32xf32>, vector<2x128xf32> -> vector<2x128xf32>
      %191 = arith.addf %189, %190 : vector<2x128xf32>
      %192 = vector.extract_strided_slice %191 {offsets = [0, 0], sizes = [2, 96], strides = [1, 1]} : vector<2x128xf32> to vector<2x96xf32>
      %193 = arith.negf %192 : vector<2x96xf32>
      %194 = math.exp %193 : vector<2x96xf32>
      %cst_59 = arith.constant 1.000000e+00 : f32
      %195 = vector.broadcast %cst_59 : f32 to vector<2x96xf32>
      %196 = arith.addf %195, %194 : vector<2x96xf32>
      %197 = arith.divf %195, %196 : vector<2x96xf32>
      %198 = vector.extract_strided_slice %191 {offsets = [0, 96], sizes = [2, 32], strides = [1, 1]} : vector<2x128xf32> to vector<2x32xf32>
      %199 = math.tanh %198 : vector<2x32xf32>
      %200 = vector.extract_strided_slice %197 {offsets = [0, 32], sizes = [2, 32], strides = [1, 1]} : vector<2x96xf32> to vector<2x32xf32>
      %201 = arith.mulf %200, %181 : vector<2x32xf32>
      %202 = vector.extract_strided_slice %197 {offsets = [0, 0], sizes = [2, 32], strides = [1, 1]} : vector<2x96xf32> to vector<2x32xf32>
      %203 = arith.mulf %202, %199 : vector<2x32xf32>
      %204 = arith.addf %201, %203 : vector<2x32xf32>
      %205 = vector.extract_strided_slice %197 {offsets = [0, 64], sizes = [2, 32], strides = [1, 1]} : vector<2x96xf32> to vector<2x32xf32>
      %206 = math.tanh %204 : vector<2x32xf32>
      %207 = arith.mulf %205, %206 : vector<2x32xf32>
      %c0_60 = arith.constant 0 : index
      %c0_61 = arith.constant 0 : index
      %c0_62 = arith.constant 0 : index
      %c0_63 = arith.constant 0 : index
      %208 = vector.load %arg6[%c0_60, %c0_61, %c0_62, %c0_63] : memref<1x2x8x32xf32, #tpu.memory_space<vmem>>, vector<1x2x1x32xf32>
      %209 = vector.shape_cast %208 : vector<1x2x1x32xf32> to vector<2x32xf32>
      %210 = vector.shape_cast %207 : vector<2x32xf32> to vector<1x2x1x32xf32>
      tpu.vector_store %arg6[%c0_60, %c0_61, %c0_62, %c0_63], %210 {strides = array<i32>} : memref<1x2x8x32xf32, #tpu.memory_space<vmem>>, vector<1x2x1x32xf32>,
      %c0_64 = arith.constant 0 : index
      %c0_65 = arith.constant 0 : index
      %c0_66 = arith.constant 0 : index
      %211 = vector.load %arg7[%c0_64, %c0_65, %c0_66] : memref<1x2x32xf32, #tpu.memory_space<vmem>>, vector<1x2x32xf32>
      %212 = vector.shape_cast %211 : vector<1x2x32xf32> to vector<2x32xf32>
      %213 = vector.shape_cast %207 : vector<2x32xf32> to vector<1x2x32xf32>
      tpu.vector_store %arg7[%c0_64, %c0_65, %c0_66], %213 {strides = array<i32>} : memref<1x2x32xf32, #tpu.memory_space<vmem>>, vector<1x2x32xf32>,
      %c0_67 = arith.constant 0 : index
      %c0_68 = arith.constant 0 : index
      %c0_69 = arith.constant 0 : index
      %214 = vector.load %arg8[%c0_67, %c0_68, %c0_69] : memref<1x2x32xf32, #tpu.memory_space<vmem>>, vector<1x2x32xf32>
      %215 = vector.shape_cast %214 : vector<1x2x32xf32> to vector<2x32xf32>
      %216 = vector.shape_cast %204 : vector<2x32xf32> to vector<1x2x32xf32>
      tpu.vector_store %arg8[%c0_67, %c0_68, %c0_69], %216 {strides = array<i32>} : memref<1x2x32xf32, #tpu.memory_space<vmem>>, vector<1x2x32xf32>,
    } else {
    }
    return
  }
  func.func @transform_0(%arg0: i32, %arg1: i32) -> (i32, i32, i32, i32) {
    %c2_i32 = arith.constant 2 : i32
    %0 = arith.muli %c2_i32, %arg1 : i32
    %c1_i32 = arith.constant 1 : i32
    %1 = arith.subi %c1_i32, %0 : i32
    %2 = arith.muli %arg0, %1 : i32
    %3 = arith.addi %arg1, %2 : i32
    %c0_i32 = arith.constant 0 : i32
    %c0_i32_0 = arith.constant 0 : i32
    %c0_i32_1 = arith.constant 0 : i32
    %c0_i32_2 = arith.constant 0 : i32
    return %c0_i32, %c0_i32_0, %3, %c0_i32_1 : i32, i32, i32, i32
  }
  func.func @transform_1(%arg0: i32, %arg1: i32) -> (i32, i32, i32, i32) {
    %c0_i32 = arith.constant 0 : i32
    %c0_i32_0 = arith.constant 0 : i32
    %c0_i32_1 = arith.constant 0 : i32
    %c0_i32_2 = arith.constant 0 : i32
    return %arg0, %c0_i32, %c0_i32_0, %c0_i32_1 : i32, i32, i32, i32
  }
  func.func @transform_2(%arg0: i32, %arg1: i32) -> (i32, i32, i32) {
    %c0_i32 = arith.constant 0 : i32
    %c0_i32_0 = arith.constant 0 : i32
    %c0_i32_1 = arith.constant 0 : i32
    return %arg0, %c0_i32, %c0_i32_0 : i32, i32, i32
  }
  func.func @transform_3(%arg0: i32, %arg1: i32) -> (i32, i32, i32) {
    %c0_i32 = arith.constant 0 : i32
    %c0_i32_0 = arith.constant 0 : i32
    %c0_i32_1 = arith.constant 0 : i32
    return %arg0, %c0_i32, %c0_i32_0 : i32, i32, i32
  }
  func.func @transform_4(%arg0: i32, %arg1: i32) -> (i32, i32, i32, i32) {
    %c2_i32 = arith.constant 2 : i32
    %0 = arith.muli %c2_i32, %arg1 : i32
    %c1_i32 = arith.constant 1 : i32
    %1 = arith.subi %c1_i32, %0 : i32
    %2 = arith.muli %arg0, %1 : i32
    %3 = arith.addi %arg1, %2 : i32
    %c0_i32 = arith.constant 0 : i32
    %c0_i32_0 = arith.constant 0 : i32
    %c0_i32_1 = arith.constant 0 : i32
    return %arg0, %c0_i32, %3, %c0_i32_0 : i32, i32, i32, i32
  }
  func.func @transform_5(%arg0: i32, %arg1: i32) -> (i32, i32, i32) {
    %c0_i32 = arith.constant 0 : i32
    %c0_i32_0 = arith.constant 0 : i32
    %c0_i32_1 = arith.constant 0 : i32
    return %arg0, %c0_i32, %c0_i32_0 : i32, i32, i32
  }
  func.func @transform_6(%arg0: i32, %arg1: i32) -> (i32, i32, i32) {
    %c0_i32 = arith.constant 0 : i32
    %c0_i32_0 = arith.constant 0 : i32
    %c0_i32_1 = arith.constant 0 : i32
    return %arg0, %c0_i32, %c0_i32_0 : i32, i32, i32
  }
}

</mosaic_0001>

<llo_original>
// kernel: tpu_custom_call.1
$region0: #{tpu_custom_call.1}
  #allocation0 [shape = 'u32[]', space=smem, size = 0x4, offset = 0x4, fixed_abs, tag = 'smem constant byte address 0x4 - core index']
  #allocation1 [shape = 'u32[144,128]{1,0:T(1,128)}', space=vmem, size = 0x12000, scoped, tag = 'internal scratch']
  %s0 = inlined_call_operand.vmem [shape: f32[1,2,16,16], index: 0, kind: input, shape index: {}]
  %s1 = inlined_call_operand.vmem [shape: f32[2,1,128,16], index: 1, kind: input, shape index: {}]
  %s2 = inlined_call_operand.vmem [shape: f32[2,128,32], index: 2, kind: input, shape index: {}]
  %s3 = inlined_call_operand.vmem [shape: f32[2,1,128], index: 3, kind: input, shape index: {}]
  %s4 = inlined_call_operand.hbm [shape: f32[2,2,16,32], index: 4, kind: output, shape index: {0}]
  %s5 = inlined_call_operand.hbm [shape: f32[2,2,32], index: 5, kind: output, shape index: {1}]
  %s6 = inlined_call_operand.hbm [shape: f32[2,2,32], index: 6, kind: output, shape index: {2}]
  %7 = xla_tuple %s4, %s5, %s6
  %s8 = sld [smem:[#allocation0]]
  $region115: #{tpu_custom_call.1} parent=0
    _
  %s10 = ssub.s32 1, %s8
  %s11 = scalar_select 0, %s10, %s8
  $region1: #{tpu_custom_call.1} parent=0
    #allocation2 [shape = 'u8[16384]{0}', space=vmem, size = 0x4000, scoped, tag = 'input window, operand 0']
    #allocation3 [shape = 'u8[16384]{0}', space=vmem, size = 0x4000, scoped, tag = 'output window, operand 0']
    #allocation4 [shape = 's32[2]{0}', space=sflag, size = 0x8, scoped, tag = 'scoped memory for tpu_custom_call.1']
    #allocation5 [shape = 'u8[2048]{0}', space=vmem, size = 0x800, scoped, tag = 'output window, operand 1']
    #allocation6 [shape = 's32[2]{0}', space=sflag, size = 0x8, scoped, tag = 'scoped memory for tpu_custom_call.1']
    #allocation7 [shape = 'u8[2048]{0}', space=vmem, size = 0x800, scoped, tag = 'output window, operand 2']
    %12 = vsyncpa [#allocation4], 0
    %s13 = scalar_lea.sflag [#allocation4], 1
    %14 = vsyncpa %s13, 0
    %15 = vsyncpa [#allocation6], 0
    %s16 = scalar_lea.sflag [#allocation6], 1
    %17 = vsyncpa %s16, 0
    loop: start=0, step=1, limit=6
    $region2: #{tpu_custom_call.1} parent=1 // loop_pre_header
      _
    $region3: #{tpu_custom_call.1} parent=1 // loop_header
      %s19 = sphi 0, %s23
      %p20 = scmp.ge.s32.totalorder %s19, 6
      %s26 = sphi 0, %s38
      %s27 = sphi 0, %s34
      %s28 = sphi 0, %s26
      %s29 = sphi 0, %s27
      %s30 = sphi 0, %s28
      %s31 = sphi 0, %s29
      %s49 = sphi 0, %s51
      %s52 = sphi 0, %s49
      %s53 = sphi 0, %s52
      %s69 = sphi 0, %s53
      %s75 = sphi 0, %s77
      %s78 = sphi 0, %s75
      %s79 = sphi 0, %s78
      %s95 = sphi 0, %s79
      %s101 = sphi 0, %s103
      %s104 = sphi 0, %s101
      %s105 = sphi 0, %s104
      %s121 = sphi 0, %s105
      %s127 = sphi 0, %s129
      %s130 = sphi 0, %s127
      %s131 = sphi 0, %s130
      %s147 = sphi 0, %s131
      %s163 = sphi 0, %s165
      %s166 = sphi 0, %s163
      %s167 = sphi 0, %s166
      %s183 = sphi 0, %s167
      %s189 = sphi 0, %s191
      %s192 = sphi 0, %s189
      %s193 = sphi 0, %s192
      %s209 = sphi 0, %s193
      %s215 = sphi 0, %s217
      %s218 = sphi 0, %s215
      %s219 = sphi 0, %s218
      %s235 = sphi 0, %s219
    $region4: #{tpu_custom_call.1} parent=1 // loop_header_branch
      %22 = sbr.rel (%p20) target = $region8
    $region5: #{tpu_custom_call.1} parent=1 // loop_body
      %s24 = ssub.s32 %s19, 1
      %s25 = ssub.s32 %s19, 2
      %s32 = sadd.s32 1, %s27
      %p33 = scmp.ge.s32.totalorder %s32, 2
      %s34 = scalar_select %p33, 0, %s32
      %s35 = sadd.s32 1, %s26
      %s36 = scalar_select %p33, %s35, %s26
      %p37 = scmp.ge.s32.totalorder %s36, 2
      %s38 = scalar_select %p37, 0, %s36
      %s39 = smul.u32 %s27, 2
      %s40 = ssub.s32 1, %s39
      %s41 = smul.u32 %s26, %s40
      %s42 = sadd.s32 %s27, %s41
      %s43 = smul.u32 %s34, 2
      %s44 = ssub.s32 1, %s43
      %s45 = smul.u32 %s38, %s44
      %s46 = sadd.s32 %s34, %s45
      %s47 = ssub.s32 %s42, %s46
      %p48 = scmp.eq.s32.totalorder %s47, 0
      %s50 = sadd.s32 %s49, 1
      %s51 = scalar_select %p48, %s49, %s50
      %p54 = pneg %p48
      %p55 = scmp.eq.s32.totalorder %s19, 3
      %p56 = por %p54, %p55
      %p57 = scmp.ne.s32.totalorder %s49, %s52
      %p58 = scmp.eq.s32.totalorder %s19, 0
      %p59 = por %p57, %p58
      %p60 = scmp.ne.s32.totalorder %s49, %s52
      %p61 = scmp.eq.s32.totalorder %s24, 3
      %p62 = por %p60, %p61
      %p63 = scmp.ne.s32.totalorder %s52, %s53
      %p64 = scmp.eq.s32.totalorder %s24, 0
      %p65 = por %p63, %p64
      %p66 = scmp.ne.s32.totalorder %s52, %s53
      %p67 = scmp.eq.s32.totalorder %s25, 3
      %p68 = por %p66, %p67
      %p70 = scmp.ne.s32.totalorder %s53, %s69
      %p71 = scmp.eq.s32.totalorder %s25, 0
      %p72 = por %p70, %p71
      %s73 = ssub.s32 %s26, %s38
      %p74 = scmp.eq.s32.totalorder %s73, 0
      %s76 = sadd.s32 %s75, 1
      %s77 = scalar_select %p74, %s75, %s76
      %p80 = pneg %p74
      %p81 = scmp.eq.s32.totalorder %s19, 3
      %p82 = por %p80, %p81
      %p83 = scmp.ne.s32.totalorder %s75, %s78
      %p84 = scmp.eq.s32.totalorder %s19, 0
      %p85 = por %p83, %p84
      %p86 = scmp.ne.s32.totalorder %s75, %s78
      %p87 = scmp.eq.s32.totalorder %s24, 3
      %p88 = por %p86, %p87
      %p89 = scmp.ne.s32.totalorder %s78, %s79
      %p90 = scmp.eq.s32.totalorder %s24, 0
      %p91 = por %p89, %p90
      %p92 = scmp.ne.s32.totalorder %s78, %s79
      %p93 = scmp.eq.s32.totalorder %s25, 3
      %p94 = por %p92, %p93
      %p96 = scmp.ne.s32.totalorder %s79, %s95
      %p97 = scmp.eq.s32.totalorder %s25, 0
      %p98 = por %p96, %p97
      %s99 = ssub.s32 %s26, %s38
      %p100 = scmp.eq.s32.totalorder %s99, 0
      %s102 = sadd.s32 %s101, 1
      %s103 = scalar_select %p100, %s101, %s102
      %p106 = pneg %p100
      %p107 = scmp.eq.s32.totalorder %s19, 3
      %p108 = por %p106, %p107
      %p109 = scmp.ne.s32.totalorder %s101, %s104
      %p110 = scmp.eq.s32.totalorder %s19, 0
      %p111 = por %p109, %p110
      %p112 = scmp.ne.s32.totalorder %s101, %s104
      %p113 = scmp.eq.s32.totalorder %s24, 3
      %p114 = por %p112, %p113
      %p115 = scmp.ne.s32.totalorder %s104, %s105
      %p116 = scmp.eq.s32.totalorder %s24, 0
      %p117 = por %p115, %p116
      %p118 = scmp.ne.s32.totalorder %s104, %s105
      %p119 = scmp.eq.s32.totalorder %s25, 3
      %p120 = por %p118, %p119
      %p122 = scmp.ne.s32.totalorder %s105, %s121
      %p123 = scmp.eq.s32.totalorder %s25, 0
      %p124 = por %p122, %p123
      %s125 = ssub.s32 %s26, %s38
      %p126 = scmp.eq.s32.totalorder %s125, 0
      %s128 = sadd.s32 %s127, 1
      %s129 = scalar_select %p126, %s127, %s128
      %p132 = pneg %p126
      %p133 = scmp.eq.s32.totalorder %s19, 3
      %p134 = por %p132, %p133
      %p135 = scmp.ne.s32.totalorder %s127, %s130
      %p136 = scmp.eq.s32.totalorder %s19, 0
      %p137 = por %p135, %p136
      %p138 = scmp.ne.s32.totalorder %s127, %s130
      %p139 = scmp.eq.s32.totalorder %s24, 3
      %p140 = por %p138, %p139
      %p141 = scmp.ne.s32.totalorder %s130, %s131
      %p142 = scmp.eq.s32.totalorder %s24, 0
      %p143 = por %p141, %p142
      %p144 = scmp.ne.s32.totalorder %s130, %s131
      %p145 = scmp.eq.s32.totalorder %s25, 3
      %p146 = por %p144, %p145
      %p148 = scmp.ne.s32.totalorder %s131, %s147
      %p149 = scmp.eq.s32.totalorder %s25, 0
      %p150 = por %p148, %p149
      %s151 = smul.u32 %s27, 2
      %s152 = ssub.s32 1, %s151
      %s153 = smul.u32 %s26, %s152
      %s154 = sadd.s32 %s27, %s153
      %s155 = smul.u32 %s34, 2
      %s156 = ssub.s32 1, %s155
      %s157 = smul.u32 %s38, %s156
      %s158 = sadd.s32 %s34, %s157
      %s159 = ssub.s32 %s26, %s38
      %s160 = ssub.s32 %s154, %s158
      %s161 = sor.u32 %s159, %s160
      %p162 = scmp.eq.s32.totalorder %s161, 0
      %s164 = sadd.s32 %s163, 1
      %s165 = scalar_select %p162, %s163, %s164
      %p168 = pneg %p162
      %p169 = scmp.eq.s32.totalorder %s19, 3
      %p170 = por %p168, %p169
      %p171 = scmp.ne.s32.totalorder %s163, %s166
      %p172 = scmp.eq.s32.totalorder %s19, 0
      %p173 = por %p171, %p172
      %p174 = scmp.ne.s32.totalorder %s163, %s166
      %p175 = scmp.eq.s32.totalorder %s24, 3
      %p176 = por %p174, %p175
      %p177 = scmp.ne.s32.totalorder %s166, %s167
      %p178 = scmp.eq.s32.totalorder %s24, 0
      %p179 = por %p177, %p178
      %p180 = scmp.ne.s32.totalorder %s166, %s167
      %p181 = scmp.eq.s32.totalorder %s25, 3
      %p182 = por %p180, %p181
      %p184 = scmp.ne.s32.totalorder %s167, %s183
      %p185 = scmp.eq.s32.totalorder %s25, 0
      %p186 = por %p184, %p185
      %s187 = ssub.s32 %s26, %s38
      %p188 = scmp.eq.s32.totalorder %s187, 0
      %s190 = sadd.s32 %s189, 1
      %s191 = scalar_select %p188, %s189, %s190
      %p194 = pneg %p188
      %p195 = scmp.eq.s32.totalorder %s19, 3
      %p196 = por %p194, %p195
      %p197 = scmp.ne.s32.totalorder %s189, %s192
      %p198 = scmp.eq.s32.totalorder %s19, 0
      %p199 = por %p197, %p198
      %p200 = scmp.ne.s32.totalorder %s189, %s192
      %p201 = scmp.eq.s32.totalorder %s24, 3
      %p202 = por %p200, %p201
      %p203 = scmp.ne.s32.totalorder %s192, %s193
      %p204 = scmp.eq.s32.totalorder %s24, 0
      %p205 = por %p203, %p204
      %p206 = scmp.ne.s32.totalorder %s192, %s193
      %p207 = scmp.eq.s32.totalorder %s25, 3
      %p208 = por %p206, %p207
      %p210 = scmp.ne.s32.totalorder %s193, %s209
      %p211 = scmp.eq.s32.totalorder %s25, 0
      %p212 = por %p210, %p211
      %s213 = ssub.s32 %s26, %s38
      %p214 = scmp.eq.s32.totalorder %s213, 0
      %s216 = sadd.s32 %s215, 1
      %s217 = scalar_select %p214, %s215, %s216
      %p220 = pneg %p214
      %p221 = scmp.eq.s32.totalorder %s19, 3
      %p222 = por %p220, %p221
      %p223 = scmp.ne.s32.totalorder %s215, %s218
      %p224 = scmp.eq.s32.totalorder %s19, 0
      %p225 = por %p223, %p224
      %p226 = scmp.ne.s32.totalorder %s215, %s218
      %p227 = scmp.eq.s32.totalorder %s24, 3
      %p228 = por %p226, %p227
      %p229 = scmp.ne.s32.totalorder %s218, %s219
      %p230 = scmp.eq.s32.totalorder %s24, 0
      %p231 = por %p229, %p230
      %p232 = scmp.ne.s32.totalorder %s218, %s219
      %p233 = scmp.eq.s32.totalorder %s25, 3
      %p234 = por %p232, %p233
      %p236 = scmp.ne.s32.totalorder %s219, %s235
      %p237 = scmp.eq.s32.totalorder %s25, 0
      %p238 = por %p236, %p237
      %p239 = scmp.le.s32.totalorder 1, %s19
      %p240 = scmp.lt.s32.totalorder %s19, 5
      %p241 = pnand %p239, %p240
      %p242 = pneg %p241
      // Predicated region
      $region9: #{tpu_custom_call.1} parent=5 // pred_check
        _
      $region10: #{tpu_custom_call.1} parent=5 // pred_check_branch
        %244 = sbr.rel (%p241) target = $region12
      $region11: #{tpu_custom_call.1} parent=5 // pred_region
        %s245 = ssub.s32 %s19, 1
      $region12: #{tpu_custom_call.1} parent=5 // pred_fallthru
        _
      %p246 = scmp.lt.s32.totalorder %s19, 4
      // Predicated region
      $region13: #{tpu_custom_call.1} parent=5 // pred_check
        %p247 = pneg %p246
      $region14: #{tpu_custom_call.1} parent=5 // pred_check_branch
        %249 = sbr.rel (%p247) target = $region16
      $region15: #{tpu_custom_call.1} parent=5 // pred_region
        // Predicated region
        $region17: #{tpu_custom_call.1} parent=15 // pred_check
          %p250 = pneg %p59
        $region18: #{tpu_custom_call.1} parent=15 // pred_check_branch
          %252 = sbr.rel (%p250) target = $region20
        $region19: #{tpu_custom_call.1} parent=15 // pred_region
          %s253 = sand.u32 %s49, 1
          %s254 = sand.u32 %s49, 1
          %s255 = smul.addr %s254, 16
          %s256 = scalar_lea.vmem [#allocation2], %s255
          %s257 = smul.u32 %s27, 2
          %s258 = ssub.s32 1, %s257
          %s259 = smul.u32 %s26, %s258
          %s260 = sadd.s32 %s27, %s259
          %s261 = smul.addr %s260, 8
          %s262 = scalar_lea.vmem %s0, %s261
          // Predicated region
          $region21: #{tpu_custom_call.1} parent=19 // pred_check
            _
          $region22: #{tpu_custom_call.1} parent=19 // pred_check_branch
            %264 = sbr.rel (0) target = $region24
          $region23: #{tpu_custom_call.1} parent=19 // pred_region
            // Predicated region
            $region25: #{tpu_custom_call.1} parent=23 // pred_check
              _
            $region26: #{tpu_custom_call.1} parent=23 // pred_check_branch
              %266 = sbr.rel (0) target = $region28
            $region27: #{tpu_custom_call.1} parent=23 // pred_region
              // Predicated region
              $region40: #{tpu_custom_call.1} parent=27 // pred_check
                _
              $region41: #{tpu_custom_call.1} parent=27 // pred_check_branch
                %283 = sbr.rel (0) target = $region43
              $region42: #{tpu_custom_call.1} parent=27 // pred_region
                loop: start=0, step=1, limit=1
                $region44: #{tpu_custom_call.1} parent=42 // loop_pre_header
                  _
                $region45: #{tpu_custom_call.1} parent=42 // loop_header
                  %s285 = sphi 0, %s289
                  %p286 = scmp.ge.s32.totalorder %s285, 1
                  %s290 = sphi %s262, %s262
                  %s291 = sphi %s256, %s256
                $region46: #{tpu_custom_call.1} parent=42 // loop_header_branch
                  %288 = sbr.rel (%p286) target = $region50
                $region47: #{tpu_custom_call.1} parent=42 // loop_body
                  %v292 = vld [vmem:[%s290] sm:$0xff]
                  %293 = vst [vmem:[%s291] sm:$0xff] %v292
                  %v294 = vld [vmem:[%s290 + $0x10] sm:$0xff]
                  %295 = vst [vmem:[%s291 + $0x8] sm:$0xff] %v294
                $region48: #{tpu_custom_call.1} parent=42 // loop_footer
                  %s289 = sadd.s32 1, %s285
                $region49: #{tpu_custom_call.1} parent=42 // loop_footer_branch
                  %284 = sbr.rel target = $region45
                $region50: #{tpu_custom_call.1} parent=42 // loop_exit
                  _
              $region43: #{tpu_custom_call.1} parent=27 // pred_fallthru
                _
              // Predicated region
              $region51: #{tpu_custom_call.1} parent=27 // pred_check
                _
              $region52: #{tpu_custom_call.1} parent=27 // pred_check_branch
                %297 = sbr.rel target = $region54
              $region53: #{tpu_custom_call.1} parent=27 // pred_region
                _
              $region54: #{tpu_custom_call.1} parent=27 // pred_fallthru
                _
            $region28: #{tpu_custom_call.1} parent=23 // pred_fallthru
              _
            // Predicated region
            $region29: #{tpu_custom_call.1} parent=23 // pred_check
              _
            $region30: #{tpu_custom_call.1} parent=23 // pred_check_branch
              %268 = sbr.rel target = $region32
            $region31: #{tpu_custom_call.1} parent=23 // pred_region
              loop: start=0, step=1, limit=1
              $region33: #{tpu_custom_call.1} parent=31 // loop_pre_header
                _
              $region34: #{tpu_custom_call.1} parent=31 // loop_header
                %s271 = sphi 0, %s275
                %p272 = scmp.ge.s32.totalorder %s271, 1
                %s276 = sphi %s262, %s262
                %s277 = sphi %s256, %s256
              $region35: #{tpu_custom_call.1} parent=31 // loop_header_branch
                %274 = sbr.rel (%p272) target = $region39
              $region36: #{tpu_custom_call.1} parent=31 // loop_body
                %v278 = vld [vmem:[%s276] sm:$0xff]
                %279 = vst [vmem:[%s277] sm:$0xff] %v278
                %v280 = vld [vmem:[%s276 + $0x10] sm:$0xff]
                %281 = vst [vmem:[%s277 + $0x8] sm:$0xff] %v280
              $region37: #{tpu_custom_call.1} parent=31 // loop_footer
                %s275 = sadd.s32 1, %s271
              $region38: #{tpu_custom_call.1} parent=31 // loop_footer_branch
                %270 = sbr.rel target = $region34
              $region39: #{tpu_custom_call.1} parent=31 // loop_exit
                _
            $region32: #{tpu_custom_call.1} parent=23 // pred_fallthru
              _
          $region24: #{tpu_custom_call.1} parent=19 // pred_fallthru
            _
          %298 = vnop
        $region20: #{tpu_custom_call.1} parent=15 // pred_fallthru
          _
        // Predicated region
        $region55: #{tpu_custom_call.1} parent=15 // pred_check
          %p299 = pneg %p85
        $region56: #{tpu_custom_call.1} parent=15 // pred_check_branch
          %301 = sbr.rel (%p299) target = $region58
        $region57: #{tpu_custom_call.1} parent=15 // pred_region
          %p302 = scmp.lt.s32.totalorder %s26, 1
          %s303 = scalar_select %p302, %s26, 1
          %s304 = smul.addr %s303, 16
          %s305 = smul.addr %s304, 8
          %s306 = scalar_lea.vmem %s1, %s305
        $region58: #{tpu_custom_call.1} parent=15 // pred_fallthru
          _
        // Predicated region
        $region59: #{tpu_custom_call.1} parent=15 // pred_check
          %p307 = pneg %p111
        $region60: #{tpu_custom_call.1} parent=15 // pred_check_branch
          %309 = sbr.rel (%p307) target = $region62
        $region61: #{tpu_custom_call.1} parent=15 // pred_region
          %p310 = scmp.lt.s32.totalorder %s26, 1
          %s311 = scalar_select %p310, %s26, 1
          %s312 = smul.addr %s311, 16
          %s313 = smul.addr %s312, 8
          %s314 = scalar_lea.vmem %s2, %s313
        $region62: #{tpu_custom_call.1} parent=15 // pred_fallthru
          _
        // Predicated region
        $region63: #{tpu_custom_call.1} parent=15 // pred_check
          %p315 = pneg %p137
        $region64: #{tpu_custom_call.1} parent=15 // pred_check_branch
          %317 = sbr.rel (%p315) target = $region66
        $region65: #{tpu_custom_call.1} parent=15 // pred_region
          %p318 = scmp.lt.s32.totalorder %s26, 1
          %s319 = scalar_select %p318, %s26, 1
          %s320 = scalar_lea.vmem %s3, %s319
        $region66: #{tpu_custom_call.1} parent=15 // pred_fallthru
          _
      $region16: #{tpu_custom_call.1} parent=5 // pred_fallthru
        _
      %p321 = scmp.le.s32.totalorder 1, %s19
      %p322 = scmp.lt.s32.totalorder %s19, 5
      %p323 = pnand %p321, %p322
      %p324 = pneg %p323
      // Predicated region
      $region67: #{tpu_custom_call.1} parent=5 // pred_check
        _
      $region68: #{tpu_custom_call.1} parent=5 // pred_check_branch
        %326 = sbr.rel (%p323) target = $region70
      $region69: #{tpu_custom_call.1} parent=5 // pred_region
        %s327 = ssub.s32 %s19, 1
        %s328 = sand.u32 %s52, 1
        %s329 = sand.u32 %s52, 1
        %s330 = smul.addr %s329, 16
        %s331 = scalar_lea.vmem [#allocation2], %s330
        // Predicated region
        $region71: #{tpu_custom_call.1} parent=69 // pred_check
          %p332 = pneg %p65
        $region72: #{tpu_custom_call.1} parent=69 // pred_check_branch
          %334 = sbr.rel (%p332) target = $region74
        $region73: #{tpu_custom_call.1} parent=69 // pred_region
          _
        $region74: #{tpu_custom_call.1} parent=69 // pred_fallthru
          _
        %s335 = sand.u32 %s52, 1
        %s336 = sand.u32 %s52, 1
        %s337 = smul.addr %s336, 16
        %s338 = scalar_lea.vmem [#allocation2], %s337
        %p339 = pneg %p65
        %p340 = pneg %p62
        %p341 = scmp.lt.s32.totalorder %s28, 1
        %s342 = scalar_select %p341, %s28, 1
        %s343 = smul.addr %s342, 16
        %s344 = smul.addr %s343, 8
        %s345 = scalar_lea.vmem %s1, %s344
        %p346 = pneg %p91
        %p347 = pneg %p88
        %p348 = scmp.lt.s32.totalorder %s28, 1
        %s349 = scalar_select %p348, %s28, 1
        %s350 = smul.addr %s349, 16
        %s351 = smul.addr %s350, 8
        %s352 = scalar_lea.vmem %s2, %s351
        %p353 = pneg %p117
        %p354 = pneg %p114
        %p355 = scmp.lt.s32.totalorder %s28, 1
        %s356 = scalar_select %p355, %s28, 1
        %s357 = scalar_lea.vmem %s3, %s356
        %p358 = pneg %p143
        %p359 = pneg %p140
        %p360 = pneg %p179
        %p361 = pneg %p176
        %s362 = sand.u32 %s166, 1
        %s363 = scalar_lea.sflag [#allocation4], %s362
        %s364 = sand.u32 %s166, 1
        %s365 = smul.addr %s364, 16
        %s366 = scalar_lea.vmem [#allocation3], %s365
        %p367 = pneg %p205
        %p368 = pneg %p202
        %s369 = sand.u32 %s24, 1
        %s370 = scalar_lea.sflag [#allocation6], %s369
        %s371 = sand.u32 %s192, 1
        %s372 = smul.addr %s371, 2
        %s373 = scalar_lea.vmem [#allocation5], %s372
        %p374 = pneg %p231
        %p375 = pneg %p228
        %s376 = sand.u32 %s24, 1
        %s377 = scalar_lea.sflag [#allocation6], %s376
        %s378 = sand.u32 %s218, 1
        %s379 = smul.addr %s378, 2
        %s380 = scalar_lea.vmem [#allocation7], %s379
        %s381 = smul.u32 %s29, 2
        %s382 = ssub.s32 1, %s381
        %s383 = smul.u32 %s28, %s382
        %s384 = sadd.s32 %s29, %s383
        %p385 = scmp.lt.s32.totalorder %s28, 1
        %s386 = scalar_select %p385, %s28, 1
        %s387 = smul.addr %s386, 16
        %s388 = smul.addr %s387, 8
        %s389 = scalar_lea.vmem %s1, %s388
        %p390 = scmp.lt.s32.totalorder %s28, 1
        %s391 = scalar_select %p390, %s28, 1
        %s392 = smul.addr %s391, 16
        %s393 = smul.addr %s392, 8
        %s394 = scalar_lea.vmem %s2, %s393
        %p395 = scmp.lt.s32.totalorder %s28, 1
        %s396 = scalar_select %p395, %s28, 1
        %s397 = scalar_lea.vmem %s3, %s396
        %s398 = smul.u32 %s29, 2
        %s399 = ssub.s32 1, %s398
        %s400 = smul.u32 %s28, %s399
        %s401 = sadd.s32 %s29, %s400
        %p402 = scmp.eq.s32.totalorder %s29, 0
        // Predicated region
        $region75: #{tpu_custom_call.1} parent=69 // pred_check
          %p403 = pneg %p402
        $region76: #{tpu_custom_call.1} parent=69 // pred_check_branch
          %405 = sbr.rel (%p403) target = $region78
        $region77: #{tpu_custom_call.1} parent=69 // pred_region
          %vm406 = vcmask 254976
          %407 = vst.msk [vmem:[%s373] sm:$0x3] %vm406, 0.0
          %408 = vst.msk [vmem:[%s380] sm:$0x3] %vm406, 0.0
        $region78: #{tpu_custom_call.1} parent=69 // pred_fallthru
          _
        %v409 = vld [vmem:[%s389] sm:$0xff]
        %v410 = vld [vmem:[%s389 + $0x8] sm:$0xff]
        %v411 = vld [vmem:[%s389 + $0x10] sm:$0xff]
        %v412 = vld [vmem:[%s389 + $0x18] sm:$0xff]
        %v413 = vld [vmem:[%s389 + $0x20] sm:$0xff]
        %v414 = vld [vmem:[%s389 + $0x28] sm:$0xff]
        %v415 = vld [vmem:[%s389 + $0x30] sm:$0xff]
        %v416 = vld [vmem:[%s389 + $0x38] sm:$0xff]
        %v417 = vld [vmem:[%s389 + $0x40] sm:$0xff]
        %v418 = vld [vmem:[%s389 + $0x48] sm:$0xff]
        %v419 = vld [vmem:[%s389 + $0x50] sm:$0xff]
        %v420 = vld [vmem:[%s389 + $0x58] sm:$0xff]
        %v421 = vld [vmem:[%s389 + $0x60] sm:$0xff]
        %v422 = vld [vmem:[%s389 + $0x68] sm:$0xff]
        %v423 = vld [vmem:[%s389 + $0x70] sm:$0xff]
        %v424 = vld [vmem:[%s389 + $0x78] sm:$0xff]
        %v425 = vld [vmem:[%s394] sm:$0xff]
        %v426 = vld [vmem:[%s394 + $0x8] sm:$0xff]
        %v427 = vld [vmem:[%s394 + $0x10] sm:$0xff]
        %v428 = vld [vmem:[%s394 + $0x18] sm:$0xff]
        %v429 = vld [vmem:[%s394 + $0x20] sm:$0xff]
        %v430 = vld [vmem:[%s394 + $0x28] sm:$0xff]
        %v431 = vld [vmem:[%s394 + $0x30] sm:$0xff]
        %v432 = vld [vmem:[%s394 + $0x38] sm:$0xff]
        %v433 = vld [vmem:[%s394 + $0x40] sm:$0xff]
        %v434 = vld [vmem:[%s394 + $0x48] sm:$0xff]
        %v435 = vld [vmem:[%s394 + $0x50] sm:$0xff]
        %v436 = vld [vmem:[%s394 + $0x58] sm:$0xff]
        %v437 = vld [vmem:[%s394 + $0x60] sm:$0xff]
        %v438 = vld [vmem:[%s394 + $0x68] sm:$0xff]
        %v439 = vld [vmem:[%s394 + $0x70] sm:$0xff]
        %v440 = vld [vmem:[%s394 + $0x78] sm:$0xff]
        %v441 = vld [vmem:[%s397] sm:$0x1]
        %v442 = vld [vmem:[%s331] sm:$0xff]
        %v443 = vld [vmem:[%s331 + $0x8] sm:$0xff]
        %v445 = vlaneseq
        %v446 = vshrl.u32 %v445, 7
        %v447 = vsub.s32 0, %v446
        %v448 = vrot.slane %v441, %v447
        %vm450 = vcmask 130048
        %v452 = vsel %vm450, %v442, 0
        %v455 = vsel %vm450, %v443, 0
        %v458 = vsel %vm450, %v409, 0
        %v461 = vsel %vm450, %v410, 0
        %v464 = vsel %vm450, %v411, 0
        %v467 = vsel %vm450, %v412, 0
        %v470 = vsel %vm450, %v413, 0
        %v473 = vsel %vm450, %v414, 0
        %v476 = vsel %vm450, %v415, 0
        %v479 = vsel %vm450, %v416, 0
        %v482 = vsel %vm450, %v417, 0
        %v485 = vsel %vm450, %v418, 0
        %v488 = vsel %vm450, %v419, 0
        %v491 = vsel %vm450, %v420, 0
        %v494 = vsel %vm450, %v421, 0
        %v497 = vsel %vm450, %v422, 0
        %v500 = vsel %vm450, %v423, 0
        %v503 = vsel %vm450, %v424, 0
        %505 = vmatprep.subr.mxu0 0.0
        %506 = vmatpush1.xpose.msra.mxu0 %v458
        %507 = vmatprep.subr.mxu0 0.0
        %508 = vmatpush1.xpose.msra.mxu0 %v461
        %509 = vmatprep.subr.mxu0 0.0
        %510 = vmatpush1.xpose.msra.mxu0 %v464
        %511 = vmatprep.subr.mxu0 0.0
        %512 = vmatpush1.xpose.msra.mxu0 %v467
        %513 = vmatprep.subr.mxu0 0.0
        %514 = vmatpush1.xpose.msra.mxu0 %v470
        %515 = vmatprep.subr.mxu0 0.0
        %516 = vmatpush1.xpose.msra.mxu0 %v473
        %517 = vmatprep.subr.mxu0 0.0
        %518 = vmatpush1.xpose.msra.mxu0 %v476
        %519 = vmatprep.subr.mxu0 0.0
        %520 = vmatpush1.xpose.msra.mxu0 %v479
        %521 = vmatprep.subr.mxu0 0.0
        %522 = vmatpush1.xpose.msra.mxu0 %v482
        %523 = vmatprep.subr.mxu0 0.0
        %524 = vmatpush1.xpose.msra.mxu0 %v485
        %525 = vmatprep.subr.mxu0 0.0
        %526 = vmatpush1.xpose.msra.mxu0 %v488
        %527 = vmatprep.subr.mxu0 0.0
        %528 = vmatpush1.xpose.msra.mxu0 %v491
        %529 = vmatprep.subr.mxu0 0.0
        %530 = vmatpush1.xpose.msra.mxu0 %v494
        %531 = vmatprep.subr.mxu0 0.0
        %532 = vmatpush1.xpose.msra.mxu0 %v497
        %533 = vmatprep.subr.mxu0 0.0
        %534 = vmatpush1.xpose.msra.mxu0 %v500
        %535 = vmatprep.subr.mxu0 0.0
        %536 = vmatpush1.xpose.msra.mxu0 %v503
        %537 = vmatprep.subr.mxu0 0.0
        %538 = vmatpush1.xpose.msra.mxu0 0.0
        %539 = vmatprep.subr.mxu0 0.0
        %540 = vmatpush1.xpose.msra.mxu0 0.0
        %541 = vmatprep.subr.mxu0 0.0
        %542 = vmatpush1.xpose.msra.mxu0 0.0
        %543 = vmatprep.subr.mxu0 0.0
        %544 = vmatpush1.xpose.msra.mxu0 0.0
        %545 = vmatprep.subr.mxu0 0.0
        %546 = vmatpush1.xpose.msra.mxu0 0.0
        %547 = vmatprep.subr.mxu0 0.0
        %548 = vmatpush1.xpose.msra.mxu0 0.0
        %549 = vmatprep.subr.mxu0 0.0
        %550 = vmatpush1.xpose.msra.mxu0 0.0
        %551 = vmatprep.subr.mxu0 0.0
        %552 = vmatpush1.xpose.msra.mxu0 0.0
        %553 = vmatprep.subr.mxu0 0.0
        %554 = vmatpush1.xpose.msra.mxu0 0.0
        %555 = vmatprep.subr.mxu0 0.0
        %556 = vmatpush1.xpose.msra.mxu0 0.0
        %557 = vmatprep.subr.mxu0 0.0
        %558 = vmatpush1.xpose.msra.mxu0 0.0
        %559 = vmatprep.subr.mxu0 0.0
        %560 = vmatpush1.xpose.msra.mxu0 0.0
        %561 = vmatprep.subr.mxu0 0.0
        %562 = vmatpush1.xpose.msra.mxu0 0.0
        %563 = vmatprep.subr.mxu0 0.0
        %564 = vmatpush1.xpose.msra.mxu0 0.0
        %565 = vmatprep.subr.mxu0 0.0
        %566 = vmatpush1.xpose.msra.mxu0 0.0
        %567 = vmatprep.subr.mxu0 0.0
        %568 = vmatpush1.xpose.msra.mxu0 0.0
        %569 = vmatprep.mubr.f32.mxu0 0.0
        %570 = vmatmul.mubr.f32.gmra.mrb[0].mxu0 %v452
        %v571 = vpop.f32.mrb[0].mxu0
        %v572 = vadd.f32 %v448, %v571
        %v573 = vpop.f32.mrb[0].mxu0
        %574 = vmatprep.mubr.f32.mxu0 0.0
        %575 = vmatmul.mubr.f32.gmra.mrb[0].mxu0 %v455
        %v576 = vpop.f32.mrb[0].mxu0
        %v577 = vadd.f32 %v448, %v576
        %v578 = vpop.f32.mrb[0].mxu0
        %579 = vdwg.mxu0
        %p580 = scmp.eq.s32.totalorder %s28, 0
        // Predicated region
        $region79: #{tpu_custom_call.1} parent=69 // pred_check
          %p581 = pneg %p580
        $region80: #{tpu_custom_call.1} parent=69 // pred_check_branch
          %583 = sbr.rel (%p581) target = $region82
        $region81: #{tpu_custom_call.1} parent=69 // pred_region
          %v584 = vld [vmem:[%s373] sm:$0x3]
          %v585 = vld [vmem:[%s380] sm:$0x3]
          %vm586 = vcmask 261120
          %v588 = vsel %vm586, %v584, 0
          %v591 = vsel %vm586, %v425, 0
          %v594 = vsel %vm586, %v426, 0
          %v597 = vsel %vm586, %v427, 0
          %v600 = vsel %vm586, %v428, 0
          %v603 = vsel %vm586, %v429, 0
          %v606 = vsel %vm586, %v430, 0
          %v609 = vsel %vm586, %v431, 0
          %v612 = vsel %vm586, %v432, 0
          %v615 = vsel %vm586, %v433, 0
          %v618 = vsel %vm586, %v434, 0
          %v621 = vsel %vm586, %v435, 0
          %v624 = vsel %vm586, %v436, 0
          %v627 = vsel %vm586, %v437, 0
          %v630 = vsel %vm586, %v438, 0
          %v633 = vsel %vm586, %v439, 0
          %v636 = vsel %vm586, %v440, 0
          %638 = vmatprep.subr.mxu0 0.0
          %639 = vmatpush1.xpose.msra.mxu0 %v591
          %640 = vmatprep.subr.mxu0 0.0
          %641 = vmatpush1.xpose.msra.mxu0 %v594
          %642 = vmatprep.subr.mxu0 0.0
          %643 = vmatpush1.xpose.msra.mxu0 %v597
          %644 = vmatprep.subr.mxu0 0.0
          %645 = vmatpush1.xpose.msra.mxu0 %v600
          %646 = vmatprep.subr.mxu0 0.0
          %647 = vmatpush1.xpose.msra.mxu0 %v603
          %648 = vmatprep.subr.mxu0 0.0
          %649 = vmatpush1.xpose.msra.mxu0 %v606
          %650 = vmatprep.subr.mxu0 0.0
          %651 = vmatpush1.xpose.msra.mxu0 %v609
          %652 = vmatprep.subr.mxu0 0.0
          %653 = vmatpush1.xpose.msra.mxu0 %v612
          %654 = vmatprep.subr.mxu0 0.0
          %655 = vmatpush1.xpose.msra.mxu0 %v615
          %656 = vmatprep.subr.mxu0 0.0
          %657 = vmatpush1.xpose.msra.mxu0 %v618
          %658 = vmatprep.subr.mxu0 0.0
          %659 = vmatpush1.xpose.msra.mxu0 %v621
          %660 = vmatprep.subr.mxu0 0.0
          %661 = vmatpush1.xpose.msra.mxu0 %v624
          %662 = vmatprep.subr.mxu0 0.0
          %663 = vmatpush1.xpose.msra.mxu0 %v627
          %664 = vmatprep.subr.mxu0 0.0
          %665 = vmatpush1.xpose.msra.mxu0 %v630
          %666 = vmatprep.subr.mxu0 0.0
          %667 = vmatpush1.xpose.msra.mxu0 %v633
          %668 = vmatprep.subr.mxu0 0.0
          %669 = vmatpush1.xpose.msra.mxu0 %v636
          %670 = vmatprep.subr.mxu0 0.0
          %671 = vmatpush1.xpose.msra.mxu0 0.0
          %672 = vmatprep.subr.mxu0 0.0
          %673 = vmatpush1.xpose.msra.mxu0 0.0
          %674 = vmatprep.subr.mxu0 0.0
          %675 = vmatpush1.xpose.msra.mxu0 0.0
          %676 = vmatprep.subr.mxu0 0.0
          %677 = vmatpush1.xpose.msra.mxu0 0.0
          %678 = vmatprep.subr.mxu0 0.0
          %679 = vmatpush1.xpose.msra.mxu0 0.0
          %680 = vmatprep.subr.mxu0 0.0
          %681 = vmatpush1.xpose.msra.mxu0 0.0
          %682 = vmatprep.subr.mxu0 0.0
          %683 = vmatpush1.xpose.msra.mxu0 0.0
          %684 = vmatprep.subr.mxu0 0.0
          %685 = vmatpush1.xpose.msra.mxu0 0.0
          %686 = vmatprep.subr.mxu0 0.0
          %687 = vmatpush1.xpose.msra.mxu0 0.0
          %688 = vmatprep.subr.mxu0 0.0
          %689 = vmatpush1.xpose.msra.mxu0 0.0
          %690 = vmatprep.subr.mxu0 0.0
          %691 = vmatpush1.xpose.msra.mxu0 0.0
          %692 = vmatprep.subr.mxu0 0.0
          %693 = vmatpush1.xpose.msra.mxu0 0.0
          %694 = vmatprep.subr.mxu0 0.0
          %695 = vmatpush1.xpose.msra.mxu0 0.0
          %696 = vmatprep.subr.mxu0 0.0
          %697 = vmatpush1.xpose.msra.mxu0 0.0
          %698 = vmatprep.subr.mxu0 0.0
          %699 = vmatpush1.xpose.msra.mxu0 0.0
          %700 = vmatprep.subr.mxu0 0.0
          %701 = vmatpush1.xpose.msra.mxu0 0.0
          %702 = vmatprep.mubr.f32.mxu0 0.0
          %703 = vmatmul.mubr.f32.gmra.mrb[0].mxu0 %v588
          %v704 = vpop.f32.mrb[0].mxu0
          %v705 = vadd.f32 0.0, %v704
          %v706 = vpop.f32.mrb[0].mxu0
          %707 = vdwg.mxu0
          %v709 = vrot.slane %v705, 1
          %v712 = vadd.f32 %v572, %v705
          %v713 = vadd.f32 %v577, %v709
          %v714 = vxor.u32 %v712, 2147483648
          %v715 = vxor.u32 %v713, 2147483648
          %v716 = vmul.f32 %v714, 1.442695
          %v717 = vpow.pop %v716
          %v718 = vmul.f32 %v715, 1.442695
          %v719 = vpow.pop %v718
          %v720 = vadd.f32 %v717, 1.0
          %v721 = vadd.f32 %v719, 1.0
          %v722 = vrcp.pop %v720
          %v723 = vmul.f32 1.0, %v722
          %v724 = vrcp.pop %v721
          %v725 = vmul.f32 1.0, %v724
          %v726 = vtanh.pop %v712
          %v727 = vtanh.pop %v713
          %v729 = vrot.slane %v585, 1
          %730 = vrot.lane.b32.xlu0 %v585, 32
          %v731 = vpop.permute.xlu0 %730
          %732 = vrot.lane.b32.xlu0 %v729, 32
          %v733 = vpop.permute.xlu0 %732
          %v736 = vmul.f32 %v723, %v731
          %v737 = vmul.f32 %v725, %v733
          %740 = vrot.lane.b32.xlu0 %v726, 32
          %v741 = vpop.permute.xlu0 %740
          %742 = vrot.lane.b32.xlu0 %v727, 32
          %v743 = vpop.permute.xlu0 %742
          %v746 = vmul.f32 %v723, %v741
          %v747 = vmul.f32 %v725, %v743
          %750 = vrot.lane.b32.xlu0 %v746, 32
          %v751 = vpop.permute.xlu0 %750
          %752 = vrot.lane.b32.xlu0 %v747, 32
          %v753 = vpop.permute.xlu0 %752
          %v756 = vadd.f32 %v736, %v751
          %v757 = vadd.f32 %v737, %v753
          %v758 = vtanh.pop %v756
          %v759 = vtanh.pop %v757
          %762 = vrot.lane.b32.xlu0 %v758, 32
          %v763 = vpop.permute.xlu0 %762
          %764 = vrot.lane.b32.xlu0 %v759, 32
          %v765 = vpop.permute.xlu0 %764
          %v768 = vmul.f32 %v723, %v763
          %v769 = vmul.f32 %v725, %v765
          %772 = vrot.lane.b32.xlu0 %v768, 64
          %v773 = vpop.permute.xlu0 %772
          %774 = vrot.lane.b32.xlu0 %v769, 64
          %v775 = vpop.permute.xlu0 %774
          %vm778 = vcmask 253952
          %779 = vst.msk [vmem:[%s366] sm:$0x1] %vm778, %v773
          %780 = vst.msk [vmem:[%s366 + $0x8] sm:$0x1] %vm778, %v775
          %v781 = vrot.slane %v769, 7
          %vm782 = vcmask 1041409
          %v783 = vsel %vm782, %v781, %v768
          %784 = vrot.lane.b32.xlu0 %v783, 64
          %v785 = vpop.permute.xlu0 %784
          %v786 = vsel %vm586, %v785, 0
          %788 = vmatprep.subr.mxu0 0.0
          %789 = vmatpush1.xpose.msra.mxu0 %v591
          %790 = vmatprep.subr.mxu0 0.0
          %791 = vmatpush1.xpose.msra.mxu0 %v594
          %792 = vmatprep.subr.mxu0 0.0
          %793 = vmatpush1.xpose.msra.mxu0 %v597
          %794 = vmatprep.subr.mxu0 0.0
          %795 = vmatpush1.xpose.msra.mxu0 %v600
          %796 = vmatprep.subr.mxu0 0.0
          %797 = vmatpush1.xpose.msra.mxu0 %v603
          %798 = vmatprep.subr.mxu0 0.0
          %799 = vmatpush1.xpose.msra.mxu0 %v606
          %800 = vmatprep.subr.mxu0 0.0
          %801 = vmatpush1.xpose.msra.mxu0 %v609
          %802 = vmatprep.subr.mxu0 0.0
          %803 = vmatpush1.xpose.msra.mxu0 %v612
          %804 = vmatprep.subr.mxu0 0.0
          %805 = vmatpush1.xpose.msra.mxu0 %v615
          %806 = vmatprep.subr.mxu0 0.0
          %807 = vmatpush1.xpose.msra.mxu0 %v618
          %808 = vmatprep.subr.mxu0 0.0
          %809 = vmatpush1.xpose.msra.mxu0 %v621
          %810 = vmatprep.subr.mxu0 0.0
          %811 = vmatpush1.xpose.msra.mxu0 %v624
          %812 = vmatprep.subr.mxu0 0.0
          %813 = vmatpush1.xpose.msra.mxu0 %v627
          %814 = vmatprep.subr.mxu0 0.0
          %815 = vmatpush1.xpose.msra.mxu0 %v630
          %816 = vmatprep.subr.mxu0 0.0
          %817 = vmatpush1.xpose.msra.mxu0 %v633
          %818 = vmatprep.subr.mxu0 0.0
          %819 = vmatpush1.xpose.msra.mxu0 %v636
          %820 = vmatprep.subr.mxu0 0.0
          %821 = vmatpush1.xpose.msra.mxu0 0.0
          %822 = vmatprep.subr.mxu0 0.0
          %823 = vmatpush1.xpose.msra.mxu0 0.0
          %824 = vmatprep.subr.mxu0 0.0
          %825 = vmatpush1.xpose.msra.mxu0 0.0
          %826 = vmatprep.subr.mxu0 0.0
          %827 = vmatpush1.xpose.msra.mxu0 0.0
          %828 = vmatprep.subr.mxu0 0.0
          %829 = vmatpush1.xpose.msra.mxu0 0.0
          %830 = vmatprep.subr.mxu0 0.0
          %831 = vmatpush1.xpose.msra.mxu0 0.0
          %832 = vmatprep.subr.mxu0 0.0
          %833 = vmatpush1.xpose.msra.mxu0 0.0
          %834 = vmatprep.subr.mxu0 0.0
          %835 = vmatpush1.xpose.msra.mxu0 0.0
          %836 = vmatprep.subr.mxu0 0.0
          %837 = vmatpush1.xpose.msra.mxu0 0.0
          %838 = vmatprep.subr.mxu0 0.0
          %839 = vmatpush1.xpose.msra.mxu0 0.0
          %840 = vmatprep.subr.mxu0 0.0
          %841 = vmatpush1.xpose.msra.mxu0 0.0
          %842 = vmatprep.subr.mxu0 0.0
          %843 = vmatpush1.xpose.msra.mxu0 0.0
          %844 = vmatprep.subr.mxu0 0.0
          %845 = vmatpush1.xpose.msra.mxu0 0.0
          %846 = vmatprep.subr.mxu0 0.0
          %847 = vmatpush1.xpose.msra.mxu0 0.0
          %848 = vmatprep.subr.mxu0 0.0
          %849 = vmatpush1.xpose.msra.mxu0 0.0
          %850 = vmatprep.subr.mxu0 0.0
          %851 = vmatpush1.xpose.msra.mxu0 0.0
          %852 = vmatprep.mubr.f32.mxu0 0.0
          %853 = vmatmul.mubr.f32.gmra.mrb[0].mxu0 %v786
          %v854 = vpop.f32.mrb[0].mxu0
          %v855 = vadd.f32 0.0, %v854
          %v856 = vpop.f32.mrb[0].mxu0
          %857 = vdwg.mxu0
          %v859 = vrot.slane %v855, 7
          %v862 = vadd.f32 %v572, %v859
          %v863 = vadd.f32 %v577, %v855
          %v864 = vxor.u32 %v862, 2147483648
          %v865 = vxor.u32 %v863, 2147483648
          %v866 = vmul.f32 %v864, 1.442695
          %v867 = vpow.pop %v866
          %v868 = vmul.f32 %v865, 1.442695
          %v869 = vpow.pop %v868
          %v870 = vadd.f32 %v867, 1.0
          %v871 = vadd.f32 %v869, 1.0
          %v872 = vrcp.pop %v870
          %v873 = vmul.f32 1.0, %v872
          %v874 = vrcp.pop %v871
          %v875 = vmul.f32 1.0, %v874
          %v876 = vtanh.pop %v862
          %v877 = vtanh.pop %v863
          %v880 = vrot.slane %v756, 7
          %v881 = vrot.slane %v757, 7
          %v884 = vmul.f32 %v873, %v880
          %v885 = vmul.f32 %v875, %v881
          %888 = vrot.lane.b32.xlu0 %v876, 32
          %v889 = vpop.permute.xlu0 %888
          %890 = vrot.lane.b32.xlu0 %v877, 32
          %v891 = vpop.permute.xlu0 %890
          %v894 = vmul.f32 %v873, %v889
          %v895 = vmul.f32 %v875, %v891
          %898 = vrot.lane.b32.xlu0 %v894, 32
          %v899 = vpop.permute.xlu0 %898
          %900 = vrot.lane.b32.xlu0 %v895, 32
          %v901 = vpop.permute.xlu0 %900
          %v904 = vadd.f32 %v884, %v899
          %v905 = vadd.f32 %v885, %v901
          %v906 = vtanh.pop %v904
          %v907 = vtanh.pop %v905
          %910 = vrot.lane.b32.xlu0 %v906, 32
          %v911 = vpop.permute.xlu0 %910
          %912 = vrot.lane.b32.xlu0 %v907, 32
          %v913 = vpop.permute.xlu0 %912
          %v916 = vmul.f32 %v873, %v911
          %v917 = vmul.f32 %v875, %v913
          %920 = vrot.lane.b32.xlu0 %v916, 64
          %v921 = vpop.permute.xlu0 %920
          %922 = vrot.lane.b32.xlu0 %v917, 64
          %v923 = vpop.permute.xlu0 %922
          %vm926 = vcmask 254977
          %927 = vst.msk [vmem:[%s366] sm:$0x2] %vm926, %v921
          %928 = vst.msk [vmem:[%s366 + $0x8] sm:$0x2] %vm926, %v923
          %v929 = vrot.slane %v916, 1
          %v930 = vsel %vm782, %v917, %v929
          %931 = vrot.lane.b32.xlu0 %v930, 64
          %v932 = vpop.permute.xlu0 %931
          %v933 = vsel %vm586, %v932, 0
          %935 = vmatprep.subr.mxu0 0.0
          %936 = vmatpush1.xpose.msra.mxu0 %v591
          %937 = vmatprep.subr.mxu0 0.0
          %938 = vmatpush1.xpose.msra.mxu0 %v594
          %939 = vmatprep.subr.mxu0 0.0
          %940 = vmatpush1.xpose.msra.mxu0 %v597
          %941 = vmatprep.subr.mxu0 0.0
          %942 = vmatpush1.xpose.msra.mxu0 %v600
          %943 = vmatprep.subr.mxu0 0.0
          %944 = vmatpush1.xpose.msra.mxu0 %v603
          %945 = vmatprep.subr.mxu0 0.0
          %946 = vmatpush1.xpose.msra.mxu0 %v606
          %947 = vmatprep.subr.mxu0 0.0
          %948 = vmatpush1.xpose.msra.mxu0 %v609
          %949 = vmatprep.subr.mxu0 0.0
          %950 = vmatpush1.xpose.msra.mxu0 %v612
          %951 = vmatprep.subr.mxu0 0.0
          %952 = vmatpush1.xpose.msra.mxu0 %v615
          %953 = vmatprep.subr.mxu0 0.0
          %954 = vmatpush1.xpose.msra.mxu0 %v618
          %955 = vmatprep.subr.mxu0 0.0
          %956 = vmatpush1.xpose.msra.mxu0 %v621
          %957 = vmatprep.subr.mxu0 0.0
          %958 = vmatpush1.xpose.msra.mxu0 %v624
          %959 = vmatprep.subr.mxu0 0.0
          %960 = vmatpush1.xpose.msra.mxu0 %v627
          %961 = vmatprep.subr.mxu0 0.0
          %962 = vmatpush1.xpose.msra.mxu0 %v630
          %963 = vmatprep.subr.mxu0 0.0
          %964 = vmatpush1.xpose.msra.mxu0 %v633
          %965 = vmatprep.subr.mxu0 0.0
          %966 = vmatpush1.xpose.msra.mxu0 %v636
          %967 = vmatprep.subr.mxu0 0.0
          %968 = vmatpush1.xpose.msra.mxu0 0.0
          %969 = vmatprep.subr.mxu0 0.0
          %970 = vmatpush1.xpose.msra.mxu0 0.0
          %971 = vmatprep.subr.mxu0 0.0
          %972 = vmatpush1.xpose.msra.mxu0 0.0
          %973 = vmatprep.subr.mxu0 0.0
          %974 = vmatpush1.xpose.msra.mxu0 0.0
          %975 = vmatprep.subr.mxu0 0.0
          %976 = vmatpush1.xpose.msra.mxu0 0.0
          %977 = vmatprep.subr.mxu0 0.0
          %978 = vmatpush1.xpose.msra.mxu0 0.0
          %979 = vmatprep.subr.mxu0 0.0
          %980 = vmatpush1.xpose.msra.mxu0 0.0
          %981 = vmatprep.subr.mxu0 0.0
          %982 = vmatpush1.xpose.msra.mxu0 0.0
          %983 = vmatprep.subr.mxu0 0.0
          %984 = vmatpush1.xpose.msra.mxu0 0.0
          %985 = vmatprep.subr.mxu0 0.0
          %986 = vmatpush1.xpose.msra.mxu0 0.0
          %987 = vmatprep.subr.mxu0 0.0
          %988 = vmatpush1.xpose.msra.mxu0 0.0
          %989 = vmatprep.subr.mxu0 0.0
          %990 = vmatpush1.xpose.msra.mxu0 0.0
          %991 = vmatprep.subr.mxu0 0.0
          %992 = vmatpush1.xpose.msra.mxu0 0.0
          %993 = vmatprep.subr.mxu0 0.0
          %994 = vmatpush1.xpose.msra.mxu0 0.0
          %995 = vmatprep.subr.mxu0 0.0
          %996 = vmatpush1.xpose.msra.mxu0 0.0
          %997 = vmatprep.subr.mxu0 0.0
          %998 = vmatpush1.xpose.msra.mxu0 0.0
          %999 = vmatprep.mubr.f32.mxu0 0.0
          %1000 = vmatmul.mubr.f32.gmra.mrb[0].mxu0 %v933
          %v1001 = vpop.f32.mrb[0].mxu0
          %v1002 = vadd.f32 0.0, %v1001
          %v1003 = vpop.f32.mrb[0].mxu0
          %1004 = vdwg.mxu0
          %v1006 = vrot.slane %v1002, 6
          %v1007 = vrot.slane %v1002, 7
          %v1010 = vadd.f32 %v572, %v1006
          %v1011 = vadd.f32 %v577, %v1007
          %v1012 = vxor.u32 %v1010, 2147483648
          %v1013 = vxor.u32 %v1011, 2147483648
          %v1014 = vmul.f32 %v1012, 1.442695
          %v1015 = vpow.pop %v1014
          %v1016 = vmul.f32 %v1013, 1.442695
          %v1017 = vpow.pop %v1016
          %v1018 = vadd.f32 %v1015, 1.0
          %v1019 = vadd.f32 %v1017, 1.0
          %v1020 = vrcp.pop %v1018
          %v1021 = vmul.f32 1.0, %v1020
          %v1022 = vrcp.pop %v1019
          %v1023 = vmul.f32 1.0, %v1022
          %v1024 = vtanh.pop %v1010
          %v1025 = vtanh.pop %v1011
          %v1028 = vrot.slane %v904, 7
          %v1029 = vrot.slane %v905, 7
          %v1032 = vmul.f32 %v1021, %v1028
          %v1033 = vmul.f32 %v1023, %v1029
          %1036 = vrot.lane.b32.xlu0 %v1024, 32
          %v1037 = vpop.permute.xlu0 %1036
          %1038 = vrot.lane.b32.xlu0 %v1025, 32
          %v1039 = vpop.permute.xlu0 %1038
          %v1042 = vmul.f32 %v1021, %v1037
          %v1043 = vmul.f32 %v1023, %v1039
          %1046 = vrot.lane.b32.xlu0 %v1042, 32
          %v1047 = vpop.permute.xlu0 %1046
          %1048 = vrot.lane.b32.xlu0 %v1043, 32
          %v1049 = vpop.permute.xlu0 %1048
          %v1052 = vadd.f32 %v1032, %v1047
          %v1053 = vadd.f32 %v1033, %v1049
          %v1054 = vtanh.pop %v1052
          %v1055 = vtanh.pop %v1053
          %1058 = vrot.lane.b32.xlu0 %v1054, 32
          %v1059 = vpop.permute.xlu0 %1058
          %1060 = vrot.lane.b32.xlu0 %v1055, 32
          %v1061 = vpop.permute.xlu0 %1060
          %v1064 = vmul.f32 %v1021, %v1059
          %v1065 = vmul.f32 %v1023, %v1061
          %1068 = vrot.lane.b32.xlu0 %v1064, 64
          %v1069 = vpop.permute.xlu0 %1068
          %1070 = vrot.lane.b32.xlu0 %v1065, 64
          %v1071 = vpop.permute.xlu0 %1070
          %vm1074 = vcmask 256002
          %1075 = vst.msk [vmem:[%s366] sm:$0x4] %vm1074, %v1069
          %1076 = vst.msk [vmem:[%s366 + $0x8] sm:$0x4] %vm1074, %v1071
          %v1077 = vrot.slane %v1064, 2
          %v1078 = vrot.slane %v1065, 1
          %v1079 = vsel %vm782, %v1078, %v1077
          %1080 = vrot.lane.b32.xlu0 %v1079, 64
          %v1081 = vpop.permute.xlu0 %1080
          %v1082 = vsel %vm586, %v1081, 0
          %1084 = vmatprep.subr.mxu0 0.0
          %1085 = vmatpush1.xpose.msra.mxu0 %v591
          %1086 = vmatprep.subr.mxu0 0.0
          %1087 = vmatpush1.xpose.msra.mxu0 %v594
          %1088 = vmatprep.subr.mxu0 0.0
          %1089 = vmatpush1.xpose.msra.mxu0 %v597
          %1090 = vmatprep.subr.mxu0 0.0
          %1091 = vmatpush1.xpose.msra.mxu0 %v600
          %1092 = vmatprep.subr.mxu0 0.0
          %1093 = vmatpush1.xpose.msra.mxu0 %v603
          %1094 = vmatprep.subr.mxu0 0.0
          %1095 = vmatpush1.xpose.msra.mxu0 %v606
          %1096 = vmatprep.subr.mxu0 0.0
          %1097 = vmatpush1.xpose.msra.mxu0 %v609
          %1098 = vmatprep.subr.mxu0 0.0
          %1099 = vmatpush1.xpose.msra.mxu0 %v612
          %1100 = vmatprep.subr.mxu0 0.0
          %1101 = vmatpush1.xpose.msra.mxu0 %v615
          %1102 = vmatprep.subr.mxu0 0.0
          %1103 = vmatpush1.xpose.msra.mxu0 %v618
          %1104 = vmatprep.subr.mxu0 0.0
          %1105 = vmatpush1.xpose.msra.mxu0 %v621
          %1106 = vmatprep.subr.mxu0 0.0
          %1107 = vmatpush1.xpose.msra.mxu0 %v624
          %1108 = vmatprep.subr.mxu0 0.0
          %1109 = vmatpush1.xpose.msra.mxu0 %v627
          %1110 = vmatprep.subr.mxu0 0.0
          %1111 = vmatpush1.xpose.msra.mxu0 %v630
          %1112 = vmatprep.subr.mxu0 0.0
          %1113 = vmatpush1.xpose.msra.mxu0 %v633
          %1114 = vmatprep.subr.mxu0 0.0
          %1115 = vmatpush1.xpose.msra.mxu0 %v636
          %1116 = vmatprep.subr.mxu0 0.0
          %1117 = vmatpush1.xpose.msra.mxu0 0.0
          %1118 = vmatprep.subr.mxu0 0.0
          %1119 = vmatpush1.xpose.msra.mxu0 0.0
          %1120 = vmatprep.subr.mxu0 0.0
          %1121 = vmatpush1.xpose.msra.mxu0 0.0
          %1122 = vmatprep.subr.mxu0 0.0
          %1123 = vmatpush1.xpose.msra.mxu0 0.0
          %1124 = vmatprep.subr.mxu0 0.0
          %1125 = vmatpush1.xpose.msra.mxu0 0.0
          %1126 = vmatprep.subr.mxu0 0.0
          %1127 = vmatpush1.xpose.msra.mxu0 0.0
          %1128 = vmatprep.subr.mxu0 0.0
          %1129 = vmatpush1.xpose.msra.mxu0 0.0
          %1130 = vmatprep.subr.mxu0 0.0
          %1131 = vmatpush1.xpose.msra.mxu0 0.0
          %1132 = vmatprep.subr.mxu0 0.0
          %1133 = vmatpush1.xpose.msra.mxu0 0.0
          %1134 = vmatprep.subr.mxu0 0.0
          %1135 = vmatpush1.xpose.msra.mxu0 0.0
          %1136 = vmatprep.subr.mxu0 0.0
          %1137 = vmatpush1.xpose.msra.mxu0 0.0
          %1138 = vmatprep.subr.mxu0 0.0
          %1139 = vmatpush1.xpose.msra.mxu0 0.0
          %1140 = vmatprep.subr.mxu0 0.0
          %1141 = vmatpush1.xpose.msra.mxu0 0.0
          %1142 = vmatprep.subr.mxu0 0.0
          %1143 = vmatpush1.xpose.msra.mxu0 0.0
          %1144 = vmatprep.subr.mxu0 0.0
          %1145 = vmatpush1.xpose.msra.mxu0 0.0
          %1146 = vmatprep.subr.mxu0 0.0
          %1147 = vmatpush1.xpose.msra.mxu0 0.0
          %1148 = vmatprep.mubr.f32.mxu0 0.0
          %1149 = vmatmul.mubr.f32.gmra.mrb[0].mxu0 %v1082
          %v1150 = vpop.f32.mrb[0].mxu0
          %v1151 = vadd.f32 0.0, %v1150
          %v1152 = vpop.f32.mrb[0].mxu0
          %1153 = vdwg.mxu0
          %v1155 = vrot.slane %v1151, 5
          %v1156 = vrot.slane %v1151, 6
          %v1159 = vadd.f32 %v572, %v1155
          %v1160 = vadd.f32 %v577, %v1156
          %v1161 = vxor.u32 %v1159, 2147483648
          %v1162 = vxor.u32 %v1160, 2147483648
          %v1163 = vmul.f32 %v1161, 1.442695
          %v1164 = vpow.pop %v1163
          %v1165 = vmul.f32 %v1162, 1.442695
          %v1166 = vpow.pop %v1165
          %v1167 = vadd.f32 %v1164, 1.0
          %v1168 = vadd.f32 %v1166, 1.0
          %v1169 = vrcp.pop %v1167
          %v1170 = vmul.f32 1.0, %v1169
          %v1171 = vrcp.pop %v1168
          %v1172 = vmul.f32 1.0, %v1171
          %v1173 = vtanh.pop %v1159
          %v1174 = vtanh.pop %v1160
          %v1177 = vrot.slane %v1052, 7
          %v1178 = vrot.slane %v1053, 7
          %v1181 = vmul.f32 %v1170, %v1177
          %v1182 = vmul.f32 %v1172, %v1178
          %1185 = vrot.lane.b32.xlu0 %v1173, 32
          %v1186 = vpop.permute.xlu0 %1185
          %1187 = vrot.lane.b32.xlu0 %v1174, 32
          %v1188 = vpop.permute.xlu0 %1187
          %v1191 = vmul.f32 %v1170, %v1186
          %v1192 = vmul.f32 %v1172, %v1188
          %1195 = vrot.lane.b32.xlu0 %v1191, 32
          %v1196 = vpop.permute.xlu0 %1195
          %1197 = vrot.lane.b32.xlu0 %v1192, 32
          %v1198 = vpop.permute.xlu0 %1197
          %v1201 = vadd.f32 %v1181, %v1196
          %v1202 = vadd.f32 %v1182, %v1198
          %v1203 = vtanh.pop %v1201
          %v1204 = vtanh.pop %v1202
          %1207 = vrot.lane.b32.xlu0 %v1203, 32
          %v1208 = vpop.permute.xlu0 %1207
          %1209 = vrot.lane.b32.xlu0 %v1204, 32
          %v1210 = vpop.permute.xlu0 %1209
          %v1213 = vmul.f32 %v1170, %v1208
          %v1214 = vmul.f32 %v1172, %v1210
          %1217 = vrot.lane.b32.xlu0 %v1213, 64
          %v1218 = vpop.permute.xlu0 %1217
          %1219 = vrot.lane.b32.xlu0 %v1214, 64
          %v1220 = vpop.permute.xlu0 %1219
          %vm1223 = vcmask 257027
          %1224 = vst.msk [vmem:[%s366] sm:$0x8] %vm1223, %v1218
          %1225 = vst.msk [vmem:[%s366 + $0x8] sm:$0x8] %vm1223, %v1220
          %v1226 = vrot.slane %v1213, 3
          %v1227 = vrot.slane %v1214, 2
          %v1228 = vsel %vm782, %v1227, %v1226
          %1229 = vrot.lane.b32.xlu0 %v1228, 64
          %v1230 = vpop.permute.xlu0 %1229
          %v1231 = vsel %vm586, %v1230, 0
          %1233 = vmatprep.subr.mxu0 0.0
          %1234 = vmatpush1.xpose.msra.mxu0 %v591
          %1235 = vmatprep.subr.mxu0 0.0
          %1236 = vmatpush1.xpose.msra.mxu0 %v594
          %1237 = vmatprep.subr.mxu0 0.0
          %1238 = vmatpush1.xpose.msra.mxu0 %v597
          %1239 = vmatprep.subr.mxu0 0.0
          %1240 = vmatpush1.xpose.msra.mxu0 %v600
          %1241 = vmatprep.subr.mxu0 0.0
          %1242 = vmatpush1.xpose.msra.mxu0 %v603
          %1243 = vmatprep.subr.mxu0 0.0
          %1244 = vmatpush1.xpose.msra.mxu0 %v606
          %1245 = vmatprep.subr.mxu0 0.0
          %1246 = vmatpush1.xpose.msra.mxu0 %v609
          %1247 = vmatprep.subr.mxu0 0.0
          %1248 = vmatpush1.xpose.msra.mxu0 %v612
          %1249 = vmatprep.subr.mxu0 0.0
          %1250 = vmatpush1.xpose.msra.mxu0 %v615
          %1251 = vmatprep.subr.mxu0 0.0
          %1252 = vmatpush1.xpose.msra.mxu0 %v618
          %1253 = vmatprep.subr.mxu0 0.0
          %1254 = vmatpush1.xpose.msra.mxu0 %v621
          %1255 = vmatprep.subr.mxu0 0.0
          %1256 = vmatpush1.xpose.msra.mxu0 %v624
          %1257 = vmatprep.subr.mxu0 0.0
          %1258 = vmatpush1.xpose.msra.mxu0 %v627
          %1259 = vmatprep.subr.mxu0 0.0
          %1260 = vmatpush1.xpose.msra.mxu0 %v630
          %1261 = vmatprep.subr.mxu0 0.0
          %1262 = vmatpush1.xpose.msra.mxu0 %v633
          %1263 = vmatprep.subr.mxu0 0.0
          %1264 = vmatpush1.xpose.msra.mxu0 %v636
          %1265 = vmatprep.subr.mxu0 0.0
          %1266 = vmatpush1.xpose.msra.mxu0 0.0
          %1267 = vmatprep.subr.mxu0 0.0
          %1268 = vmatpush1.xpose.msra.mxu0 0.0
          %1269 = vmatprep.subr.mxu0 0.0
          %1270 = vmatpush1.xpose.msra.mxu0 0.0
          %1271 = vmatprep.subr.mxu0 0.0
          %1272 = vmatpush1.xpose.msra.mxu0 0.0
          %1273 = vmatprep.subr.mxu0 0.0
          %1274 = vmatpush1.xpose.msra.mxu0 0.0
          %1275 = vmatprep.subr.mxu0 0.0
          %1276 = vmatpush1.xpose.msra.mxu0 0.0
          %1277 = vmatprep.subr.mxu0 0.0
          %1278 = vmatpush1.xpose.msra.mxu0 0.0
          %1279 = vmatprep.subr.mxu0 0.0
          %1280 = vmatpush1.xpose.msra.mxu0 0.0
          %1281 = vmatprep.subr.mxu0 0.0
          %1282 = vmatpush1.xpose.msra.mxu0 0.0
          %1283 = vmatprep.subr.mxu0 0.0
          %1284 = vmatpush1.xpose.msra.mxu0 0.0
          %1285 = vmatprep.subr.mxu0 0.0
          %1286 = vmatpush1.xpose.msra.mxu0 0.0
          %1287 = vmatprep.subr.mxu0 0.0
          %1288 = vmatpush1.xpose.msra.mxu0 0.0
          %1289 = vmatprep.subr.mxu0 0.0
          %1290 = vmatpush1.xpose.msra.mxu0 0.0
          %1291 = vmatprep.subr.mxu0 0.0
          %1292 = vmatpush1.xpose.msra.mxu0 0.0
          %1293 = vmatprep.subr.mxu0 0.0
          %1294 = vmatpush1.xpose.msra.mxu0 0.0
          %1295 = vmatprep.subr.mxu0 0.0
          %1296 = vmatpush1.xpose.msra.mxu0 0.0
          %1297 = vmatprep.mubr.f32.mxu0 0.0
          %1298 = vmatmul.mubr.f32.gmra.mrb[0].mxu0 %v1231
          %v1299 = vpop.f32.mrb[0].mxu0
          %v1300 = vadd.f32 0.0, %v1299
          %v1301 = vpop.f32.mrb[0].mxu0
          %1302 = vdwg.mxu0
          %v1304 = vrot.slane %v1300, 4
          %v1305 = vrot.slane %v1300, 5
          %v1308 = vadd.f32 %v572, %v1304
          %v1309 = vadd.f32 %v577, %v1305
          %v1310 = vxor.u32 %v1308, 2147483648
          %v1311 = vxor.u32 %v1309, 2147483648
          %v1312 = vmul.f32 %v1310, 1.442695
          %v1313 = vpow.pop %v1312
          %v1314 = vmul.f32 %v1311, 1.442695
          %v1315 = vpow.pop %v1314
          %v1316 = vadd.f32 %v1313, 1.0
          %v1317 = vadd.f32 %v1315, 1.0
          %v1318 = vrcp.pop %v1316
          %v1319 = vmul.f32 1.0, %v1318
          %v1320 = vrcp.pop %v1317
          %v1321 = vmul.f32 1.0, %v1320
          %v1322 = vtanh.pop %v1308
          %v1323 = vtanh.pop %v1309
          %v1326 = vrot.slane %v1201, 7
          %v1327 = vrot.slane %v1202, 7
          %v1330 = vmul.f32 %v1319, %v1326
          %v1331 = vmul.f32 %v1321, %v1327
          %1334 = vrot.lane.b32.xlu0 %v1322, 32
          %v1335 = vpop.permute.xlu0 %1334
          %1336 = vrot.lane.b32.xlu0 %v1323, 32
          %v1337 = vpop.permute.xlu0 %1336
          %v1340 = vmul.f32 %v1319, %v1335
          %v1341 = vmul.f32 %v1321, %v1337
          %1344 = vrot.lane.b32.xlu0 %v1340, 32
          %v1345 = vpop.permute.xlu0 %1344
          %1346 = vrot.lane.b32.xlu0 %v1341, 32
          %v1347 = vpop.permute.xlu0 %1346
          %v1350 = vadd.f32 %v1330, %v1345
          %v1351 = vadd.f32 %v1331, %v1347
          %v1352 = vtanh.pop %v1350
          %v1353 = vtanh.pop %v1351
          %1356 = vrot.lane.b32.xlu0 %v1352, 32
          %v1357 = vpop.permute.xlu0 %1356
          %1358 = vrot.lane.b32.xlu0 %v1353, 32
          %v1359 = vpop.permute.xlu0 %1358
          %v1362 = vmul.f32 %v1319, %v1357
          %v1363 = vmul.f32 %v1321, %v1359
          %1366 = vrot.lane.b32.xlu0 %v1362, 64
          %v1367 = vpop.permute.xlu0 %1366
          %1368 = vrot.lane.b32.xlu0 %v1363, 64
          %v1369 = vpop.permute.xlu0 %1368
          %vm1372 = vcmask 258052
          %1373 = vst.msk [vmem:[%s366] sm:$0x10] %vm1372, %v1367
          %1374 = vst.msk [vmem:[%s366 + $0x8] sm:$0x10] %vm1372, %v1369
          %v1375 = vrot.slane %v1362, 4
          %v1376 = vrot.slane %v1363, 3
          %v1377 = vsel %vm782, %v1376, %v1375
          %1378 = vrot.lane.b32.xlu0 %v1377, 64
          %v1379 = vpop.permute.xlu0 %1378
          %v1380 = vsel %vm586, %v1379, 0
          %1382 = vmatprep.subr.mxu0 0.0
          %1383 = vmatpush1.xpose.msra.mxu0 %v591
          %1384 = vmatprep.subr.mxu0 0.0
          %1385 = vmatpush1.xpose.msra.mxu0 %v594
          %1386 = vmatprep.subr.mxu0 0.0
          %1387 = vmatpush1.xpose.msra.mxu0 %v597
          %1388 = vmatprep.subr.mxu0 0.0
          %1389 = vmatpush1.xpose.msra.mxu0 %v600
          %1390 = vmatprep.subr.mxu0 0.0
          %1391 = vmatpush1.xpose.msra.mxu0 %v603
          %1392 = vmatprep.subr.mxu0 0.0
          %1393 = vmatpush1.xpose.msra.mxu0 %v606
          %1394 = vmatprep.subr.mxu0 0.0
          %1395 = vmatpush1.xpose.msra.mxu0 %v609
          %1396 = vmatprep.subr.mxu0 0.0
          %1397 = vmatpush1.xpose.msra.mxu0 %v612
          %1398 = vmatprep.subr.mxu0 0.0
          %1399 = vmatpush1.xpose.msra.mxu0 %v615
          %1400 = vmatprep.subr.mxu0 0.0
          %1401 = vmatpush1.xpose.msra.mxu0 %v618
          %1402 = vmatprep.subr.mxu0 0.0
          %1403 = vmatpush1.xpose.msra.mxu0 %v621
          %1404 = vmatprep.subr.mxu0 0.0
          %1405 = vmatpush1.xpose.msra.mxu0 %v624
          %1406 = vmatprep.subr.mxu0 0.0
          %1407 = vmatpush1.xpose.msra.mxu0 %v627
          %1408 = vmatprep.subr.mxu0 0.0
          %1409 = vmatpush1.xpose.msra.mxu0 %v630
          %1410 = vmatprep.subr.mxu0 0.0
          %1411 = vmatpush1.xpose.msra.mxu0 %v633
          %1412 = vmatprep.subr.mxu0 0.0
          %1413 = vmatpush1.xpose.msra.mxu0 %v636
          %1414 = vmatprep.subr.mxu0 0.0
          %1415 = vmatpush1.xpose.msra.mxu0 0.0
          %1416 = vmatprep.subr.mxu0 0.0
          %1417 = vmatpush1.xpose.msra.mxu0 0.0
          %1418 = vmatprep.subr.mxu0 0.0
          %1419 = vmatpush1.xpose.msra.mxu0 0.0
          %1420 = vmatprep.subr.mxu0 0.0
          %1421 = vmatpush1.xpose.msra.mxu0 0.0
          %1422 = vmatprep.subr.mxu0 0.0
          %1423 = vmatpush1.xpose.msra.mxu0 0.0
          %1424 = vmatprep.subr.mxu0 0.0
          %1425 = vmatpush1.xpose.msra.mxu0 0.0
          %1426 = vmatprep.subr.mxu0 0.0
          %1427 = vmatpush1.xpose.msra.mxu0 0.0
          %1428 = vmatprep.subr.mxu0 0.0
          %1429 = vmatpush1.xpose.msra.mxu0 0.0
          %1430 = vmatprep.subr.mxu0 0.0
          %1431 = vmatpush1.xpose.msra.mxu0 0.0
          %1432 = vmatprep.subr.mxu0 0.0
          %1433 = vmatpush1.xpose.msra.mxu0 0.0
          %1434 = vmatprep.subr.mxu0 0.0
          %1435 = vmatpush1.xpose.msra.mxu0 0.0
          %1436 = vmatprep.subr.mxu0 0.0
          %1437 = vmatpush1.xpose.msra.mxu0 0.0
          %1438 = vmatprep.subr.mxu0 0.0
          %1439 = vmatpush1.xpose.msra.mxu0 0.0
          %1440 = vmatprep.subr.mxu0 0.0
          %1441 = vmatpush1.xpose.msra.mxu0 0.0
          %1442 = vmatprep.subr.mxu0 0.0
          %1443 = vmatpush1.xpose.msra.mxu0 0.0
          %1444 = vmatprep.subr.mxu0 0.0
          %1445 = vmatpush1.xpose.msra.mxu0 0.0
          %1446 = vmatprep.mubr.f32.mxu0 0.0
          %1447 = vmatmul.mubr.f32.gmra.mrb[0].mxu0 %v1380
          %v1448 = vpop.f32.mrb[0].mxu0
          %v1449 = vadd.f32 0.0, %v1448
          %v1450 = vpop.f32.mrb[0].mxu0
          %1451 = vdwg.mxu0
          %v1453 = vrot.slane %v1449, 3
          %v1454 = vrot.slane %v1449, 4
          %v1457 = vadd.f32 %v572, %v1453
          %v1458 = vadd.f32 %v577, %v1454
          %v1459 = vxor.u32 %v1457, 2147483648
          %v1460 = vxor.u32 %v1458, 2147483648
          %v1461 = vmul.f32 %v1459, 1.442695
          %v1462 = vpow.pop %v1461
          %v1463 = vmul.f32 %v1460, 1.442695
          %v1464 = vpow.pop %v1463
          %v1465 = vadd.f32 %v1462, 1.0
          %v1466 = vadd.f32 %v1464, 1.0
          %v1467 = vrcp.pop %v1465
          %v1468 = vmul.f32 1.0, %v1467
          %v1469 = vrcp.pop %v1466
          %v1470 = vmul.f32 1.0, %v1469
          %v1471 = vtanh.pop %v1457
          %v1472 = vtanh.pop %v1458
          %v1475 = vrot.slane %v1350, 7
          %v1476 = vrot.slane %v1351, 7
          %v1479 = vmul.f32 %v1468, %v1475
          %v1480 = vmul.f32 %v1470, %v1476
          %1483 = vrot.lane.b32.xlu0 %v1471, 32
          %v1484 = vpop.permute.xlu0 %1483
          %1485 = vrot.lane.b32.xlu0 %v1472, 32
          %v1486 = vpop.permute.xlu0 %1485
          %v1489 = vmul.f32 %v1468, %v1484
          %v1490 = vmul.f32 %v1470, %v1486
          %1493 = vrot.lane.b32.xlu0 %v1489, 32
          %v1494 = vpop.permute.xlu0 %1493
          %1495 = vrot.lane.b32.xlu0 %v1490, 32
          %v1496 = vpop.permute.xlu0 %1495
          %v1499 = vadd.f32 %v1479, %v1494
          %v1500 = vadd.f32 %v1480, %v1496
          %v1501 = vtanh.pop %v1499
          %v1502 = vtanh.pop %v1500
          %1505 = vrot.lane.b32.xlu0 %v1501, 32
          %v1506 = vpop.permute.xlu0 %1505
          %1507 = vrot.lane.b32.xlu0 %v1502, 32
          %v1508 = vpop.permute.xlu0 %1507
          %v1511 = vmul.f32 %v1468, %v1506
          %v1512 = vmul.f32 %v1470, %v1508
          %1515 = vrot.lane.b32.xlu0 %v1511, 64
          %v1516 = vpop.permute.xlu0 %1515
          %1517 = vrot.lane.b32.xlu0 %v1512, 64
          %v1518 = vpop.permute.xlu0 %1517
          %vm1521 = vcmask 259077
          %1522 = vst.msk [vmem:[%s366] sm:$0x20] %vm1521, %v1516
          %1523 = vst.msk [vmem:[%s366 + $0x8] sm:$0x20] %vm1521, %v1518
          %v1524 = vrot.slane %v1511, 5
          %v1525 = vrot.slane %v1512, 4
          %v1526 = vsel %vm782, %v1525, %v1524
          %1527 = vrot.lane.b32.xlu0 %v1526, 64
          %v1528 = vpop.permute.xlu0 %1527
          %v1529 = vsel %vm586, %v1528, 0
          %1531 = vmatprep.subr.mxu0 0.0
          %1532 = vmatpush1.xpose.msra.mxu0 %v591
          %1533 = vmatprep.subr.mxu0 0.0
          %1534 = vmatpush1.xpose.msra.mxu0 %v594
          %1535 = vmatprep.subr.mxu0 0.0
          %1536 = vmatpush1.xpose.msra.mxu0 %v597
          %1537 = vmatprep.subr.mxu0 0.0
          %1538 = vmatpush1.xpose.msra.mxu0 %v600
          %1539 = vmatprep.subr.mxu0 0.0
          %1540 = vmatpush1.xpose.msra.mxu0 %v603
          %1541 = vmatprep.subr.mxu0 0.0
          %1542 = vmatpush1.xpose.msra.mxu0 %v606
          %1543 = vmatprep.subr.mxu0 0.0
          %1544 = vmatpush1.xpose.msra.mxu0 %v609
          %1545 = vmatprep.subr.mxu0 0.0
          %1546 = vmatpush1.xpose.msra.mxu0 %v612
          %1547 = vmatprep.subr.mxu0 0.0
          %1548 = vmatpush1.xpose.msra.mxu0 %v615
          %1549 = vmatprep.subr.mxu0 0.0
          %1550 = vmatpush1.xpose.msra.mxu0 %v618
          %1551 = vmatprep.subr.mxu0 0.0
          %1552 = vmatpush1.xpose.msra.mxu0 %v621
          %1553 = vmatprep.subr.mxu0 0.0
          %1554 = vmatpush1.xpose.msra.mxu0 %v624
          %1555 = vmatprep.subr.mxu0 0.0
          %1556 = vmatpush1.xpose.msra.mxu0 %v627
          %1557 = vmatprep.subr.mxu0 0.0
          %1558 = vmatpush1.xpose.msra.mxu0 %v630
          %1559 = vmatprep.subr.mxu0 0.0
          %1560 = vmatpush1.xpose.msra.mxu0 %v633
          %1561 = vmatprep.subr.mxu0 0.0
          %1562 = vmatpush1.xpose.msra.mxu0 %v636
          %1563 = vmatprep.subr.mxu0 0.0
          %1564 = vmatpush1.xpose.msra.mxu0 0.0
          %1565 = vmatprep.subr.mxu0 0.0
          %1566 = vmatpush1.xpose.msra.mxu0 0.0
          %1567 = vmatprep.subr.mxu0 0.0
          %1568 = vmatpush1.xpose.msra.mxu0 0.0
          %1569 = vmatprep.subr.mxu0 0.0
          %1570 = vmatpush1.xpose.msra.mxu0 0.0
          %1571 = vmatprep.subr.mxu0 0.0
          %1572 = vmatpush1.xpose.msra.mxu0 0.0
          %1573 = vmatprep.subr.mxu0 0.0
          %1574 = vmatpush1.xpose.msra.mxu0 0.0
          %1575 = vmatprep.subr.mxu0 0.0
          %1576 = vmatpush1.xpose.msra.mxu0 0.0
          %1577 = vmatprep.subr.mxu0 0.0
          %1578 = vmatpush1.xpose.msra.mxu0 0.0
          %1579 = vmatprep.subr.mxu0 0.0
          %1580 = vmatpush1.xpose.msra.mxu0 0.0
          %1581 = vmatprep.subr.mxu0 0.0
          %1582 = vmatpush1.xpose.msra.mxu0 0.0
          %1583 = vmatprep.subr.mxu0 0.0
          %1584 = vmatpush1.xpose.msra.mxu0 0.0
          %1585 = vmatprep.subr.mxu0 0.0
          %1586 = vmatpush1.xpose.msra.mxu0 0.0
          %1587 = vmatprep.subr.mxu0 0.0
          %1588 = vmatpush1.xpose.msra.mxu0 0.0
          %1589 = vmatprep.subr.mxu0 0.0
          %1590 = vmatpush1.xpose.msra.mxu0 0.0
          %1591 = vmatprep.subr.mxu0 0.0
          %1592 = vmatpush1.xpose.msra.mxu0 0.0
          %1593 = vmatprep.subr.mxu0 0.0
          %1594 = vmatpush1.xpose.msra.mxu0 0.0
          %1595 = vmatprep.mubr.f32.mxu0 0.0
          %1596 = vmatmul.mubr.f32.gmra.mrb[0].mxu0 %v1529
          %v1597 = vpop.f32.mrb[0].mxu0
          %v1598 = vadd.f32 0.0, %v1597
          %v1599 = vpop.f32.mrb[0].mxu0
          %1600 = vdwg.mxu0
          %v1602 = vrot.slane %v1598, 2
          %v1603 = vrot.slane %v1598, 3
          %v1606 = vadd.f32 %v572, %v1602
          %v1607 = vadd.f32 %v577, %v1603
          %v1608 = vxor.u32 %v1606, 2147483648
          %v1609 = vxor.u32 %v1607, 2147483648
          %v1610 = vmul.f32 %v1608, 1.442695
          %v1611 = vpow.pop %v1610
          %v1612 = vmul.f32 %v1609, 1.442695
          %v1613 = vpow.pop %v1612
          %v1614 = vadd.f32 %v1611, 1.0
          %v1615 = vadd.f32 %v1613, 1.0
          %v1616 = vrcp.pop %v1614
          %v1617 = vmul.f32 1.0, %v1616
          %v1618 = vrcp.pop %v1615
          %v1619 = vmul.f32 1.0, %v1618
          %v1620 = vtanh.pop %v1606
          %v1621 = vtanh.pop %v1607
          %v1624 = vrot.slane %v1499, 7
          %v1625 = vrot.slane %v1500, 7
          %v1628 = vmul.f32 %v1617, %v1624
          %v1629 = vmul.f32 %v1619, %v1625
          %1632 = vrot.lane.b32.xlu0 %v1620, 32
          %v1633 = vpop.permute.xlu0 %1632
          %1634 = vrot.lane.b32.xlu0 %v1621, 32
          %v1635 = vpop.permute.xlu0 %1634
          %v1638 = vmul.f32 %v1617, %v1633
          %v1639 = vmul.f32 %v1619, %v1635
          %1642 = vrot.lane.b32.xlu0 %v1638, 32
          %v1643 = vpop.permute.xlu0 %1642
          %1644 = vrot.lane.b32.xlu0 %v1639, 32
          %v1645 = vpop.permute.xlu0 %1644
          %v1648 = vadd.f32 %v1628, %v1643
          %v1649 = vadd.f32 %v1629, %v1645
          %v1650 = vtanh.pop %v1648
          %v1651 = vtanh.pop %v1649
          %1654 = vrot.lane.b32.xlu0 %v1650, 32
          %v1655 = vpop.permute.xlu0 %1654
          %1656 = vrot.lane.b32.xlu0 %v1651, 32
          %v1657 = vpop.permute.xlu0 %1656
          %v1660 = vmul.f32 %v1617, %v1655
          %v1661 = vmul.f32 %v1619, %v1657
          %1664 = vrot.lane.b32.xlu0 %v1660, 64
          %v1665 = vpop.permute.xlu0 %1664
          %1666 = vrot.lane.b32.xlu0 %v1661, 64
          %v1667 = vpop.permute.xlu0 %1666
          %vm1670 = vcmask 260102
          %1671 = vst.msk [vmem:[%s366] sm:$0x40] %vm1670, %v1665
          %1672 = vst.msk [vmem:[%s366 + $0x8] sm:$0x40] %vm1670, %v1667
          %v1673 = vrot.slane %v1660, 6
          %v1674 = vrot.slane %v1661, 5
          %v1675 = vsel %vm782, %v1674, %v1673
          %1676 = vrot.lane.b32.xlu0 %v1675, 64
          %v1677 = vpop.permute.xlu0 %1676
          %v1678 = vsel %vm586, %v1677, 0
          %1680 = vmatprep.subr.mxu0 0.0
          %1681 = vmatpush1.xpose.msra.mxu0 %v591
          %1682 = vmatprep.subr.mxu0 0.0
          %1683 = vmatpush1.xpose.msra.mxu0 %v594
          %1684 = vmatprep.subr.mxu0 0.0
          %1685 = vmatpush1.xpose.msra.mxu0 %v597
          %1686 = vmatprep.subr.mxu0 0.0
          %1687 = vmatpush1.xpose.msra.mxu0 %v600
          %1688 = vmatprep.subr.mxu0 0.0
          %1689 = vmatpush1.xpose.msra.mxu0 %v603
          %1690 = vmatprep.subr.mxu0 0.0
          %1691 = vmatpush1.xpose.msra.mxu0 %v606
          %1692 = vmatprep.subr.mxu0 0.0
          %1693 = vmatpush1.xpose.msra.mxu0 %v609
          %1694 = vmatprep.subr.mxu0 0.0
          %1695 = vmatpush1.xpose.msra.mxu0 %v612
          %1696 = vmatprep.subr.mxu0 0.0
          %1697 = vmatpush1.xpose.msra.mxu0 %v615
          %1698 = vmatprep.subr.mxu0 0.0
          %1699 = vmatpush1.xpose.msra.mxu0 %v618
          %1700 = vmatprep.subr.mxu0 0.0
          %1701 = vmatpush1.xpose.msra.mxu0 %v621
          %1702 = vmatprep.subr.mxu0 0.0
          %1703 = vmatpush1.xpose.msra.mxu0 %v624
          %1704 = vmatprep.subr.mxu0 0.0
          %1705 = vmatpush1.xpose.msra.mxu0 %v627
          %1706 = vmatprep.subr.mxu0 0.0
          %1707 = vmatpush1.xpose.msra.mxu0 %v630
          %1708 = vmatprep.subr.mxu0 0.0
          %1709 = vmatpush1.xpose.msra.mxu0 %v633
          %1710 = vmatprep.subr.mxu0 0.0
          %1711 = vmatpush1.xpose.msra.mxu0 %v636
          %1712 = vmatprep.subr.mxu0 0.0
          %1713 = vmatpush1.xpose.msra.mxu0 0.0
          %1714 = vmatprep.subr.mxu0 0.0
          %1715 = vmatpush1.xpose.msra.mxu0 0.0
          %1716 = vmatprep.subr.mxu0 0.0
          %1717 = vmatpush1.xpose.msra.mxu0 0.0
          %1718 = vmatprep.subr.mxu0 0.0
          %1719 = vmatpush1.xpose.msra.mxu0 0.0
          %1720 = vmatprep.subr.mxu0 0.0
          %1721 = vmatpush1.xpose.msra.mxu0 0.0
          %1722 = vmatprep.subr.mxu0 0.0
          %1723 = vmatpush1.xpose.msra.mxu0 0.0
          %1724 = vmatprep.subr.mxu0 0.0
          %1725 = vmatpush1.xpose.msra.mxu0 0.0
          %1726 = vmatprep.subr.mxu0 0.0
          %1727 = vmatpush1.xpose.msra.mxu0 0.0
          %1728 = vmatprep.subr.mxu0 0.0
          %1729 = vmatpush1.xpose.msra.mxu0 0.0
          %1730 = vmatprep.subr.mxu0 0.0
          %1731 = vmatpush1.xpose.msra.mxu0 0.0
          %1732 = vmatprep.subr.mxu0 0.0
          %1733 = vmatpush1.xpose.msra.mxu0 0.0
          %1734 = vmatprep.subr.mxu0 0.0
          %1735 = vmatpush1.xpose.msra.mxu0 0.0
          %1736 = vmatprep.subr.mxu0 0.0
          %1737 = vmatpush1.xpose.msra.mxu0 0.0
          %1738 = vmatprep.subr.mxu0 0.0
          %1739 = vmatpush1.xpose.msra.mxu0 0.0
          %1740 = vmatprep.subr.mxu0 0.0
          %1741 = vmatpush1.xpose.msra.mxu0 0.0
          %1742 = vmatprep.subr.mxu0 0.0
          %1743 = vmatpush1.xpose.msra.mxu0 0.0
          %1744 = vmatprep.mubr.f32.mxu0 0.0
          %1745 = vmatmul.mubr.f32.gmra.mrb[0].mxu0 %v1678
          %v1746 = vpop.f32.mrb[0].mxu0
          %v1747 = vadd.f32 0.0, %v1746
          %v1748 = vpop.f32.mrb[0].mxu0
          %1749 = vdwg.mxu0
          %v1751 = vrot.slane %v1747, 1
          %v1752 = vrot.slane %v1747, 2
          %v1755 = vadd.f32 %v572, %v1751
          %v1756 = vadd.f32 %v577, %v1752
          %v1757 = vxor.u32 %v1755, 2147483648
          %v1758 = vxor.u32 %v1756, 2147483648
          %v1759 = vmul.f32 %v1757, 1.442695
          %v1760 = vpow.pop %v1759
          %v1761 = vmul.f32 %v1758, 1.442695
          %v1762 = vpow.pop %v1761
          %v1763 = vadd.f32 %v1760, 1.0
          %v1764 = vadd.f32 %v1762, 1.0
          %v1765 = vrcp.pop %v1763
          %v1766 = vmul.f32 1.0, %v1765
          %v1767 = vrcp.pop %v1764
          %v1768 = vmul.f32 1.0, %v1767
          %v1769 = vtanh.pop %v1755
          %v1770 = vtanh.pop %v1756
          %v1773 = vrot.slane %v1648, 7
          %v1774 = vrot.slane %v1649, 7
          %v1777 = vmul.f32 %v1766, %v1773
          %v1778 = vmul.f32 %v1768, %v1774
          %1781 = vrot.lane.b32.xlu0 %v1769, 32
          %v1782 = vpop.permute.xlu0 %1781
          %1783 = vrot.lane.b32.xlu0 %v1770, 32
          %v1784 = vpop.permute.xlu0 %1783
          %v1787 = vmul.f32 %v1766, %v1782
          %v1788 = vmul.f32 %v1768, %v1784
          %1791 = vrot.lane.b32.xlu0 %v1787, 32
          %v1792 = vpop.permute.xlu0 %1791
          %1793 = vrot.lane.b32.xlu0 %v1788, 32
          %v1794 = vpop.permute.xlu0 %1793
          %v1797 = vadd.f32 %v1777, %v1792
          %v1798 = vadd.f32 %v1778, %v1794
          %v1799 = vtanh.pop %v1797
          %v1800 = vtanh.pop %v1798
          %1803 = vrot.lane.b32.xlu0 %v1799, 32
          %v1804 = vpop.permute.xlu0 %1803
          %1805 = vrot.lane.b32.xlu0 %v1800, 32
          %v1806 = vpop.permute.xlu0 %1805
          %v1809 = vmul.f32 %v1766, %v1804
          %v1810 = vmul.f32 %v1768, %v1806
          %1813 = vrot.lane.b32.xlu0 %v1809, 64
          %v1814 = vpop.permute.xlu0 %1813
          %1815 = vrot.lane.b32.xlu0 %v1810, 64
          %v1816 = vpop.permute.xlu0 %1815
          %vm1819 = vcmask 261127
          %1820 = vst.msk [vmem:[%s366] sm:$0x80] %vm1819, %v1814
          %1821 = vst.msk [vmem:[%s366 + $0x8] sm:$0x80] %vm1819, %v1816
          %v1822 = vrot.slane %v1810, 7
          %1823 = vrot.lane.b32.xlu0 %v1822, 64
          %v1824 = vpop.permute.xlu0 %1823
          %1826 = vst.msk [vmem:[%s373 - $0x7] sm:$0x80] %vm1819, %v1814
          %1827 = vst.msk [vmem:[%s373 + $0x1] sm:$0x1] %vm778, %v1824
          %v1830 = vrot.slane %v1798, 7
          %1831 = vrot.lane.b32.xlu0 %v1797, 96
          %v1832 = vpop.permute.xlu0 %1831
          %1833 = vrot.lane.b32.xlu0 %v1830, 96
          %v1834 = vpop.permute.xlu0 %1833
          %1837 = vst.msk [vmem:[%s380 - $0x7] sm:$0x80] %vm1819, %v1832
          %1838 = vst.msk [vmem:[%s380 + $0x1] sm:$0x1] %vm778, %v1834
        $region82: #{tpu_custom_call.1} parent=69 // pred_fallthru
          _
        %p1839 = scmp.eq.s32.totalorder %s28, 1
        // Predicated region
        $region83: #{tpu_custom_call.1} parent=69 // pred_check
          %p1840 = pneg %p1839
        $region84: #{tpu_custom_call.1} parent=69 // pred_check_branch
          %1842 = sbr.rel (%p1840) target = $region86
        $region85: #{tpu_custom_call.1} parent=69 // pred_region
          %v1843 = vld [vmem:[%s373] sm:$0x3]
          %v1844 = vld [vmem:[%s380] sm:$0x3]
          %vm1845 = vcmask 261120
          %v1847 = vsel %vm1845, %v1843, 0
          %v1850 = vsel %vm1845, %v425, 0
          %v1853 = vsel %vm1845, %v426, 0
          %v1856 = vsel %vm1845, %v427, 0
          %v1859 = vsel %vm1845, %v428, 0
          %v1862 = vsel %vm1845, %v429, 0
          %v1865 = vsel %vm1845, %v430, 0
          %v1868 = vsel %vm1845, %v431, 0
          %v1871 = vsel %vm1845, %v432, 0
          %v1874 = vsel %vm1845, %v433, 0
          %v1877 = vsel %vm1845, %v434, 0
          %v1880 = vsel %vm1845, %v435, 0
          %v1883 = vsel %vm1845, %v436, 0
          %v1886 = vsel %vm1845, %v437, 0
          %v1889 = vsel %vm1845, %v438, 0
          %v1892 = vsel %vm1845, %v439, 0
          %v1895 = vsel %vm1845, %v440, 0
          %1897 = vmatprep.subr.mxu0 0.0
          %1898 = vmatpush1.xpose.msra.mxu0 %v1850
          %1899 = vmatprep.subr.mxu0 0.0
          %1900 = vmatpush1.xpose.msra.mxu0 %v1853
          %1901 = vmatprep.subr.mxu0 0.0
          %1902 = vmatpush1.xpose.msra.mxu0 %v1856
          %1903 = vmatprep.subr.mxu0 0.0
          %1904 = vmatpush1.xpose.msra.mxu0 %v1859
          %1905 = vmatprep.subr.mxu0 0.0
          %1906 = vmatpush1.xpose.msra.mxu0 %v1862
          %1907 = vmatprep.subr.mxu0 0.0
          %1908 = vmatpush1.xpose.msra.mxu0 %v1865
          %1909 = vmatprep.subr.mxu0 0.0
          %1910 = vmatpush1.xpose.msra.mxu0 %v1868
          %1911 = vmatprep.subr.mxu0 0.0
          %1912 = vmatpush1.xpose.msra.mxu0 %v1871
          %1913 = vmatprep.subr.mxu0 0.0
          %1914 = vmatpush1.xpose.msra.mxu0 %v1874
          %1915 = vmatprep.subr.mxu0 0.0
          %1916 = vmatpush1.xpose.msra.mxu0 %v1877
          %1917 = vmatprep.subr.mxu0 0.0
          %1918 = vmatpush1.xpose.msra.mxu0 %v1880
          %1919 = vmatprep.subr.mxu0 0.0
          %1920 = vmatpush1.xpose.msra.mxu0 %v1883
          %1921 = vmatprep.subr.mxu0 0.0
          %1922 = vmatpush1.xpose.msra.mxu0 %v1886
          %1923 = vmatprep.subr.mxu0 0.0
          %1924 = vmatpush1.xpose.msra.mxu0 %v1889
          %1925 = vmatprep.subr.mxu0 0.0
          %1926 = vmatpush1.xpose.msra.mxu0 %v1892
          %1927 = vmatprep.subr.mxu0 0.0
          %1928 = vmatpush1.xpose.msra.mxu0 %v1895
          %1929 = vmatprep.subr.mxu0 0.0
          %1930 = vmatpush1.xpose.msra.mxu0 0.0
          %1931 = vmatprep.subr.mxu0 0.0
          %1932 = vmatpush1.xpose.msra.mxu0 0.0
          %1933 = vmatprep.subr.mxu0 0.0
          %1934 = vmatpush1.xpose.msra.mxu0 0.0
          %1935 = vmatprep.subr.mxu0 0.0
          %1936 = vmatpush1.xpose.msra.mxu0 0.0
          %1937 = vmatprep.subr.mxu0 0.0
          %1938 = vmatpush1.xpose.msra.mxu0 0.0
          %1939 = vmatprep.subr.mxu0 0.0
          %1940 = vmatpush1.xpose.msra.mxu0 0.0
          %1941 = vmatprep.subr.mxu0 0.0
          %1942 = vmatpush1.xpose.msra.mxu0 0.0
          %1943 = vmatprep.subr.mxu0 0.0
          %1944 = vmatpush1.xpose.msra.mxu0 0.0
          %1945 = vmatprep.subr.mxu0 0.0
          %1946 = vmatpush1.xpose.msra.mxu0 0.0
          %1947 = vmatprep.subr.mxu0 0.0
          %1948 = vmatpush1.xpose.msra.mxu0 0.0
          %1949 = vmatprep.subr.mxu0 0.0
          %1950 = vmatpush1.xpose.msra.mxu0 0.0
          %1951 = vmatprep.subr.mxu0 0.0
          %1952 = vmatpush1.xpose.msra.mxu0 0.0
          %1953 = vmatprep.subr.mxu0 0.0
          %1954 = vmatpush1.xpose.msra.mxu0 0.0
          %1955 = vmatprep.subr.mxu0 0.0
          %1956 = vmatpush1.xpose.msra.mxu0 0.0
          %1957 = vmatprep.subr.mxu0 0.0
          %1958 = vmatpush1.xpose.msra.mxu0 0.0
          %1959 = vmatprep.subr.mxu0 0.0
          %1960 = vmatpush1.xpose.msra.mxu0 0.0
          %1961 = vmatprep.mubr.f32.mxu0 0.0
          %1962 = vmatmul.mubr.f32.gmra.mrb[0].mxu0 %v1847
          %v1963 = vpop.f32.mrb[0].mxu0
          %v1964 = vadd.f32 0.0, %v1963
          %v1965 = vpop.f32.mrb[0].mxu0
          %1966 = vdwg.mxu0
          %v1968 = vrot.slane %v1964, 1
          %v1969 = vrot.slane %v1964, 2
          %v1972 = vadd.f32 %v572, %v1968
          %v1973 = vadd.f32 %v577, %v1969
          %v1974 = vxor.u32 %v1972, 2147483648
          %v1975 = vxor.u32 %v1973, 2147483648
          %v1976 = vmul.f32 %v1974, 1.442695
          %v1977 = vpow.pop %v1976
          %v1978 = vmul.f32 %v1975, 1.442695
          %v1979 = vpow.pop %v1978
          %v1980 = vadd.f32 %v1977, 1.0
          %v1981 = vadd.f32 %v1979, 1.0
          %v1982 = vrcp.pop %v1980
          %v1983 = vmul.f32 1.0, %v1982
          %v1984 = vrcp.pop %v1981
          %v1985 = vmul.f32 1.0, %v1984
          %v1986 = vtanh.pop %v1972
          %v1987 = vtanh.pop %v1973
          %v1989 = vrot.slane %v1844, 1
          %v1990 = vrot.slane %v1844, 2
          %1991 = vrot.lane.b32.xlu0 %v1989, 32
          %v1992 = vpop.permute.xlu0 %1991
          %1993 = vrot.lane.b32.xlu0 %v1990, 32
          %v1994 = vpop.permute.xlu0 %1993
          %v1997 = vmul.f32 %v1983, %v1992
          %v1998 = vmul.f32 %v1985, %v1994
          %2001 = vrot.lane.b32.xlu0 %v1986, 32
          %v2002 = vpop.permute.xlu0 %2001
          %2003 = vrot.lane.b32.xlu0 %v1987, 32
          %v2004 = vpop.permute.xlu0 %2003
          %v2007 = vmul.f32 %v1983, %v2002
          %v2008 = vmul.f32 %v1985, %v2004
          %2011 = vrot.lane.b32.xlu0 %v2007, 32
          %v2012 = vpop.permute.xlu0 %2011
          %2013 = vrot.lane.b32.xlu0 %v2008, 32
          %v2014 = vpop.permute.xlu0 %2013
          %v2017 = vadd.f32 %v1997, %v2012
          %v2018 = vadd.f32 %v1998, %v2014
          %v2019 = vtanh.pop %v2017
          %v2020 = vtanh.pop %v2018
          %2023 = vrot.lane.b32.xlu0 %v2019, 32
          %v2024 = vpop.permute.xlu0 %2023
          %2025 = vrot.lane.b32.xlu0 %v2020, 32
          %v2026 = vpop.permute.xlu0 %2025
          %v2029 = vmul.f32 %v1983, %v2024
          %v2030 = vmul.f32 %v1985, %v2026
          %2033 = vrot.lane.b32.xlu0 %v2029, 64
          %v2034 = vpop.permute.xlu0 %2033
          %2035 = vrot.lane.b32.xlu0 %v2030, 64
          %v2036 = vpop.permute.xlu0 %2035
          %vm2039 = vcmask 261127
          %2040 = vst.msk [vmem:[%s366] sm:$0x80] %vm2039, %v2034
          %2041 = vst.msk [vmem:[%s366 + $0x8] sm:$0x80] %vm2039, %v2036
          %v2042 = vrot.slane %v2029, 7
          %v2043 = vrot.slane %v2030, 6
          %vm2044 = vcmask 1041409
          %v2045 = vsel %vm2044, %v2043, %v2042
          %2046 = vrot.lane.b32.xlu0 %v2045, 64
          %v2047 = vpop.permute.xlu0 %2046
          %v2048 = vsel %vm1845, %v2047, 0
          %2050 = vmatprep.subr.mxu0 0.0
          %2051 = vmatpush1.xpose.msra.mxu0 %v1850
          %2052 = vmatprep.subr.mxu0 0.0
          %2053 = vmatpush1.xpose.msra.mxu0 %v1853
          %2054 = vmatprep.subr.mxu0 0.0
          %2055 = vmatpush1.xpose.msra.mxu0 %v1856
          %2056 = vmatprep.subr.mxu0 0.0
          %2057 = vmatpush1.xpose.msra.mxu0 %v1859
          %2058 = vmatprep.subr.mxu0 0.0
          %2059 = vmatpush1.xpose.msra.mxu0 %v1862
          %2060 = vmatprep.subr.mxu0 0.0
          %2061 = vmatpush1.xpose.msra.mxu0 %v1865
          %2062 = vmatprep.subr.mxu0 0.0
          %2063 = vmatpush1.xpose.msra.mxu0 %v1868
          %2064 = vmatprep.subr.mxu0 0.0
          %2065 = vmatpush1.xpose.msra.mxu0 %v1871
          %2066 = vmatprep.subr.mxu0 0.0
          %2067 = vmatpush1.xpose.msra.mxu0 %v1874
          %2068 = vmatprep.subr.mxu0 0.0
          %2069 = vmatpush1.xpose.msra.mxu0 %v1877
          %2070 = vmatprep.subr.mxu0 0.0
          %2071 = vmatpush1.xpose.msra.mxu0 %v1880
          %2072 = vmatprep.subr.mxu0 0.0
          %2073 = vmatpush1.xpose.msra.mxu0 %v1883
          %2074 = vmatprep.subr.mxu0 0.0
          %2075 = vmatpush1.xpose.msra.mxu0 %v1886
          %2076 = vmatprep.subr.mxu0 0.0
          %2077 = vmatpush1.xpose.msra.mxu0 %v1889
          %2078 = vmatprep.subr.mxu0 0.0
          %2079 = vmatpush1.xpose.msra.mxu0 %v1892
          %2080 = vmatprep.subr.mxu0 0.0
          %2081 = vmatpush1.xpose.msra.mxu0 %v1895
          %2082 = vmatprep.subr.mxu0 0.0
          %2083 = vmatpush1.xpose.msra.mxu0 0.0
          %2084 = vmatprep.subr.mxu0 0.0
          %2085 = vmatpush1.xpose.msra.mxu0 0.0
          %2086 = vmatprep.subr.mxu0 0.0
          %2087 = vmatpush1.xpose.msra.mxu0 0.0
          %2088 = vmatprep.subr.mxu0 0.0
          %2089 = vmatpush1.xpose.msra.mxu0 0.0
          %2090 = vmatprep.subr.mxu0 0.0
          %2091 = vmatpush1.xpose.msra.mxu0 0.0
          %2092 = vmatprep.subr.mxu0 0.0
          %2093 = vmatpush1.xpose.msra.mxu0 0.0
          %2094 = vmatprep.subr.mxu0 0.0
          %2095 = vmatpush1.xpose.msra.mxu0 0.0
          %2096 = vmatprep.subr.mxu0 0.0
          %2097 = vmatpush1.xpose.msra.mxu0 0.0
          %2098 = vmatprep.subr.mxu0 0.0
          %2099 = vmatpush1.xpose.msra.mxu0 0.0
          %2100 = vmatprep.subr.mxu0 0.0
          %2101 = vmatpush1.xpose.msra.mxu0 0.0
          %2102 = vmatprep.subr.mxu0 0.0
          %2103 = vmatpush1.xpose.msra.mxu0 0.0
          %2104 = vmatprep.subr.mxu0 0.0
          %2105 = vmatpush1.xpose.msra.mxu0 0.0
          %2106 = vmatprep.subr.mxu0 0.0
          %2107 = vmatpush1.xpose.msra.mxu0 0.0
          %2108 = vmatprep.subr.mxu0 0.0
          %2109 = vmatpush1.xpose.msra.mxu0 0.0
          %2110 = vmatprep.subr.mxu0 0.0
          %2111 = vmatpush1.xpose.msra.mxu0 0.0
          %2112 = vmatprep.subr.mxu0 0.0
          %2113 = vmatpush1.xpose.msra.mxu0 0.0
          %2114 = vmatprep.mubr.f32.mxu0 0.0
          %2115 = vmatmul.mubr.f32.gmra.mrb[0].mxu0 %v2048
          %v2116 = vpop.f32.mrb[0].mxu0
          %v2117 = vadd.f32 0.0, %v2116
          %v2118 = vpop.f32.mrb[0].mxu0
          %2119 = vdwg.mxu0
          %v2121 = vrot.slane %v2117, 2
          %v2122 = vrot.slane %v2117, 3
          %v2125 = vadd.f32 %v572, %v2121
          %v2126 = vadd.f32 %v577, %v2122
          %v2127 = vxor.u32 %v2125, 2147483648
          %v2128 = vxor.u32 %v2126, 2147483648
          %v2129 = vmul.f32 %v2127, 1.442695
          %v2130 = vpow.pop %v2129
          %v2131 = vmul.f32 %v2128, 1.442695
          %v2132 = vpow.pop %v2131
          %v2133 = vadd.f32 %v2130, 1.0
          %v2134 = vadd.f32 %v2132, 1.0
          %v2135 = vrcp.pop %v2133
          %v2136 = vmul.f32 1.0, %v2135
          %v2137 = vrcp.pop %v2134
          %v2138 = vmul.f32 1.0, %v2137
          %v2139 = vtanh.pop %v2125
          %v2140 = vtanh.pop %v2126
          %v2143 = vrot.slane %v2017, 1
          %v2144 = vrot.slane %v2018, 1
          %v2147 = vmul.f32 %v2136, %v2143
          %v2148 = vmul.f32 %v2138, %v2144
          %2151 = vrot.lane.b32.xlu0 %v2139, 32
          %v2152 = vpop.permute.xlu0 %2151
          %2153 = vrot.lane.b32.xlu0 %v2140, 32
          %v2154 = vpop.permute.xlu0 %2153
          %v2157 = vmul.f32 %v2136, %v2152
          %v2158 = vmul.f32 %v2138, %v2154
          %2161 = vrot.lane.b32.xlu0 %v2157, 32
          %v2162 = vpop.permute.xlu0 %2161
          %2163 = vrot.lane.b32.xlu0 %v2158, 32
          %v2164 = vpop.permute.xlu0 %2163
          %v2167 = vadd.f32 %v2147, %v2162
          %v2168 = vadd.f32 %v2148, %v2164
          %v2169 = vtanh.pop %v2167
          %v2170 = vtanh.pop %v2168
          %2173 = vrot.lane.b32.xlu0 %v2169, 32
          %v2174 = vpop.permute.xlu0 %2173
          %2175 = vrot.lane.b32.xlu0 %v2170, 32
          %v2176 = vpop.permute.xlu0 %2175
          %v2179 = vmul.f32 %v2136, %v2174
          %v2180 = vmul.f32 %v2138, %v2176
          %2183 = vrot.lane.b32.xlu0 %v2179, 64
          %v2184 = vpop.permute.xlu0 %2183
          %2185 = vrot.lane.b32.xlu0 %v2180, 64
          %v2186 = vpop.permute.xlu0 %2185
          %vm2189 = vcmask 260102
          %2190 = vst.msk [vmem:[%s366] sm:$0x40] %vm2189, %v2184
          %2191 = vst.msk [vmem:[%s366 + $0x8] sm:$0x40] %vm2189, %v2186
          %v2192 = vrot.slane %v2179, 6
          %v2193 = vrot.slane %v2180, 5
          %v2194 = vsel %vm2044, %v2193, %v2192
          %2195 = vrot.lane.b32.xlu0 %v2194, 64
          %v2196 = vpop.permute.xlu0 %2195
          %v2197 = vsel %vm1845, %v2196, 0
          %2199 = vmatprep.subr.mxu0 0.0
          %2200 = vmatpush1.xpose.msra.mxu0 %v1850
          %2201 = vmatprep.subr.mxu0 0.0
          %2202 = vmatpush1.xpose.msra.mxu0 %v1853
          %2203 = vmatprep.subr.mxu0 0.0
          %2204 = vmatpush1.xpose.msra.mxu0 %v1856
          %2205 = vmatprep.subr.mxu0 0.0
          %2206 = vmatpush1.xpose.msra.mxu0 %v1859
          %2207 = vmatprep.subr.mxu0 0.0
          %2208 = vmatpush1.xpose.msra.mxu0 %v1862
          %2209 = vmatprep.subr.mxu0 0.0
          %2210 = vmatpush1.xpose.msra.mxu0 %v1865
          %2211 = vmatprep.subr.mxu0 0.0
          %2212 = vmatpush1.xpose.msra.mxu0 %v1868
          %2213 = vmatprep.subr.mxu0 0.0
          %2214 = vmatpush1.xpose.msra.mxu0 %v1871
          %2215 = vmatprep.subr.mxu0 0.0
          %2216 = vmatpush1.xpose.msra.mxu0 %v1874
          %2217 = vmatprep.subr.mxu0 0.0
          %2218 = vmatpush1.xpose.msra.mxu0 %v1877
          %2219 = vmatprep.subr.mxu0 0.0
          %2220 = vmatpush1.xpose.msra.mxu0 %v1880
          %2221 = vmatprep.subr.mxu0 0.0
          %2222 = vmatpush1.xpose.msra.mxu0 %v1883
          %2223 = vmatprep.subr.mxu0 0.0
          %2224 = vmatpush1.xpose.msra.mxu0 %v1886
          %2225 = vmatprep.subr.mxu0 0.0
          %2226 = vmatpush1.xpose.msra.mxu0 %v1889
          %2227 = vmatprep.subr.mxu0 0.0
          %2228 = vmatpush1.xpose.msra.mxu0 %v1892
          %2229 = vmatprep.subr.mxu0 0.0
          %2230 = vmatpush1.xpose.msra.mxu0 %v1895
          %2231 = vmatprep.subr.mxu0 0.0
          %2232 = vmatpush1.xpose.msra.mxu0 0.0
          %2233 = vmatprep.subr.mxu0 0.0
          %2234 = vmatpush1.xpose.msra.mxu0 0.0
          %2235 = vmatprep.subr.mxu0 0.0
          %2236 = vmatpush1.xpose.msra.mxu0 0.0
          %2237 = vmatprep.subr.mxu0 0.0
          %2238 = vmatpush1.xpose.msra.mxu0 0.0
          %2239 = vmatprep.subr.mxu0 0.0
          %2240 = vmatpush1.xpose.msra.mxu0 0.0
          %2241 = vmatprep.subr.mxu0 0.0
          %2242 = vmatpush1.xpose.msra.mxu0 0.0
          %2243 = vmatprep.subr.mxu0 0.0
          %2244 = vmatpush1.xpose.msra.mxu0 0.0
          %2245 = vmatprep.subr.mxu0 0.0
          %2246 = vmatpush1.xpose.msra.mxu0 0.0
          %2247 = vmatprep.subr.mxu0 0.0
          %2248 = vmatpush1.xpose.msra.mxu0 0.0
          %2249 = vmatprep.subr.mxu0 0.0
          %2250 = vmatpush1.xpose.msra.mxu0 0.0
          %2251 = vmatprep.subr.mxu0 0.0
          %2252 = vmatpush1.xpose.msra.mxu0 0.0
          %2253 = vmatprep.subr.mxu0 0.0
          %2254 = vmatpush1.xpose.msra.mxu0 0.0
          %2255 = vmatprep.subr.mxu0 0.0
          %2256 = vmatpush1.xpose.msra.mxu0 0.0
          %2257 = vmatprep.subr.mxu0 0.0
          %2258 = vmatpush1.xpose.msra.mxu0 0.0
          %2259 = vmatprep.subr.mxu0 0.0
          %2260 = vmatpush1.xpose.msra.mxu0 0.0
          %2261 = vmatprep.subr.mxu0 0.0
          %2262 = vmatpush1.xpose.msra.mxu0 0.0
          %2263 = vmatprep.mubr.f32.mxu0 0.0
          %2264 = vmatmul.mubr.f32.gmra.mrb[0].mxu0 %v2197
          %v2265 = vpop.f32.mrb[0].mxu0
          %v2266 = vadd.f32 0.0, %v2265
          %v2267 = vpop.f32.mrb[0].mxu0
          %2268 = vdwg.mxu0
          %v2270 = vrot.slane %v2266, 3
          %v2271 = vrot.slane %v2266, 4
          %v2274 = vadd.f32 %v572, %v2270
          %v2275 = vadd.f32 %v577, %v2271
          %v2276 = vxor.u32 %v2274, 2147483648
          %v2277 = vxor.u32 %v2275, 2147483648
          %v2278 = vmul.f32 %v2276, 1.442695
          %v2279 = vpow.pop %v2278
          %v2280 = vmul.f32 %v2277, 1.442695
          %v2281 = vpow.pop %v2280
          %v2282 = vadd.f32 %v2279, 1.0
          %v2283 = vadd.f32 %v2281, 1.0
          %v2284 = vrcp.pop %v2282
          %v2285 = vmul.f32 1.0, %v2284
          %v2286 = vrcp.pop %v2283
          %v2287 = vmul.f32 1.0, %v2286
          %v2288 = vtanh.pop %v2274
          %v2289 = vtanh.pop %v2275
          %v2292 = vrot.slane %v2167, 1
          %v2293 = vrot.slane %v2168, 1
          %v2296 = vmul.f32 %v2285, %v2292
          %v2297 = vmul.f32 %v2287, %v2293
          %2300 = vrot.lane.b32.xlu0 %v2288, 32
          %v2301 = vpop.permute.xlu0 %2300
          %2302 = vrot.lane.b32.xlu0 %v2289, 32
          %v2303 = vpop.permute.xlu0 %2302
          %v2306 = vmul.f32 %v2285, %v2301
          %v2307 = vmul.f32 %v2287, %v2303
          %2310 = vrot.lane.b32.xlu0 %v2306, 32
          %v2311 = vpop.permute.xlu0 %2310
          %2312 = vrot.lane.b32.xlu0 %v2307, 32
          %v2313 = vpop.permute.xlu0 %2312
          %v2316 = vadd.f32 %v2296, %v2311
          %v2317 = vadd.f32 %v2297, %v2313
          %v2318 = vtanh.pop %v2316
          %v2319 = vtanh.pop %v2317
          %2322 = vrot.lane.b32.xlu0 %v2318, 32
          %v2323 = vpop.permute.xlu0 %2322
          %2324 = vrot.lane.b32.xlu0 %v2319, 32
          %v2325 = vpop.permute.xlu0 %2324
          %v2328 = vmul.f32 %v2285, %v2323
          %v2329 = vmul.f32 %v2287, %v2325
          %2332 = vrot.lane.b32.xlu0 %v2328, 64
          %v2333 = vpop.permute.xlu0 %2332
          %2334 = vrot.lane.b32.xlu0 %v2329, 64
          %v2335 = vpop.permute.xlu0 %2334
          %vm2338 = vcmask 259077
          %2339 = vst.msk [vmem:[%s366] sm:$0x20] %vm2338, %v2333
          %2340 = vst.msk [vmem:[%s366 + $0x8] sm:$0x20] %vm2338, %v2335
          %v2341 = vrot.slane %v2328, 5
          %v2342 = vrot.slane %v2329, 4
          %v2343 = vsel %vm2044, %v2342, %v2341
          %2344 = vrot.lane.b32.xlu0 %v2343, 64
          %v2345 = vpop.permute.xlu0 %2344
          %v2346 = vsel %vm1845, %v2345, 0
          %2348 = vmatprep.subr.mxu0 0.0
          %2349 = vmatpush1.xpose.msra.mxu0 %v1850
          %2350 = vmatprep.subr.mxu0 0.0
          %2351 = vmatpush1.xpose.msra.mxu0 %v1853
          %2352 = vmatprep.subr.mxu0 0.0
          %2353 = vmatpush1.xpose.msra.mxu0 %v1856
          %2354 = vmatprep.subr.mxu0 0.0
          %2355 = vmatpush1.xpose.msra.mxu0 %v1859
          %2356 = vmatprep.subr.mxu0 0.0
          %2357 = vmatpush1.xpose.msra.mxu0 %v1862
          %2358 = vmatprep.subr.mxu0 0.0
          %2359 = vmatpush1.xpose.msra.mxu0 %v1865
          %2360 = vmatprep.subr.mxu0 0.0
          %2361 = vmatpush1.xpose.msra.mxu0 %v1868
          %2362 = vmatprep.subr.mxu0 0.0
          %2363 = vmatpush1.xpose.msra.mxu0 %v1871
          %2364 = vmatprep.subr.mxu0 0.0
          %2365 = vmatpush1.xpose.msra.mxu0 %v1874
          %2366 = vmatprep.subr.mxu0 0.0
          %2367 = vmatpush1.xpose.msra.mxu0 %v1877
          %2368 = vmatprep.subr.mxu0 0.0
          %2369 = vmatpush1.xpose.msra.mxu0 %v1880
          %2370 = vmatprep.subr.mxu0 0.0
          %2371 = vmatpush1.xpose.msra.mxu0 %v1883
          %2372 = vmatprep.subr.mxu0 0.0
          %2373 = vmatpush1.xpose.msra.mxu0 %v1886
          %2374 = vmatprep.subr.mxu0 0.0
          %2375 = vmatpush1.xpose.msra.mxu0 %v1889
          %2376 = vmatprep.subr.mxu0 0.0
          %2377 = vmatpush1.xpose.msra.mxu0 %v1892
          %2378 = vmatprep.subr.mxu0 0.0
          %2379 = vmatpush1.xpose.msra.mxu0 %v1895
          %2380 = vmatprep.subr.mxu0 0.0
          %2381 = vmatpush1.xpose.msra.mxu0 0.0
          %2382 = vmatprep.subr.mxu0 0.0
          %2383 = vmatpush1.xpose.msra.mxu0 0.0
          %2384 = vmatprep.subr.mxu0 0.0
          %2385 = vmatpush1.xpose.msra.mxu0 0.0
          %2386 = vmatprep.subr.mxu0 0.0
          %2387 = vmatpush1.xpose.msra.mxu0 0.0
          %2388 = vmatprep.subr.mxu0 0.0
          %2389 = vmatpush1.xpose.msra.mxu0 0.0
          %2390 = vmatprep.subr.mxu0 0.0
          %2391 = vmatpush1.xpose.msra.mxu0 0.0
          %2392 = vmatprep.subr.mxu0 0.0
          %2393 = vmatpush1.xpose.msra.mxu0 0.0
          %2394 = vmatprep.subr.mxu0 0.0
          %2395 = vmatpush1.xpose.msra.mxu0 0.0
          %2396 = vmatprep.subr.mxu0 0.0
          %2397 = vmatpush1.xpose.msra.mxu0 0.0
          %2398 = vmatprep.subr.mxu0 0.0
          %2399 = vmatpush1.xpose.msra.mxu0 0.0
          %2400 = vmatprep.subr.mxu0 0.0
          %2401 = vmatpush1.xpose.msra.mxu0 0.0
          %2402 = vmatprep.subr.mxu0 0.0
          %2403 = vmatpush1.xpose.msra.mxu0 0.0
          %2404 = vmatprep.subr.mxu0 0.0
          %2405 = vmatpush1.xpose.msra.mxu0 0.0
          %2406 = vmatprep.subr.mxu0 0.0
          %2407 = vmatpush1.xpose.msra.mxu0 0.0
          %2408 = vmatprep.subr.mxu0 0.0
          %2409 = vmatpush1.xpose.msra.mxu0 0.0
          %2410 = vmatprep.subr.mxu0 0.0
          %2411 = vmatpush1.xpose.msra.mxu0 0.0
          %2412 = vmatprep.mubr.f32.mxu0 0.0
          %2413 = vmatmul.mubr.f32.gmra.mrb[0].mxu0 %v2346
          %v2414 = vpop.f32.mrb[0].mxu0
          %v2415 = vadd.f32 0.0, %v2414
          %v2416 = vpop.f32.mrb[0].mxu0
          %2417 = vdwg.mxu0
          %v2419 = vrot.slane %v2415, 4
          %v2420 = vrot.slane %v2415, 5
          %v2423 = vadd.f32 %v572, %v2419
          %v2424 = vadd.f32 %v577, %v2420
          %v2425 = vxor.u32 %v2423, 2147483648
          %v2426 = vxor.u32 %v2424, 2147483648
          %v2427 = vmul.f32 %v2425, 1.442695
          %v2428 = vpow.pop %v2427
          %v2429 = vmul.f32 %v2426, 1.442695
          %v2430 = vpow.pop %v2429
          %v2431 = vadd.f32 %v2428, 1.0
          %v2432 = vadd.f32 %v2430, 1.0
          %v2433 = vrcp.pop %v2431
          %v2434 = vmul.f32 1.0, %v2433
          %v2435 = vrcp.pop %v2432
          %v2436 = vmul.f32 1.0, %v2435
          %v2437 = vtanh.pop %v2423
          %v2438 = vtanh.pop %v2424
          %v2441 = vrot.slane %v2316, 1
          %v2442 = vrot.slane %v2317, 1
          %v2445 = vmul.f32 %v2434, %v2441
          %v2446 = vmul.f32 %v2436, %v2442
          %2449 = vrot.lane.b32.xlu0 %v2437, 32
          %v2450 = vpop.permute.xlu0 %2449
          %2451 = vrot.lane.b32.xlu0 %v2438, 32
          %v2452 = vpop.permute.xlu0 %2451
          %v2455 = vmul.f32 %v2434, %v2450
          %v2456 = vmul.f32 %v2436, %v2452
          %2459 = vrot.lane.b32.xlu0 %v2455, 32
          %v2460 = vpop.permute.xlu0 %2459
          %2461 = vrot.lane.b32.xlu0 %v2456, 32
          %v2462 = vpop.permute.xlu0 %2461
          %v2465 = vadd.f32 %v2445, %v2460
          %v2466 = vadd.f32 %v2446, %v2462
          %v2467 = vtanh.pop %v2465
          %v2468 = vtanh.pop %v2466
          %2471 = vrot.lane.b32.xlu0 %v2467, 32
          %v2472 = vpop.permute.xlu0 %2471
          %2473 = vrot.lane.b32.xlu0 %v2468, 32
          %v2474 = vpop.permute.xlu0 %2473
          %v2477 = vmul.f32 %v2434, %v2472
          %v2478 = vmul.f32 %v2436, %v2474
          %2481 = vrot.lane.b32.xlu0 %v2477, 64
          %v2482 = vpop.permute.xlu0 %2481
          %2483 = vrot.lane.b32.xlu0 %v2478, 64
          %v2484 = vpop.permute.xlu0 %2483
          %vm2487 = vcmask 258052
          %2488 = vst.msk [vmem:[%s366] sm:$0x10] %vm2487, %v2482
          %2489 = vst.msk [vmem:[%s366 + $0x8] sm:$0x10] %vm2487, %v2484
          %v2490 = vrot.slane %v2477, 4
          %v2491 = vrot.slane %v2478, 3
          %v2492 = vsel %vm2044, %v2491, %v2490
          %2493 = vrot.lane.b32.xlu0 %v2492, 64
          %v2494 = vpop.permute.xlu0 %2493
          %v2495 = vsel %vm1845, %v2494, 0
          %2497 = vmatprep.subr.mxu0 0.0
          %2498 = vmatpush1.xpose.msra.mxu0 %v1850
          %2499 = vmatprep.subr.mxu0 0.0
          %2500 = vmatpush1.xpose.msra.mxu0 %v1853
          %2501 = vmatprep.subr.mxu0 0.0
          %2502 = vmatpush1.xpose.msra.mxu0 %v1856
          %2503 = vmatprep.subr.mxu0 0.0
          %2504 = vmatpush1.xpose.msra.mxu0 %v1859
          %2505 = vmatprep.subr.mxu0 0.0
          %2506 = vmatpush1.xpose.msra.mxu0 %v1862
          %2507 = vmatprep.subr.mxu0 0.0
          %2508 = vmatpush1.xpose.msra.mxu0 %v1865
          %2509 = vmatprep.subr.mxu0 0.0
          %2510 = vmatpush1.xpose.msra.mxu0 %v1868
          %2511 = vmatprep.subr.mxu0 0.0
          %2512 = vmatpush1.xpose.msra.mxu0 %v1871
          %2513 = vmatprep.subr.mxu0 0.0
          %2514 = vmatpush1.xpose.msra.mxu0 %v1874
          %2515 = vmatprep.subr.mxu0 0.0
          %2516 = vmatpush1.xpose.msra.mxu0 %v1877
          %2517 = vmatprep.subr.mxu0 0.0
          %2518 = vmatpush1.xpose.msra.mxu0 %v1880
          %2519 = vmatprep.subr.mxu0 0.0
          %2520 = vmatpush1.xpose.msra.mxu0 %v1883
          %2521 = vmatprep.subr.mxu0 0.0
          %2522 = vmatpush1.xpose.msra.mxu0 %v1886
          %2523 = vmatprep.subr.mxu0 0.0
          %2524 = vmatpush1.xpose.msra.mxu0 %v1889
          %2525 = vmatprep.subr.mxu0 0.0
          %2526 = vmatpush1.xpose.msra.mxu0 %v1892
          %2527 = vmatprep.subr.mxu0 0.0
          %2528 = vmatpush1.xpose.msra.mxu0 %v1895
          %2529 = vmatprep.subr.mxu0 0.0
          %2530 = vmatpush1.xpose.msra.mxu0 0.0
          %2531 = vmatprep.subr.mxu0 0.0
          %2532 = vmatpush1.xpose.msra.mxu0 0.0
          %2533 = vmatprep.subr.mxu0 0.0
          %2534 = vmatpush1.xpose.msra.mxu0 0.0
          %2535 = vmatprep.subr.mxu0 0.0
          %2536 = vmatpush1.xpose.msra.mxu0 0.0
          %2537 = vmatprep.subr.mxu0 0.0
          %2538 = vmatpush1.xpose.msra.mxu0 0.0
          %2539 = vmatprep.subr.mxu0 0.0
          %2540 = vmatpush1.xpose.msra.mxu0 0.0
          %2541 = vmatprep.subr.mxu0 0.0
          %2542 = vmatpush1.xpose.msra.mxu0 0.0
          %2543 = vmatprep.subr.mxu0 0.0
          %2544 = vmatpush1.xpose.msra.mxu0 0.0
          %2545 = vmatprep.subr.mxu0 0.0
          %2546 = vmatpush1.xpose.msra.mxu0 0.0
          %2547 = vmatprep.subr.mxu0 0.0
          %2548 = vmatpush1.xpose.msra.mxu0 0.0
          %2549 = vmatprep.subr.mxu0 0.0
          %2550 = vmatpush1.xpose.msra.mxu0 0.0
          %2551 = vmatprep.subr.mxu0 0.0
          %2552 = vmatpush1.xpose.msra.mxu0 0.0
          %2553 = vmatprep.subr.mxu0 0.0
          %2554 = vmatpush1.xpose.msra.mxu0 0.0
          %2555 = vmatprep.subr.mxu0 0.0
          %2556 = vmatpush1.xpose.msra.mxu0 0.0
          %2557 = vmatprep.subr.mxu0 0.0
          %2558 = vmatpush1.xpose.msra.mxu0 0.0
          %2559 = vmatprep.subr.mxu0 0.0
          %2560 = vmatpush1.xpose.msra.mxu0 0.0
          %2561 = vmatprep.mubr.f32.mxu0 0.0
          %2562 = vmatmul.mubr.f32.gmra.mrb[0].mxu0 %v2495
          %v2563 = vpop.f32.mrb[0].mxu0
          %v2564 = vadd.f32 0.0, %v2563
          %v2565 = vpop.f32.mrb[0].mxu0
          %2566 = vdwg.mxu0
          %v2568 = vrot.slane %v2564, 5
          %v2569 = vrot.slane %v2564, 6
          %v2572 = vadd.f32 %v572, %v2568
          %v2573 = vadd.f32 %v577, %v2569
          %v2574 = vxor.u32 %v2572, 2147483648
          %v2575 = vxor.u32 %v2573, 2147483648
          %v2576 = vmul.f32 %v2574, 1.442695
          %v2577 = vpow.pop %v2576
          %v2578 = vmul.f32 %v2575, 1.442695
          %v2579 = vpow.pop %v2578
          %v2580 = vadd.f32 %v2577, 1.0
          %v2581 = vadd.f32 %v2579, 1.0
          %v2582 = vrcp.pop %v2580
          %v2583 = vmul.f32 1.0, %v2582
          %v2584 = vrcp.pop %v2581
          %v2585 = vmul.f32 1.0, %v2584
          %v2586 = vtanh.pop %v2572
          %v2587 = vtanh.pop %v2573
          %v2590 = vrot.slane %v2465, 1
          %v2591 = vrot.slane %v2466, 1
          %v2594 = vmul.f32 %v2583, %v2590
          %v2595 = vmul.f32 %v2585, %v2591
          %2598 = vrot.lane.b32.xlu0 %v2586, 32
          %v2599 = vpop.permute.xlu0 %2598
          %2600 = vrot.lane.b32.xlu0 %v2587, 32
          %v2601 = vpop.permute.xlu0 %2600
          %v2604 = vmul.f32 %v2583, %v2599
          %v2605 = vmul.f32 %v2585, %v2601
          %2608 = vrot.lane.b32.xlu0 %v2604, 32
          %v2609 = vpop.permute.xlu0 %2608
          %2610 = vrot.lane.b32.xlu0 %v2605, 32
          %v2611 = vpop.permute.xlu0 %2610
          %v2614 = vadd.f32 %v2594, %v2609
          %v2615 = vadd.f32 %v2595, %v2611
          %v2616 = vtanh.pop %v2614
          %v2617 = vtanh.pop %v2615
          %2620 = vrot.lane.b32.xlu0 %v2616, 32
          %v2621 = vpop.permute.xlu0 %2620
          %2622 = vrot.lane.b32.xlu0 %v2617, 32
          %v2623 = vpop.permute.xlu0 %2622
          %v2626 = vmul.f32 %v2583, %v2621
          %v2627 = vmul.f32 %v2585, %v2623
          %2630 = vrot.lane.b32.xlu0 %v2626, 64
          %v2631 = vpop.permute.xlu0 %2630
          %2632 = vrot.lane.b32.xlu0 %v2627, 64
          %v2633 = vpop.permute.xlu0 %2632
          %vm2636 = vcmask 257027
          %2637 = vst.msk [vmem:[%s366] sm:$0x8] %vm2636, %v2631
          %2638 = vst.msk [vmem:[%s366 + $0x8] sm:$0x8] %vm2636, %v2633
          %v2639 = vrot.slane %v2626, 3
          %v2640 = vrot.slane %v2627, 2
          %v2641 = vsel %vm2044, %v2640, %v2639
          %2642 = vrot.lane.b32.xlu0 %v2641, 64
          %v2643 = vpop.permute.xlu0 %2642
          %v2644 = vsel %vm1845, %v2643, 0
          %2646 = vmatprep.subr.mxu0 0.0
          %2647 = vmatpush1.xpose.msra.mxu0 %v1850
          %2648 = vmatprep.subr.mxu0 0.0
          %2649 = vmatpush1.xpose.msra.mxu0 %v1853
          %2650 = vmatprep.subr.mxu0 0.0
          %2651 = vmatpush1.xpose.msra.mxu0 %v1856
          %2652 = vmatprep.subr.mxu0 0.0
          %2653 = vmatpush1.xpose.msra.mxu0 %v1859
          %2654 = vmatprep.subr.mxu0 0.0
          %2655 = vmatpush1.xpose.msra.mxu0 %v1862
          %2656 = vmatprep.subr.mxu0 0.0
          %2657 = vmatpush1.xpose.msra.mxu0 %v1865
          %2658 = vmatprep.subr.mxu0 0.0
          %2659 = vmatpush1.xpose.msra.mxu0 %v1868
          %2660 = vmatprep.subr.mxu0 0.0
          %2661 = vmatpush1.xpose.msra.mxu0 %v1871
          %2662 = vmatprep.subr.mxu0 0.0
          %2663 = vmatpush1.xpose.msra.mxu0 %v1874
          %2664 = vmatprep.subr.mxu0 0.0
          %2665 = vmatpush1.xpose.msra.mxu0 %v1877
          %2666 = vmatprep.subr.mxu0 0.0
          %2667 = vmatpush1.xpose.msra.mxu0 %v1880
          %2668 = vmatprep.subr.mxu0 0.0
          %2669 = vmatpush1.xpose.msra.mxu0 %v1883
          %2670 = vmatprep.subr.mxu0 0.0
          %2671 = vmatpush1.xpose.msra.mxu0 %v1886
          %2672 = vmatprep.subr.mxu0 0.0
          %2673 = vmatpush1.xpose.msra.mxu0 %v1889
          %2674 = vmatprep.subr.mxu0 0.0
          %2675 = vmatpush1.xpose.msra.mxu0 %v1892
          %2676 = vmatprep.subr.mxu0 0.0
          %2677 = vmatpush1.xpose.msra.mxu0 %v1895
          %2678 = vmatprep.subr.mxu0 0.0
          %2679 = vmatpush1.xpose.msra.mxu0 0.0
          %2680 = vmatprep.subr.mxu0 0.0
          %2681 = vmatpush1.xpose.msra.mxu0 0.0
          %2682 = vmatprep.subr.mxu0 0.0
          %2683 = vmatpush1.xpose.msra.mxu0 0.0
          %2684 = vmatprep.subr.mxu0 0.0
          %2685 = vmatpush1.xpose.msra.mxu0 0.0
          %2686 = vmatprep.subr.mxu0 0.0
          %2687 = vmatpush1.xpose.msra.mxu0 0.0
          %2688 = vmatprep.subr.mxu0 0.0
          %2689 = vmatpush1.xpose.msra.mxu0 0.0
          %2690 = vmatprep.subr.mxu0 0.0
          %2691 = vmatpush1.xpose.msra.mxu0 0.0
          %2692 = vmatprep.subr.mxu0 0.0
          %2693 = vmatpush1.xpose.msra.mxu0 0.0
          %2694 = vmatprep.subr.mxu0 0.0
          %2695 = vmatpush1.xpose.msra.mxu0 0.0
          %2696 = vmatprep.subr.mxu0 0.0
          %2697 = vmatpush1.xpose.msra.mxu0 0.0
          %2698 = vmatprep.subr.mxu0 0.0
          %2699 = vmatpush1.xpose.msra.mxu0 0.0
          %2700 = vmatprep.subr.mxu0 0.0
          %2701 = vmatpush1.xpose.msra.mxu0 0.0
          %2702 = vmatprep.subr.mxu0 0.0
          %2703 = vmatpush1.xpose.msra.mxu0 0.0
          %2704 = vmatprep.subr.mxu0 0.0
          %2705 = vmatpush1.xpose.msra.mxu0 0.0
          %2706 = vmatprep.subr.mxu0 0.0
          %2707 = vmatpush1.xpose.msra.mxu0 0.0
          %2708 = vmatprep.subr.mxu0 0.0
          %2709 = vmatpush1.xpose.msra.mxu0 0.0
          %2710 = vmatprep.mubr.f32.mxu0 0.0
          %2711 = vmatmul.mubr.f32.gmra.mrb[0].mxu0 %v2644
          %v2712 = vpop.f32.mrb[0].mxu0
          %v2713 = vadd.f32 0.0, %v2712
          %v2714 = vpop.f32.mrb[0].mxu0
          %2715 = vdwg.mxu0
          %v2717 = vrot.slane %v2713, 6
          %v2718 = vrot.slane %v2713, 7
          %v2721 = vadd.f32 %v572, %v2717
          %v2722 = vadd.f32 %v577, %v2718
          %v2723 = vxor.u32 %v2721, 2147483648
          %v2724 = vxor.u32 %v2722, 2147483648
          %v2725 = vmul.f32 %v2723, 1.442695
          %v2726 = vpow.pop %v2725
          %v2727 = vmul.f32 %v2724, 1.442695
          %v2728 = vpow.pop %v2727
          %v2729 = vadd.f32 %v2726, 1.0
          %v2730 = vadd.f32 %v2728, 1.0
          %v2731 = vrcp.pop %v2729
          %v2732 = vmul.f32 1.0, %v2731
          %v2733 = vrcp.pop %v2730
          %v2734 = vmul.f32 1.0, %v2733
          %v2735 = vtanh.pop %v2721
          %v2736 = vtanh.pop %v2722
          %v2739 = vrot.slane %v2614, 1
          %v2740 = vrot.slane %v2615, 1
          %v2743 = vmul.f32 %v2732, %v2739
          %v2744 = vmul.f32 %v2734, %v2740
          %2747 = vrot.lane.b32.xlu0 %v2735, 32
          %v2748 = vpop.permute.xlu0 %2747
          %2749 = vrot.lane.b32.xlu0 %v2736, 32
          %v2750 = vpop.permute.xlu0 %2749
          %v2753 = vmul.f32 %v2732, %v2748
          %v2754 = vmul.f32 %v2734, %v2750
          %2757 = vrot.lane.b32.xlu0 %v2753, 32
          %v2758 = vpop.permute.xlu0 %2757
          %2759 = vrot.lane.b32.xlu0 %v2754, 32
          %v2760 = vpop.permute.xlu0 %2759
          %v2763 = vadd.f32 %v2743, %v2758
          %v2764 = vadd.f32 %v2744, %v2760
          %v2765 = vtanh.pop %v2763
          %v2766 = vtanh.pop %v2764
          %2769 = vrot.lane.b32.xlu0 %v2765, 32
          %v2770 = vpop.permute.xlu0 %2769
          %2771 = vrot.lane.b32.xlu0 %v2766, 32
          %v2772 = vpop.permute.xlu0 %2771
          %v2775 = vmul.f32 %v2732, %v2770
          %v2776 = vmul.f32 %v2734, %v2772
          %2779 = vrot.lane.b32.xlu0 %v2775, 64
          %v2780 = vpop.permute.xlu0 %2779
          %2781 = vrot.lane.b32.xlu0 %v2776, 64
          %v2782 = vpop.permute.xlu0 %2781
          %vm2785 = vcmask 256002
          %2786 = vst.msk [vmem:[%s366] sm:$0x4] %vm2785, %v2780
          %2787 = vst.msk [vmem:[%s366 + $0x8] sm:$0x4] %vm2785, %v2782
          %v2788 = vrot.slane %v2775, 2
          %v2789 = vrot.slane %v2776, 1
          %v2790 = vsel %vm2044, %v2789, %v2788
          %2791 = vrot.lane.b32.xlu0 %v2790, 64
          %v2792 = vpop.permute.xlu0 %2791
          %v2793 = vsel %vm1845, %v2792, 0
          %2795 = vmatprep.subr.mxu0 0.0
          %2796 = vmatpush1.xpose.msra.mxu0 %v1850
          %2797 = vmatprep.subr.mxu0 0.0
          %2798 = vmatpush1.xpose.msra.mxu0 %v1853
          %2799 = vmatprep.subr.mxu0 0.0
          %2800 = vmatpush1.xpose.msra.mxu0 %v1856
          %2801 = vmatprep.subr.mxu0 0.0
          %2802 = vmatpush1.xpose.msra.mxu0 %v1859
          %2803 = vmatprep.subr.mxu0 0.0
          %2804 = vmatpush1.xpose.msra.mxu0 %v1862
          %2805 = vmatprep.subr.mxu0 0.0
          %2806 = vmatpush1.xpose.msra.mxu0 %v1865
          %2807 = vmatprep.subr.mxu0 0.0
          %2808 = vmatpush1.xpose.msra.mxu0 %v1868
          %2809 = vmatprep.subr.mxu0 0.0
          %2810 = vmatpush1.xpose.msra.mxu0 %v1871
          %2811 = vmatprep.subr.mxu0 0.0
          %2812 = vmatpush1.xpose.msra.mxu0 %v1874
          %2813 = vmatprep.subr.mxu0 0.0
          %2814 = vmatpush1.xpose.msra.mxu0 %v1877
          %2815 = vmatprep.subr.mxu0 0.0
          %2816 = vmatpush1.xpose.msra.mxu0 %v1880
          %2817 = vmatprep.subr.mxu0 0.0
          %2818 = vmatpush1.xpose.msra.mxu0 %v1883
          %2819 = vmatprep.subr.mxu0 0.0
          %2820 = vmatpush1.xpose.msra.mxu0 %v1886
          %2821 = vmatprep.subr.mxu0 0.0
          %2822 = vmatpush1.xpose.msra.mxu0 %v1889
          %2823 = vmatprep.subr.mxu0 0.0
          %2824 = vmatpush1.xpose.msra.mxu0 %v1892
          %2825 = vmatprep.subr.mxu0 0.0
          %2826 = vmatpush1.xpose.msra.mxu0 %v1895
          %2827 = vmatprep.subr.mxu0 0.0
          %2828 = vmatpush1.xpose.msra.mxu0 0.0
          %2829 = vmatprep.subr.mxu0 0.0
          %2830 = vmatpush1.xpose.msra.mxu0 0.0
          %2831 = vmatprep.subr.mxu0 0.0
          %2832 = vmatpush1.xpose.msra.mxu0 0.0
          %2833 = vmatprep.subr.mxu0 0.0
          %2834 = vmatpush1.xpose.msra.mxu0 0.0
          %2835 = vmatprep.subr.mxu0 0.0
          %2836 = vmatpush1.xpose.msra.mxu0 0.0
          %2837 = vmatprep.subr.mxu0 0.0
          %2838 = vmatpush1.xpose.msra.mxu0 0.0
          %2839 = vmatprep.subr.mxu0 0.0
          %2840 = vmatpush1.xpose.msra.mxu0 0.0
          %2841 = vmatprep.subr.mxu0 0.0
          %2842 = vmatpush1.xpose.msra.mxu0 0.0
          %2843 = vmatprep.subr.mxu0 0.0
          %2844 = vmatpush1.xpose.msra.mxu0 0.0
          %2845 = vmatprep.subr.mxu0 0.0
          %2846 = vmatpush1.xpose.msra.mxu0 0.0
          %2847 = vmatprep.subr.mxu0 0.0
          %2848 = vmatpush1.xpose.msra.mxu0 0.0
          %2849 = vmatprep.subr.mxu0 0.0
          %2850 = vmatpush1.xpose.msra.mxu0 0.0
          %2851 = vmatprep.subr.mxu0 0.0
          %2852 = vmatpush1.xpose.msra.mxu0 0.0
          %2853 = vmatprep.subr.mxu0 0.0
          %2854 = vmatpush1.xpose.msra.mxu0 0.0
          %2855 = vmatprep.subr.mxu0 0.0
          %2856 = vmatpush1.xpose.msra.mxu0 0.0
          %2857 = vmatprep.subr.mxu0 0.0
          %2858 = vmatpush1.xpose.msra.mxu0 0.0
          %2859 = vmatprep.mubr.f32.mxu0 0.0
          %2860 = vmatmul.mubr.f32.gmra.mrb[0].mxu0 %v2793
          %v2861 = vpop.f32.mrb[0].mxu0
          %v2862 = vadd.f32 0.0, %v2861
          %v2863 = vpop.f32.mrb[0].mxu0
          %2864 = vdwg.mxu0
          %v2866 = vrot.slane %v2862, 7
          %v2869 = vadd.f32 %v572, %v2866
          %v2870 = vadd.f32 %v577, %v2862
          %v2871 = vxor.u32 %v2869, 2147483648
          %v2872 = vxor.u32 %v2870, 2147483648
          %v2873 = vmul.f32 %v2871, 1.442695
          %v2874 = vpow.pop %v2873
          %v2875 = vmul.f32 %v2872, 1.442695
          %v2876 = vpow.pop %v2875
          %v2877 = vadd.f32 %v2874, 1.0
          %v2878 = vadd.f32 %v2876, 1.0
          %v2879 = vrcp.pop %v2877
          %v2880 = vmul.f32 1.0, %v2879
          %v2881 = vrcp.pop %v2878
          %v2882 = vmul.f32 1.0, %v2881
          %v2883 = vtanh.pop %v2869
          %v2884 = vtanh.pop %v2870
          %v2887 = vrot.slane %v2763, 1
          %v2888 = vrot.slane %v2764, 1
          %v2891 = vmul.f32 %v2880, %v2887
          %v2892 = vmul.f32 %v2882, %v2888
          %2895 = vrot.lane.b32.xlu0 %v2883, 32
          %v2896 = vpop.permute.xlu0 %2895
          %2897 = vrot.lane.b32.xlu0 %v2884, 32
          %v2898 = vpop.permute.xlu0 %2897
          %v2901 = vmul.f32 %v2880, %v2896
          %v2902 = vmul.f32 %v2882, %v2898
          %2905 = vrot.lane.b32.xlu0 %v2901, 32
          %v2906 = vpop.permute.xlu0 %2905
          %2907 = vrot.lane.b32.xlu0 %v2902, 32
          %v2908 = vpop.permute.xlu0 %2907
          %v2911 = vadd.f32 %v2891, %v2906
          %v2912 = vadd.f32 %v2892, %v2908
          %v2913 = vtanh.pop %v2911
          %v2914 = vtanh.pop %v2912
          %2917 = vrot.lane.b32.xlu0 %v2913, 32
          %v2918 = vpop.permute.xlu0 %2917
          %2919 = vrot.lane.b32.xlu0 %v2914, 32
          %v2920 = vpop.permute.xlu0 %2919
          %v2923 = vmul.f32 %v2880, %v2918
          %v2924 = vmul.f32 %v2882, %v2920
          %2927 = vrot.lane.b32.xlu0 %v2923, 64
          %v2928 = vpop.permute.xlu0 %2927
          %2929 = vrot.lane.b32.xlu0 %v2924, 64
          %v2930 = vpop.permute.xlu0 %2929
          %vm2933 = vcmask 254977
          %2934 = vst.msk [vmem:[%s366] sm:$0x2] %vm2933, %v2928
          %2935 = vst.msk [vmem:[%s366 + $0x8] sm:$0x2] %vm2933, %v2930
          %v2936 = vrot.slane %v2923, 1
          %v2937 = vsel %vm2044, %v2924, %v2936
          %2938 = vrot.lane.b32.xlu0 %v2937, 64
          %v2939 = vpop.permute.xlu0 %2938
          %v2940 = vsel %vm1845, %v2939, 0
          %2942 = vmatprep.subr.mxu0 0.0
          %2943 = vmatpush1.xpose.msra.mxu0 %v1850
          %2944 = vmatprep.subr.mxu0 0.0
          %2945 = vmatpush1.xpose.msra.mxu0 %v1853
          %2946 = vmatprep.subr.mxu0 0.0
          %2947 = vmatpush1.xpose.msra.mxu0 %v1856
          %2948 = vmatprep.subr.mxu0 0.0
          %2949 = vmatpush1.xpose.msra.mxu0 %v1859
          %2950 = vmatprep.subr.mxu0 0.0
          %2951 = vmatpush1.xpose.msra.mxu0 %v1862
          %2952 = vmatprep.subr.mxu0 0.0
          %2953 = vmatpush1.xpose.msra.mxu0 %v1865
          %2954 = vmatprep.subr.mxu0 0.0
          %2955 = vmatpush1.xpose.msra.mxu0 %v1868
          %2956 = vmatprep.subr.mxu0 0.0
          %2957 = vmatpush1.xpose.msra.mxu0 %v1871
          %2958 = vmatprep.subr.mxu0 0.0
          %2959 = vmatpush1.xpose.msra.mxu0 %v1874
          %2960 = vmatprep.subr.mxu0 0.0
          %2961 = vmatpush1.xpose.msra.mxu0 %v1877
          %2962 = vmatprep.subr.mxu0 0.0
          %2963 = vmatpush1.xpose.msra.mxu0 %v1880
          %2964 = vmatprep.subr.mxu0 0.0
          %2965 = vmatpush1.xpose.msra.mxu0 %v1883
          %2966 = vmatprep.subr.mxu0 0.0
          %2967 = vmatpush1.xpose.msra.mxu0 %v1886
          %2968 = vmatprep.subr.mxu0 0.0
          %2969 = vmatpush1.xpose.msra.mxu0 %v1889
          %2970 = vmatprep.subr.mxu0 0.0
          %2971 = vmatpush1.xpose.msra.mxu0 %v1892
          %2972 = vmatprep.subr.mxu0 0.0
          %2973 = vmatpush1.xpose.msra.mxu0 %v1895
          %2974 = vmatprep.subr.mxu0 0.0
          %2975 = vmatpush1.xpose.msra.mxu0 0.0
          %2976 = vmatprep.subr.mxu0 0.0
          %2977 = vmatpush1.xpose.msra.mxu0 0.0
          %2978 = vmatprep.subr.mxu0 0.0
          %2979 = vmatpush1.xpose.msra.mxu0 0.0
          %2980 = vmatprep.subr.mxu0 0.0
          %2981 = vmatpush1.xpose.msra.mxu0 0.0
          %2982 = vmatprep.subr.mxu0 0.0
          %2983 = vmatpush1.xpose.msra.mxu0 0.0
          %2984 = vmatprep.subr.mxu0 0.0
          %2985 = vmatpush1.xpose.msra.mxu0 0.0
          %2986 = vmatprep.subr.mxu0 0.0
          %2987 = vmatpush1.xpose.msra.mxu0 0.0
          %2988 = vmatprep.subr.mxu0 0.0
          %2989 = vmatpush1.xpose.msra.mxu0 0.0
          %2990 = vmatprep.subr.mxu0 0.0
          %2991 = vmatpush1.xpose.msra.mxu0 0.0
          %2992 = vmatprep.subr.mxu0 0.0
          %2993 = vmatpush1.xpose.msra.mxu0 0.0
          %2994 = vmatprep.subr.mxu0 0.0
          %2995 = vmatpush1.xpose.msra.mxu0 0.0
          %2996 = vmatprep.subr.mxu0 0.0
          %2997 = vmatpush1.xpose.msra.mxu0 0.0
          %2998 = vmatprep.subr.mxu0 0.0
          %2999 = vmatpush1.xpose.msra.mxu0 0.0
          %3000 = vmatprep.subr.mxu0 0.0
          %3001 = vmatpush1.xpose.msra.mxu0 0.0
          %3002 = vmatprep.subr.mxu0 0.0
          %3003 = vmatpush1.xpose.msra.mxu0 0.0
          %3004 = vmatprep.subr.mxu0 0.0
          %3005 = vmatpush1.xpose.msra.mxu0 0.0
          %3006 = vmatprep.mubr.f32.mxu0 0.0
          %3007 = vmatmul.mubr.f32.gmra.mrb[0].mxu0 %v2940
          %v3008 = vpop.f32.mrb[0].mxu0
          %v3009 = vadd.f32 0.0, %v3008
          %v3010 = vpop.f32.mrb[0].mxu0
          %3011 = vdwg.mxu0
          %v3013 = vrot.slane %v3009, 1
          %v3016 = vadd.f32 %v572, %v3009
          %v3017 = vadd.f32 %v577, %v3013
          %v3018 = vxor.u32 %v3016, 2147483648
          %v3019 = vxor.u32 %v3017, 2147483648
          %v3020 = vmul.f32 %v3018, 1.442695
          %v3021 = vpow.pop %v3020
          %v3022 = vmul.f32 %v3019, 1.442695
          %v3023 = vpow.pop %v3022
          %v3024 = vadd.f32 %v3021, 1.0
          %v3025 = vadd.f32 %v3023, 1.0
          %v3026 = vrcp.pop %v3024
          %v3027 = vmul.f32 1.0, %v3026
          %v3028 = vrcp.pop %v3025
          %v3029 = vmul.f32 1.0, %v3028
          %v3030 = vtanh.pop %v3016
          %v3031 = vtanh.pop %v3017
          %v3034 = vrot.slane %v2911, 1
          %v3035 = vrot.slane %v2912, 1
          %v3038 = vmul.f32 %v3027, %v3034
          %v3039 = vmul.f32 %v3029, %v3035
          %3042 = vrot.lane.b32.xlu0 %v3030, 32
          %v3043 = vpop.permute.xlu0 %3042
          %3044 = vrot.lane.b32.xlu0 %v3031, 32
          %v3045 = vpop.permute.xlu0 %3044
          %v3048 = vmul.f32 %v3027, %v3043
          %v3049 = vmul.f32 %v3029, %v3045
          %3052 = vrot.lane.b32.xlu0 %v3048, 32
          %v3053 = vpop.permute.xlu0 %3052
          %3054 = vrot.lane.b32.xlu0 %v3049, 32
          %v3055 = vpop.permute.xlu0 %3054
          %v3058 = vadd.f32 %v3038, %v3053
          %v3059 = vadd.f32 %v3039, %v3055
          %v3060 = vtanh.pop %v3058
          %v3061 = vtanh.pop %v3059
          %3064 = vrot.lane.b32.xlu0 %v3060, 32
          %v3065 = vpop.permute.xlu0 %3064
          %3066 = vrot.lane.b32.xlu0 %v3061, 32
          %v3067 = vpop.permute.xlu0 %3066
          %v3070 = vmul.f32 %v3027, %v3065
          %v3071 = vmul.f32 %v3029, %v3067
          %3074 = vrot.lane.b32.xlu0 %v3070, 64
          %v3075 = vpop.permute.xlu0 %3074
          %3076 = vrot.lane.b32.xlu0 %v3071, 64
          %v3077 = vpop.permute.xlu0 %3076
          %vm3080 = vcmask 253952
          %3081 = vst.msk [vmem:[%s366] sm:$0x1] %vm3080, %v3075
          %3082 = vst.msk [vmem:[%s366 + $0x8] sm:$0x1] %vm3080, %v3077
          %v3083 = vrot.slane %v3071, 7
          %v3084 = vsel %vm2044, %v3083, %v3070
          %3085 = vrot.lane.b32.xlu0 %v3084, 64
          %v3086 = vpop.permute.xlu0 %3085
          %vm3088 = vcmask 254976
          %3089 = vst.msk [vmem:[%s373] sm:$0x3] %vm3088, %v3086
          %v3092 = vrot.slane %v3059, 7
          %v3093 = vsel %vm2044, %v3092, %v3058
          %3094 = vrot.lane.b32.xlu0 %v3093, 96
          %v3095 = vpop.permute.xlu0 %3094
          %3097 = vst.msk [vmem:[%s380] sm:$0x3] %vm3088, %v3095
        $region86: #{tpu_custom_call.1} parent=69 // pred_fallthru
          _
        %s3098 = sand.u32 %s166, 1
        %s3099 = scalar_lea.sflag [#allocation4], %s3098
        %s3100 = sand.u32 %s166, 1
        %s3101 = smul.addr %s3100, 16
        %s3102 = scalar_lea.vmem [#allocation3], %s3101
        %s3103 = sand.u32 %s24, 1
        %s3104 = scalar_lea.sflag [#allocation6], %s3103
        %s3105 = sand.u32 %s192, 1
        %s3106 = smul.addr %s3105, 2
        %s3107 = scalar_lea.vmem [#allocation5], %s3106
        %s3108 = sand.u32 %s24, 1
        %s3109 = scalar_lea.sflag [#allocation6], %s3108
        %s3110 = sand.u32 %s218, 1
        %s3111 = smul.addr %s3110, 2
        %s3112 = scalar_lea.vmem [#allocation7], %s3111
        // Predicated region
        $region87: #{tpu_custom_call.1} parent=69 // pred_check
          %p3113 = pneg %p176
        $region88: #{tpu_custom_call.1} parent=69 // pred_check_branch
          %3115 = sbr.rel (%p3113) target = $region90
        $region89: #{tpu_custom_call.1} parent=69 // pred_region
          %s3116 = smul.u32 %s29, 2
          %s3117 = ssub.s32 1, %s3116
          %s3118 = smul.u32 %s28, %s3117
          %s3119 = sadd.s32 %s29, %s3118
          %s3121 = ssub.s32 256, 256
          %3122 = vsyncadd %s3099, %s3121
          %s3123 = smul.addr %s28, 4
          %s3124 = sadd.s32 %s3119, %s3123
          %s3125 = smul.addr %s3124, 128
          %s3126 = scalar_lea.hbm %s4, %s3125
          %s3127 = sshll.u32 %s3102, 4
          %s3128 = int_to_ptr.vmem [resolvable:$true] %s3127
          %3133 = dma.vmem_to_hbm [thread:$0]  %s3128, 256, %s3126, %s3099, 128, 256, 8
        $region90: #{tpu_custom_call.1} parent=69 // pred_fallthru
          _
        // Predicated region
        $region91: #{tpu_custom_call.1} parent=69 // pred_check
          %p3134 = pneg %p202
        $region92: #{tpu_custom_call.1} parent=69 // pred_check_branch
          %3136 = sbr.rel (%p3134) target = $region94
        $region93: #{tpu_custom_call.1} parent=69 // pred_region
          %s3138 = ssub.s32 32, 32
          %3139 = vsyncadd %s3104, %s3138
          %s3140 = smul.addr %s28, 32
          %s3141 = scalar_lea.hbm %s5, %s3140
          %s3143 = sshll.u32 %s3107, 4
          %s3144 = int_to_ptr.vmem [resolvable:$true] %s3143
          %3146 = dma.vmem_to_hbm [thread:$0]  %s3144, 32, %s3141, %s3104
        $region94: #{tpu_custom_call.1} parent=69 // pred_fallthru
          _
        // Predicated region
        $region95: #{tpu_custom_call.1} parent=69 // pred_check
          %p3147 = pneg %p228
        $region96: #{tpu_custom_call.1} parent=69 // pred_check_branch
          %3149 = sbr.rel (%p3147) target = $region98
        $region97: #{tpu_custom_call.1} parent=69 // pred_region
          %s3151 = ssub.s32 32, 32
          %3152 = vsyncadd %s3109, %s3151
          %s3153 = smul.addr %s28, 32
          %s3154 = scalar_lea.hbm %s6, %s3153
          %s3156 = sshll.u32 %s3112, 4
          %s3157 = int_to_ptr.vmem [resolvable:$true] %s3156
          %3159 = dma.vmem_to_hbm [thread:$0]  %s3157, 32, %s3154, %s3109
        $region98: #{tpu_custom_call.1} parent=69 // pred_fallthru
          _
      $region70: #{tpu_custom_call.1} parent=5 // pred_fallthru
        _
      %p3160 = scmp.le.s32.totalorder 2, %s19
      // Predicated region
      $region99: #{tpu_custom_call.1} parent=5 // pred_check
        %p3161 = pneg %p3160
      $region100: #{tpu_custom_call.1} parent=5 // pred_check_branch
        %3163 = sbr.rel (%p3161) target = $region102
      $region101: #{tpu_custom_call.1} parent=5 // pred_region
        %s3164 = ssub.s32 %s19, 2
        // Predicated region
        $region103: #{tpu_custom_call.1} parent=101 // pred_check
          %p3165 = pneg %p182
        $region104: #{tpu_custom_call.1} parent=101 // pred_check_branch
          %3167 = sbr.rel (%p3165) target = $region106
        $region105: #{tpu_custom_call.1} parent=101 // pred_region
          %s3168 = sand.u32 %s167, 1
          %s3169 = scalar_lea.sflag [#allocation4], %s3168
          %s3170 = sand.u32 %s167, 1
          %s3171 = smul.addr %s3170, 16
          %s3172 = scalar_lea.vmem [#allocation3], %s3171
          %3173 = dma.done %s3169, 256
        $region106: #{tpu_custom_call.1} parent=101 // pred_fallthru
          _
        // Predicated region
        $region107: #{tpu_custom_call.1} parent=101 // pred_check
          %p3174 = pneg %p208
        $region108: #{tpu_custom_call.1} parent=101 // pred_check_branch
          %3176 = sbr.rel (%p3174) target = $region110
        $region109: #{tpu_custom_call.1} parent=101 // pred_region
          %s3177 = sand.u32 %s25, 1
          %s3178 = scalar_lea.sflag [#allocation6], %s3177
          %s3179 = sand.u32 %s193, 1
          %s3180 = smul.addr %s3179, 2
          %s3181 = scalar_lea.vmem [#allocation5], %s3180
          %3182 = dma.done %s3178, 32
        $region110: #{tpu_custom_call.1} parent=101 // pred_fallthru
          _
        // Predicated region
        $region111: #{tpu_custom_call.1} parent=101 // pred_check
          %p3183 = pneg %p234
        $region112: #{tpu_custom_call.1} parent=101 // pred_check_branch
          %3185 = sbr.rel (%p3183) target = $region114
        $region113: #{tpu_custom_call.1} parent=101 // pred_region
          %s3186 = sand.u32 %s25, 1
          %s3187 = scalar_lea.sflag [#allocation6], %s3186
          %s3188 = sand.u32 %s219, 1
          %s3189 = smul.addr %s3188, 2
          %s3190 = scalar_lea.vmem [#allocation7], %s3189
          %3191 = dma.done %s3187, 32
        $region114: #{tpu_custom_call.1} parent=101 // pred_fallthru
          _
      $region102: #{tpu_custom_call.1} parent=5 // pred_fallthru
        _
    $region6: #{tpu_custom_call.1} parent=1 // loop_footer
      %s23 = sadd.s32 1, %s19
    $region7: #{tpu_custom_call.1} parent=1 // loop_footer_branch
      %18 = sbr.rel target = $region3
    $region8: #{tpu_custom_call.1} parent=1 // loop_exit
      _
    %3192 = vsyncpa [#allocation4], 1
    %s3193 = scalar_lea.sflag [#allocation4], 1
    %3194 = vsyncpa %s3193, 1
    %3195 = vsyncpa [#allocation6], 1
    %s3196 = scalar_lea.sflag [#allocation6], 1
    %3197 = vsyncpa %s3196, 1

</llo_original>
